<compile_context>
chip_gen: v6e
topology: v6e:2x2x1
jax: 0.10.0
libtpu: 0.0.40
codegen_flags: <defaults>
</compile_context>

<pallas_src>
import jax
import jax.numpy as jnp
from jax.experimental import pallas as pl
from jax.experimental.pallas import tpu as pltpu

# "highest" only affects f32 x f32 matmuls -> keeps the pure-JAX reference
# exact; the kernel's matmuls use explicit bf16 operands and DEFAULT precision.
jax.config.update("jax_default_matmul_precision", "highest")

# ----------------------------- synthetic config -----------------------------
BATCH = 2
CHANNELS = 3
IMAGE_SIZE = 16
PATCH_SIZE = 8
HIDDEN = 32            # CLIP vision hidden size
NUM_HEADS = 4
HEAD_DIM = HIDDEN // NUM_HEADS
INTERMEDIATE = 64      # CLIP MLP intermediate size
NUM_LAYERS = 3
SELECT_LAYER = -2      # hidden_states[-2]  -> run NUM_LAYERS - 1 layers
EMBED_HIDDEN = 64      # projector output (embed_hidden_size)
LN_EPS = 1e-5

GRID = IMAGE_SIZE // PATCH_SIZE
NUM_PATCHES = GRID * GRID
SEQ = NUM_PATCHES + 1                      # +CLS
TOK = BATCH * SEQ                          # all tokens of all images (10)
TOK_PAD = ((TOK + 15) // 16) * 16          # pad to bf16 sublane-pack (16)
N_RUN = NUM_LAYERS + 1 + SELECT_LAYER      # number of encoder layers run
PATCH_DIM = CHANNELS * PATCH_SIZE * PATCH_SIZE


# ------------------------------ kernel helpers -------------------------------
def _layernorm(x, g, b):
    mu = jnp.mean(x, axis=-1, keepdims=True)
    var = jnp.mean((x - mu) ** 2, axis=-1, keepdims=True)
    return (x - mu) * jax.lax.rsqrt(var + LN_EPS) * g + b


def _mm(a, w):
    # Activation cast to bf16; weight already bf16 host-side. f32 accumulate.
    return jnp.dot(a.astype(jnp.bfloat16), w.astype(jnp.bfloat16),
                   preferred_element_type=jnp.float32,
                   precision=jax.lax.Precision.DEFAULT)


def _bmm(spec, a, b):
    # Head-batched matmul (single leading batch dim), bf16 in / f32 out.
    return jnp.einsum(spec, a.astype(jnp.bfloat16), b.astype(jnp.bfloat16),
                      preferred_element_type=jnp.float32,
                      precision=jax.lax.Precision.DEFAULT)


# ------------------------------- fused kernel --------------------------------
def fused_clip_kernel(patches_ref, patch_w_ref, base_ref, pre_ln_ref,
                      wqkv_ref, wout_ref, wmlp1_ref, wmlp2_ref,
                      scal_ref, fc1b_ref, projw_ref, projb_ref, out_ref):
    D = HIDDEN
    H, hd = NUM_HEADS, HEAD_DIM
    T = TOK_PAD

    # ---- CLIP vision embeddings: patch conv (as matmul) + CLS/pos, pre-LN ----
    # patches rows for CLS / pad tokens are zero, base carries CLS + pos emb.
    x = _mm(patches_ref[...], patch_w_ref[...]) + base_ref[...]       # [T, D]
    x = _layernorm(x, pre_ln_ref[0], pre_ln_ref[1])

    # ---- block-diagonal attention mask generated in-kernel (no HBM traffic).
    # Finite mask value (not -1e30): pad rows stay finite and are discarded
    # later by the wrapper; real rows never attend outside their own image.
    qi = jax.lax.broadcasted_iota(jnp.int32, (T, T), 0)
    ki = jax.lax.broadcasted_iota(jnp.int32, (T, T), 1)
    n_seg = (T + SEQ - 1) // SEQ

    def seg(idx):
        s = jnp.zeros(idx.shape, jnp.int32)
        for m in range(1, n_seg):                 # exact, no integer division
            s = s + (idx >= m * SEQ).astype(jnp.int32)
        return s

    mask = jnp.where(seg(qi) == seg(ki), 0.0, -1e4).astype(jnp.float32)

    scale = hd ** -0.5

    # ---- encoder layers (weights stacked on axis 0, static unroll) ----
    for l in range(N_RUN):
        # --- attention (pre-norm residual), single fused QKV matmul ---
        h = _layernorm(x, scal_ref[l, 0], scal_ref[l, 1])
        qkv = _mm(h, wqkv_ref[l])                                      # [T, 3D]
        q = (qkv[:, 0 * D:1 * D] + scal_ref[l, 4]) * scale
        k = qkv[:, 1 * D:2 * D] + scal_ref[l, 5]
        v = qkv[:, 2 * D:3 * D] + scal_ref[l, 6]

        # split heads via static lane slices -> [H, T, hd] (leading batch dim)
        qh = jnp.stack([q[:, i * hd:(i + 1) * hd] for i in range(H)], axis=0)
        kh = jnp.stack([k[:, i * hd:(i + 1) * hd] for i in range(H)], axis=0)
        vh = jnp.stack([v[:, i * hd:(i + 1) * hd] for i in range(H)], axis=0)

        s = _bmm("hqd,hkd->hqk", qh, kh) + mask[None]                  # [H, T, T]
        s = s - jnp.max(s, axis=-1, keepdims=True)
        p = jnp.exp(s)                                                 # f32 softmax
        p = p * pl.reciprocal(jnp.sum(p, axis=-1, keepdims=True), approx=True)
        o = _bmm("hqk,hkd->hqd", p, vh)                                # [H, T, hd]

        # merge heads along lanes, single lane-dense output projection
        o_flat = jnp.concatenate([o[i] for i in range(H)], axis=-1)    # [T, D]
        x = x + _mm(o_flat, wout_ref[l]) + scal_ref[l, 7]

        # --- MLP (pre-norm residual, quick_gelu in f32) ---
        h2 = _layernorm(x, scal_ref[l, 2], scal_ref[l, 3])
        h2 = _mm(h2, wmlp1_ref[l]) + fc1b_ref[l, 0]                    # [T, I]
        h2 = h2 * jax.nn.sigmoid(1.702 * h2)                          # quick_gelu
        x = x + _mm(h2, wmlp2_ref[l]) + scal_ref[l, 8]

    # ---- projector; one contiguous lane-dense store.  CLS / pad rows are
    #      sliced off in the XLA wrapper.  post_layernorm == Identity.
    out_ref[...] = _mm(x, projw_ref[...]) + projb_ref[...]


# ------------------------------ pallas wrapper --------------------------------
def clip_vision_embedding_forward(images, params):
    """images: f32[B, C, H, W] (NCHW). Returns f32[B, NUM_PATCHES, EMBED_HIDDEN]."""
    B, C, Him, Wim = images.shape
    P = PATCH_SIZE
    Gh, Gw = Him // P, Wim // P
    NP_ = Gh * Gw
    S = NP_ + 1
    T = B * S
    bf = jnp.bfloat16

    # ----- host-side layout glue (pure XLA, runs once per call) -----
    # Patch extraction: conv with stride==kernel, no padding -> flat patches,
    # laid out directly in token order with zero rows at CLS / pad positions.
    patches = images.reshape(B, C, Gh, P, Gw, P).transpose(0, 2, 4, 1, 3, 5)
    patches = patches.reshape(B, NP_, C * P * P)
    patches_tok = jnp.concatenate(
        [jnp.zeros((B, 1, C * P * P), jnp.float32), patches], axis=1
    ).reshape(T, C * P * P)
    patches_tok = jnp.pad(patches_tok, ((0, TOK_PAD - T), (0, 0)))

    # base[t] = pos_emb[t % S]  (+ class_embedding on CLS rows); zero pad rows.
    tok = jnp.arange(T)
    base = jnp.tile(params["pos_emb"], (B, 1))
    base = base + (tok % S == 0).astype(jnp.float32)[:, None] * \
        params["class_embedding"][None, :]
    base = jnp.pad(base, ((0, TOK_PAD - T), (0, 0)))

    pre_ln = jnp.concatenate([params["pre_ln_g"], params["pre_ln_b"]], axis=0)

    # ----- pack per-layer weights into a few bf16 / f32 slabs -----
    layers = params["layers"][:N_RUN]
    wqkv = jnp.stack([jnp.concatenate([lp["q_w"], lp["k_w"], lp["v_w"]], axis=1)
                      for lp in layers]).astype(bf)                  # [L, D, 3D]
    wout = jnp.stack([lp["o_w"] for lp in layers]).astype(bf)        # [L, D, D]
    wmlp1 = jnp.stack([lp["fc1_w"] for lp in layers]).astype(bf)     # [L, D, I]
    wmlp2 = jnp.stack([lp["fc2_w"] for lp in layers]).astype(bf)     # [L, I, D]
    scal = jnp.stack([jnp.concatenate(
        [lp["ln1_g"], lp["ln1_b"], lp["ln2_g"], lp["ln2_b"],
         lp["q_b"], lp["k_b"], lp["v_b"], lp["o_b"], lp["fc2_b"]], axis=0)
        for lp in layers])                                           # [L, 9, D] f32
    fc1b = jnp.stack([lp["fc1_b"] for lp in layers])                 # [L, 1, I] f32

    args = (patches_tok, params["patch_w"].astype(bf), base, pre_ln,
            wqkv, wout, wmlp1, wmlp2, scal, fc1b,
            params["proj_w"].astype(bf), params["proj_b"])

    vmem = pl.BlockSpec(memory_space=pltpu.MemorySpace.VMEM)
    y = pl.pallas_call(
        fused_clip_kernel,
        out_shape=jax.ShapeDtypeStruct((TOK_PAD, EMBED_HIDDEN), jnp.float32),
        in_specs=[vmem] * len(args),
        out_specs=vmem,
        compiler_params=pltpu.CompilerParams(vmem_limit_bytes=32 * 1024 * 1024),
    )(*args)

    # Drop pad rows and each image's CLS row with a cheap XLA slice.
    return y[:T].reshape(B, S, EMBED_HIDDEN)[:, 1:, :]


# ------------------------- pure-JAX reference (check) -------------------------
def reference_forward(images, params):
    B, C, Him, Wim = images.shape
    P = PATCH_SIZE
    Gh, Gw = Him // P, Wim // P
    NP_ = Gh * Gw
    patches = images.reshape(B, C, Gh, P, Gw, P)
    patches = patches.transpose(0, 2, 4, 1, 3, 5).reshape(B, NP_, C * P * P)
    pe = patches @ params["patch_w"]
    cls = jnp.broadcast_to(params["class_embedding"][None, None, :], (B, 1, HIDDEN))
    x = jnp.concatenate([cls, pe], axis=1) + params["pos_emb"][None]

    def ln(v, g, b):
        mu = v.mean(-1, keepdims=True)
        var = ((v - mu) ** 2).mean(-1, keepdims=True)
        return (v - mu) / jnp.sqrt(var + LN_EPS) * g + b

    x = ln(x, params["pre_ln_g"], params["pre_ln_b"])
    for lp in params["layers"][:N_RUN]:
        h = ln(x, lp["ln1_g"], lp["ln1_b"])
        q = (h @ lp["q_w"] + lp["q_b"]) * (HEAD_DIM ** -0.5)
        k = h @ lp["k_w"] + lp["k_b"]
        v = h @ lp["v_w"] + lp["v_b"]
        S = x.shape[1]
        qh = q.reshape(B, S, NUM_HEADS, HEAD_DIM).transpose(0, 2, 1, 3)
        kh = k.reshape(B, S, NUM_HEADS, HEAD_DIM).transpose(0, 2, 1, 3)
        vh = v.reshape(B, S, NUM_HEADS, HEAD_DIM).transpose(0, 2, 1, 3)
        sc = jnp.einsum("bhqd,bhkd->bhqk", qh, kh)
        pr = jax.nn.softmax(sc, axis=-1)
        ao = jnp.einsum("bhqk,bhkd->bhqd", pr, vh).transpose(0, 2, 1, 3)
        ao = ao.reshape(B, S, HIDDEN) @ lp["o_w"] + lp["o_b"]
        x = x + ao
        h2 = ln(x, lp["ln2_g"], lp["ln2_b"])
        h2 = h2 @ lp["fc1_w"] + lp["fc1_b"]
        h2 = h2 * jax.nn.sigmoid(1.702 * h2)
        h2 = h2 @ lp["fc2_w"] + lp["fc2_b"]
        x = x + h2
    feats = x[:, 1:, :]
    return feats @ params["proj_w"] + params["proj_b"]


# ------------------------------ param init ------------------------------------
def init_params(key):
    std = 0.02
    ks = iter(jax.random.split(key, 8 + NUM_LAYERS * 8))

    def nrm(shape):
        return (std * jax.random.normal(next(ks), shape)).astype(jnp.float32)

    params = {
        "patch_w": nrm((PATCH_DIM, HIDDEN)),
        "class_embedding": nrm((HIDDEN,)),
        "pos_emb": nrm((SEQ, HIDDEN)),
        "pre_ln_g": jnp.ones((1, HIDDEN), jnp.float32),
        "pre_ln_b": jnp.zeros((1, HIDDEN), jnp.float32),
        "proj_w": nrm((HIDDEN, EMBED_HIDDEN)),
        "proj_b": jnp.zeros((1, EMBED_HIDDEN), jnp.float32),
        "layers": [],
    }
    for _ in range(NUM_LAYERS):
        params["layers"].append({
            "ln1_g": jnp.ones((1, HIDDEN), jnp.float32),
            "ln1_b": jnp.zeros((1, HIDDEN), jnp.float32),
            "q_w": nrm((HIDDEN, HIDDEN)), "q_b": jnp.zeros((1, HIDDEN), jnp.float32),
            "k_w": nrm((HIDDEN, HIDDEN)), "k_b": jnp.zeros((1, HIDDEN), jnp.float32),
            "v_w": nrm((HIDDEN, HIDDEN)), "v_b": jnp.zeros((1, HIDDEN), jnp.float32),
            "o_w": nrm((HIDDEN, HIDDEN)), "o_b": jnp.zeros((1, HIDDEN), jnp.float32),
            "ln2_g": jnp.ones((1, HIDDEN), jnp.float32),
            "ln2_b": jnp.zeros((1, HIDDEN), jnp.float32),
            "fc1_w": nrm((HIDDEN, INTERMEDIATE)),
            "fc1_b": jnp.zeros((1, INTERMEDIATE), jnp.float32),
            "fc2_w": nrm((INTERMEDIATE, HIDDEN)),
            "fc2_b": jnp.zeros((1, HIDDEN), jnp.float32),
        })
    return params


# ---------------------------------- main ---------------------------------------
if __name__ == "__main__":
    key = jax.random.PRNGKey(0)
    kp, kx = jax.random.split(key)
    params = init_params(kp)
    images = jax.random.normal(kx, (BATCH, CHANNELS, IMAGE_SIZE, IMAGE_SIZE),
                               dtype=jnp.float32)

    out = clip_vision_embedding_forward(images, params)
    out = jax.block_until_ready(out)

    assert out.shape == (BATCH, NUM_PATCHES, EMBED_HIDDEN), out.shape
    assert bool(jnp.all(jnp.isfinite(out)))

    ref = reference_forward(images, params)
    max_diff = float(jnp.max(jnp.abs(out - ref)))
    assert max_diff < 1e-2, f"max diff vs reference too large: {max_diff}"

    print("KERNEL_OK")
</pallas_src>

<mosaic_0001>
module attributes {stable_mosaic.version = 11 : i64} {
  func.func @fused_clip_kernel(%arg0: memref<16x192xf32, #tpu.memory_space<vmem>>, %arg1: memref<192x32xbf16, #tpu.memory_space<vmem>>, %arg2: memref<16x32xf32, #tpu.memory_space<vmem>>, %arg3: memref<2x32xf32, #tpu.memory_space<vmem>>, %arg4: memref<2x32x96xbf16, #tpu.memory_space<vmem>>, %arg5: memref<2x32x32xbf16, #tpu.memory_space<vmem>>, %arg6: memref<2x32x64xbf16, #tpu.memory_space<vmem>>, %arg7: memref<2x64x32xbf16, #tpu.memory_space<vmem>>, %arg8: memref<2x9x32xf32, #tpu.memory_space<vmem>>, %arg9: memref<2x1x64xf32, #tpu.memory_space<vmem>>, %arg10: memref<32x64xbf16, #tpu.memory_space<vmem>>, %arg11: memref<1x64xf32, #tpu.memory_space<vmem>>, %arg12: memref<16x64xf32, #tpu.memory_space<vmem>>) attributes {dimension_semantics = [], scalar_prefetch = 0 : i64, scratch_operands = 0 : i64, tpu.core_type = #tpu.core_type<tc>} {
    %c0 = arith.constant 0 : index
    %c0_0 = arith.constant 0 : index
    %0 = vector.load %arg0[%c0, %c0_0] : memref<16x192xf32, #tpu.memory_space<vmem>>, vector<16x192xf32>
    %c0_1 = arith.constant 0 : index
    %c0_2 = arith.constant 0 : index
    %1 = vector.load %arg1[%c0_1, %c0_2] : memref<192x32xbf16, #tpu.memory_space<vmem>>, vector<192x32xbf16>
    %2 = arith.truncf %0 : vector<16x192xf32> to vector<16x192xbf16>
    %cst = arith.constant dense<0.000000e+00> : vector<16x32xf32>
    %3 = tpu.matmul %2, %1, %cst {dimension_numbers = #tpu.dot_dimension_numbers<[1], [0], [0], [1], [0, 0, 1, 1], [], []>} : vector<16x192xbf16>, vector<192x32xbf16>, vector<16x32xf32> -> vector<16x32xf32>
    %c0_3 = arith.constant 0 : index
    %c0_4 = arith.constant 0 : index
    %4 = vector.load %arg2[%c0_3, %c0_4] : memref<16x32xf32, #tpu.memory_space<vmem>>, vector<16x32xf32>
    %5 = arith.addf %3, %4 : vector<16x32xf32>
    %c0_5 = arith.constant 0 : index
    %c0_6 = arith.constant 0 : index
    %6 = vector.load %arg3[%c0_5, %c0_6] : memref<2x32xf32, #tpu.memory_space<vmem>>, vector<1x32xf32>
    %7 = vector.shape_cast %6 : vector<1x32xf32> to vector<32xf32>
    %c1 = arith.constant 1 : index
    %c0_7 = arith.constant 0 : index
    %8 = vector.load %arg3[%c1, %c0_7] : memref<2x32xf32, #tpu.memory_space<vmem>>, vector<1x32xf32>
    %9 = vector.shape_cast %8 : vector<1x32xf32> to vector<32xf32>
    %cst_8 = arith.constant dense<0.000000e+00> : vector<16xf32>
    %10 = vector.multi_reduction <add>, %5, %cst_8 [1] : vector<16x32xf32> to vector<16xf32>
    %11 = vector.shape_cast %10 : vector<16xf32> to vector<16x1xf32>
    %cst_9 = arith.constant 3.200000e+01 : f32
    %12 = vector.broadcast %cst_9 : f32 to vector<16x1xf32>
    %13 = arith.divf %11, %12 : vector<16x1xf32>
    %14 = vector.broadcast %13 : vector<16x1xf32> to vector<16x32xf32>
    %15 = arith.subf %5, %14 : vector<16x32xf32>
    %16 = arith.mulf %15, %15 : vector<16x32xf32>
    %cst_10 = arith.constant dense<0.000000e+00> : vector<16xf32>
    %17 = vector.multi_reduction <add>, %16, %cst_10 [1] : vector<16x32xf32> to vector<16xf32>
    %18 = vector.shape_cast %17 : vector<16xf32> to vector<16x1xf32>
    %cst_11 = arith.constant 3.200000e+01 : f32
    %19 = vector.broadcast %cst_11 : f32 to vector<16x1xf32>
    %20 = arith.divf %18, %19 : vector<16x1xf32>
    %21 = vector.broadcast %13 : vector<16x1xf32> to vector<16x32xf32>
    %22 = arith.subf %5, %21 : vector<16x32xf32>
    %cst_12 = arith.constant 9.99999974E-6 : f32
    %23 = vector.broadcast %cst_12 : f32 to vector<16x1xf32>
    %24 = arith.addf %20, %23 : vector<16x1xf32>
    %25 = math.rsqrt %24 : vector<16x1xf32>
    %26 = vector.broadcast %25 : vector<16x1xf32> to vector<16x32xf32>
    %27 = arith.mulf %22, %26 : vector<16x32xf32>
    %28 = vector.shape_cast %7 : vector<32xf32> to vector<1x32xf32>
    %29 = vector.broadcast %28 : vector<1x32xf32> to vector<16x32xf32>
    %30 = arith.mulf %27, %29 : vector<16x32xf32>
    %31 = vector.shape_cast %9 : vector<32xf32> to vector<1x32xf32>
    %32 = vector.broadcast %31 : vector<1x32xf32> to vector<16x32xf32>
    %33 = arith.addf %30, %32 : vector<16x32xf32>
    %34 = tpu.iota {dimensions = array<i32: 0>} : vector<16x16xi32>
    %35 = tpu.iota {dimensions = array<i32: 1>} : vector<16x16xi32>
    %c0_i32 = arith.constant 0 : i32
    %36 = vector.broadcast %c0_i32 : i32 to vector<16x16xi32>
    %c5_i32 = arith.constant 5 : i32
    %37 = vector.broadcast %c5_i32 : i32 to vector<16x16xi32>
    %38 = arith.cmpi sge, %34, %37 : vector<16x16xi32>
    %39 = arith.extui %38 : vector<16x16xi1> to vector<16x16xi32>
    %40 = arith.addi %36, %39 : vector<16x16xi32>
    %c10_i32 = arith.constant 10 : i32
    %41 = vector.broadcast %c10_i32 : i32 to vector<16x16xi32>
    %42 = arith.cmpi sge, %34, %41 : vector<16x16xi32>
    %43 = arith.extui %42 : vector<16x16xi1> to vector<16x16xi32>
    %44 = arith.addi %40, %43 : vector<16x16xi32>
    %c15_i32 = arith.constant 15 : i32
    %45 = vector.broadcast %c15_i32 : i32 to vector<16x16xi32>
    %46 = arith.cmpi sge, %34, %45 : vector<16x16xi32>
    %47 = arith.extui %46 : vector<16x16xi1> to vector<16x16xi32>
    %48 = arith.addi %44, %47 : vector<16x16xi32>
    %c0_i32_13 = arith.constant 0 : i32
    %49 = vector.broadcast %c0_i32_13 : i32 to vector<16x16xi32>
    %c5_i32_14 = arith.constant 5 : i32
    %50 = vector.broadcast %c5_i32_14 : i32 to vector<16x16xi32>
    %51 = arith.cmpi sge, %35, %50 : vector<16x16xi32>
    %52 = arith.extui %51 : vector<16x16xi1> to vector<16x16xi32>
    %53 = arith.addi %49, %52 : vector<16x16xi32>
    %c10_i32_15 = arith.constant 10 : i32
    %54 = vector.broadcast %c10_i32_15 : i32 to vector<16x16xi32>
    %55 = arith.cmpi sge, %35, %54 : vector<16x16xi32>
    %56 = arith.extui %55 : vector<16x16xi1> to vector<16x16xi32>
    %57 = arith.addi %53, %56 : vector<16x16xi32>
    %c15_i32_16 = arith.constant 15 : i32
    %58 = vector.broadcast %c15_i32_16 : i32 to vector<16x16xi32>
    %59 = arith.cmpi sge, %35, %58 : vector<16x16xi32>
    %60 = arith.extui %59 : vector<16x16xi1> to vector<16x16xi32>
    %61 = arith.addi %57, %60 : vector<16x16xi32>
    %62 = arith.cmpi eq, %48, %61 : vector<16x16xi32>
    %cst_17 = arith.constant 0.000000e+00 : f32
    %cst_18 = arith.constant -1.000000e+04 : f32
    %63 = vector.broadcast %cst_17 : f32 to vector<16x16xf32>
    %64 = vector.broadcast %cst_18 : f32 to vector<16x16xf32>
    %65 = arith.select %62, %63, %64 : vector<16x16xi1>, vector<16x16xf32>
    %c0_19 = arith.constant 0 : index
    %c0_20 = arith.constant 0 : index
    %c0_21 = arith.constant 0 : index
    %66 = vector.load %arg8[%c0_19, %c0_20, %c0_21] : memref<2x9x32xf32, #tpu.memory_space<vmem>>, vector<1x1x32xf32>
    %67 = vector.shape_cast %66 : vector<1x1x32xf32> to vector<32xf32>
    %c0_22 = arith.constant 0 : index
    %c1_23 = arith.constant 1 : index
    %c0_24 = arith.constant 0 : index
    %68 = vector.load %arg8[%c0_22, %c1_23, %c0_24] : memref<2x9x32xf32, #tpu.memory_space<vmem>>, vector<1x1x32xf32>
    %69 = vector.shape_cast %68 : vector<1x1x32xf32> to vector<32xf32>
    %cst_25 = arith.constant dense<0.000000e+00> : vector<16xf32>
    %70 = vector.multi_reduction <add>, %33, %cst_25 [1] : vector<16x32xf32> to vector<16xf32>
    %71 = vector.shape_cast %70 : vector<16xf32> to vector<16x1xf32>
    %cst_26 = arith.constant 3.200000e+01 : f32
    %72 = vector.broadcast %cst_26 : f32 to vector<16x1xf32>
    %73 = arith.divf %71, %72 : vector<16x1xf32>
    %74 = vector.broadcast %73 : vector<16x1xf32> to vector<16x32xf32>
    %75 = arith.subf %33, %74 : vector<16x32xf32>
    %76 = arith.mulf %75, %75 : vector<16x32xf32>
    %cst_27 = arith.constant dense<0.000000e+00> : vector<16xf32>
    %77 = vector.multi_reduction <add>, %76, %cst_27 [1] : vector<16x32xf32> to vector<16xf32>
    %78 = vector.shape_cast %77 : vector<16xf32> to vector<16x1xf32>
    %cst_28 = arith.constant 3.200000e+01 : f32
    %79 = vector.broadcast %cst_28 : f32 to vector<16x1xf32>
    %80 = arith.divf %78, %79 : vector<16x1xf32>
    %81 = vector.broadcast %73 : vector<16x1xf32> to vector<16x32xf32>
    %82 = arith.subf %33, %81 : vector<16x32xf32>
    %cst_29 = arith.constant 9.99999974E-6 : f32
    %83 = vector.broadcast %cst_29 : f32 to vector<16x1xf32>
    %84 = arith.addf %80, %83 : vector<16x1xf32>
    %85 = math.rsqrt %84 : vector<16x1xf32>
    %86 = vector.broadcast %85 : vector<16x1xf32> to vector<16x32xf32>
    %87 = arith.mulf %82, %86 : vector<16x32xf32>
    %88 = vector.shape_cast %67 : vector<32xf32> to vector<1x32xf32>
    %89 = vector.broadcast %88 : vector<1x32xf32> to vector<16x32xf32>
    %90 = arith.mulf %87, %89 : vector<16x32xf32>
    %91 = vector.shape_cast %69 : vector<32xf32> to vector<1x32xf32>
    %92 = vector.broadcast %91 : vector<1x32xf32> to vector<16x32xf32>
    %93 = arith.addf %90, %92 : vector<16x32xf32>
    %c0_30 = arith.constant 0 : index
    %c0_31 = arith.constant 0 : index
    %c0_32 = arith.constant 0 : index
    %94 = vector.load %arg4[%c0_30, %c0_31, %c0_32] : memref<2x32x96xbf16, #tpu.memory_space<vmem>>, vector<1x32x96xbf16>
    %95 = vector.shape_cast %94 : vector<1x32x96xbf16> to vector<32x96xbf16>
    %96 = arith.truncf %93 : vector<16x32xf32> to vector<16x32xbf16>
    %cst_33 = arith.constant dense<0.000000e+00> : vector<16x96xf32>
    %97 = tpu.matmul %96, %95, %cst_33 {dimension_numbers = #tpu.dot_dimension_numbers<[1], [0], [0], [1], [0, 0, 1, 1], [], []>} : vector<16x32xbf16>, vector<32x96xbf16>, vector<16x96xf32> -> vector<16x96xf32>
    %98 = vector.extract_strided_slice %97 {offsets = [0, 0], sizes = [16, 32], strides = [1, 1]} : vector<16x96xf32> to vector<16x32xf32>
    %c0_34 = arith.constant 0 : index
    %c4 = arith.constant 4 : index
    %c0_35 = arith.constant 0 : index
    %99 = vector.load %arg8[%c0_34, %c4, %c0_35] : memref<2x9x32xf32, #tpu.memory_space<vmem>>, vector<1x1x32xf32>
    %100 = vector.shape_cast %99 : vector<1x1x32xf32> to vector<32xf32>
    %101 = vector.shape_cast %100 : vector<32xf32> to vector<1x32xf32>
    %102 = vector.broadcast %101 : vector<1x32xf32> to vector<16x32xf32>
    %103 = arith.addf %98, %102 : vector<16x32xf32>
    %cst_36 = arith.constant 0.353553385 : f32
    %104 = vector.broadcast %cst_36 : f32 to vector<16x32xf32>
    %105 = arith.mulf %103, %104 : vector<16x32xf32>
    %106 = vector.extract_strided_slice %97 {offsets = [0, 32], sizes = [16, 32], strides = [1, 1]} : vector<16x96xf32> to vector<16x32xf32>
    %c0_37 = arith.constant 0 : index
    %c5 = arith.constant 5 : index
    %c0_38 = arith.constant 0 : index
    %107 = vector.load %arg8[%c0_37, %c5, %c0_38] : memref<2x9x32xf32, #tpu.memory_space<vmem>>, vector<1x1x32xf32>
    %108 = vector.shape_cast %107 : vector<1x1x32xf32> to vector<32xf32>
    %109 = vector.shape_cast %108 : vector<32xf32> to vector<1x32xf32>
    %110 = vector.broadcast %109 : vector<1x32xf32> to vector<16x32xf32>
    %111 = arith.addf %106, %110 : vector<16x32xf32>
    %112 = vector.extract_strided_slice %97 {offsets = [0, 64], sizes = [16, 32], strides = [1, 1]} : vector<16x96xf32> to vector<16x32xf32>
    %c0_39 = arith.constant 0 : index
    %c6 = arith.constant 6 : index
    %c0_40 = arith.constant 0 : index
    %113 = vector.load %arg8[%c0_39, %c6, %c0_40] : memref<2x9x32xf32, #tpu.memory_space<vmem>>, vector<1x1x32xf32>
    %114 = vector.shape_cast %113 : vector<1x1x32xf32> to vector<32xf32>
    %115 = vector.shape_cast %114 : vector<32xf32> to vector<1x32xf32>
    %116 = vector.broadcast %115 : vector<1x32xf32> to vector<16x32xf32>
    %117 = arith.addf %112, %116 : vector<16x32xf32>
    %118 = vector.extract_strided_slice %105 {offsets = [0, 0], sizes = [16, 8], strides = [1, 1]} : vector<16x32xf32> to vector<16x8xf32>
    %119 = vector.extract_strided_slice %105 {offsets = [0, 8], sizes = [16, 8], strides = [1, 1]} : vector<16x32xf32> to vector<16x8xf32>
    %120 = vector.extract_strided_slice %105 {offsets = [0, 16], sizes = [16, 8], strides = [1, 1]} : vector<16x32xf32> to vector<16x8xf32>
    %121 = vector.extract_strided_slice %105 {offsets = [0, 24], sizes = [16, 8], strides = [1, 1]} : vector<16x32xf32> to vector<16x8xf32>
    %122 = vector.shape_cast %118 : vector<16x8xf32> to vector<1x16x8xf32>
    %123 = vector.shape_cast %119 : vector<16x8xf32> to vector<1x16x8xf32>
    %124 = vector.shape_cast %120 : vector<16x8xf32> to vector<1x16x8xf32>
    %125 = vector.shape_cast %121 : vector<16x8xf32> to vector<1x16x8xf32>
    %126 = tpu.concatenate %122, %123, %124, %125 in 0 : vector<1x16x8xf32>, vector<1x16x8xf32>, vector<1x16x8xf32>, vector<1x16x8xf32> -> vector<4x16x8xf32>
    %127 = vector.extract_strided_slice %111 {offsets = [0, 0], sizes = [16, 8], strides = [1, 1]} : vector<16x32xf32> to vector<16x8xf32>
    %128 = vector.extract_strided_slice %111 {offsets = [0, 8], sizes = [16, 8], strides = [1, 1]} : vector<16x32xf32> to vector<16x8xf32>
    %129 = vector.extract_strided_slice %111 {offsets = [0, 16], sizes = [16, 8], strides = [1, 1]} : vector<16x32xf32> to vector<16x8xf32>
    %130 = vector.extract_strided_slice %111 {offsets = [0, 24], sizes = [16, 8], strides = [1, 1]} : vector<16x32xf32> to vector<16x8xf32>
    %131 = vector.shape_cast %127 : vector<16x8xf32> to vector<1x16x8xf32>
    %132 = vector.shape_cast %128 : vector<16x8xf32> to vector<1x16x8xf32>
    %133 = vector.shape_cast %129 : vector<16x8xf32> to vector<1x16x8xf32>
    %134 = vector.shape_cast %130 : vector<16x8xf32> to vector<1x16x8xf32>
    %135 = tpu.concatenate %131, %132, %133, %134 in 0 : vector<1x16x8xf32>, vector<1x16x8xf32>, vector<1x16x8xf32>, vector<1x16x8xf32> -> vector<4x16x8xf32>
    %136 = vector.extract_strided_slice %117 {offsets = [0, 0], sizes = [16, 8], strides = [1, 1]} : vector<16x32xf32> to vector<16x8xf32>
    %137 = vector.extract_strided_slice %117 {offsets = [0, 8], sizes = [16, 8], strides = [1, 1]} : vector<16x32xf32> to vector<16x8xf32>
    %138 = vector.extract_strided_slice %117 {offsets = [0, 16], sizes = [16, 8], strides = [1, 1]} : vector<16x32xf32> to vector<16x8xf32>
    %139 = vector.extract_strided_slice %117 {offsets = [0, 24], sizes = [16, 8], strides = [1, 1]} : vector<16x32xf32> to vector<16x8xf32>
    %140 = vector.shape_cast %136 : vector<16x8xf32> to vector<1x16x8xf32>
    %141 = vector.shape_cast %137 : vector<16x8xf32> to vector<1x16x8xf32>
    %142 = vector.shape_cast %138 : vector<16x8xf32> to vector<1x16x8xf32>
    %143 = vector.shape_cast %139 : vector<16x8xf32> to vector<1x16x8xf32>
    %144 = tpu.concatenate %140, %141, %142, %143 in 0 : vector<1x16x8xf32>, vector<1x16x8xf32>, vector<1x16x8xf32>, vector<1x16x8xf32> -> vector<4x16x8xf32>
    %145 = arith.truncf %126 : vector<4x16x8xf32> to vector<4x16x8xbf16>
    %146 = arith.truncf %135 : vector<4x16x8xf32> to vector<4x16x8xbf16>
    "tpu.trace_start"() <{level = 10 : i32, message = "hqd,hkd->hqk"}> : () -> ()
    %cst_41 = arith.constant dense<0.000000e+00> : vector<4x16x16xf32>
    %147 = tpu.matmul %145, %146, %cst_41 {dimension_numbers = #tpu.dot_dimension_numbers<[2], [2], [1], [1], [0, 0, 0, 1, 1, 1], [0], [0]>} : vector<4x16x8xbf16>, vector<4x16x8xbf16>, vector<4x16x16xf32> -> vector<4x16x16xf32>
    "tpu.trace_stop"() : () -> ()
    %148 = vector.shape_cast %65 : vector<16x16xf32> to vector<1x16x16xf32>
    %149 = vector.broadcast %148 : vector<1x16x16xf32> to vector<4x16x16xf32>
    %150 = arith.addf %147, %149 : vector<4x16x16xf32>
    %cst_42 = arith.constant dense<0xFF800000> : vector<4x16xf32>
    %151 = vector.multi_reduction <maximumf>, %150, %cst_42 [2] : vector<4x16x16xf32> to vector<4x16xf32>
    %152 = vector.shape_cast %151 : vector<4x16xf32> to vector<4x16x1xf32>
    %153 = vector.broadcast %152 : vector<4x16x1xf32> to vector<4x16x16xf32>
    %154 = arith.subf %150, %153 : vector<4x16x16xf32>
    %155 = math.exp %154 : vector<4x16x16xf32>
    %cst_43 = arith.constant dense<0.000000e+00> : vector<4x16xf32>
    %156 = vector.multi_reduction <add>, %155, %cst_43 [2] : vector<4x16x16xf32> to vector<4x16xf32>
    %157 = vector.shape_cast %156 : vector<4x16xf32> to vector<4x16x1xf32>
    %158 = tpu.reciprocal %157 {approx = true} : vector<4x16x1xf32> -> vector<4x16x1xf32>
    %159 = vector.broadcast %158 : vector<4x16x1xf32> to vector<4x16x16xf32>
    %160 = arith.mulf %155, %159 : vector<4x16x16xf32>
    %161 = arith.truncf %160 : vector<4x16x16xf32> to vector<4x16x16xbf16>
    %162 = arith.truncf %144 : vector<4x16x8xf32> to vector<4x16x8xbf16>
    "tpu.trace_start"() <{level = 10 : i32, message = "hqk,hkd->hqd"}> : () -> ()
    %cst_44 = arith.constant dense<0.000000e+00> : vector<4x16x8xf32>
    %163 = tpu.matmul %161, %162, %cst_44 {dimension_numbers = #tpu.dot_dimension_numbers<[2], [1], [1], [2], [0, 0, 0, 1, 1, 2], [0], [0]>} : vector<4x16x16xbf16>, vector<4x16x8xbf16>, vector<4x16x8xf32> -> vector<4x16x8xf32>
    "tpu.trace_stop"() : () -> ()
    %164 = vector.extract_strided_slice %163 {offsets = [0, 0, 0], sizes = [1, 16, 8], strides = [1, 1, 1]} : vector<4x16x8xf32> to vector<1x16x8xf32>
    %165 = vector.shape_cast %164 : vector<1x16x8xf32> to vector<16x8xf32>
    %166 = vector.extract_strided_slice %163 {offsets = [1, 0, 0], sizes = [1, 16, 8], strides = [1, 1, 1]} : vector<4x16x8xf32> to vector<1x16x8xf32>
    %167 = vector.shape_cast %166 : vector<1x16x8xf32> to vector<16x8xf32>
    %168 = vector.extract_strided_slice %163 {offsets = [2, 0, 0], sizes = [1, 16, 8], strides = [1, 1, 1]} : vector<4x16x8xf32> to vector<1x16x8xf32>
    %169 = vector.shape_cast %168 : vector<1x16x8xf32> to vector<16x8xf32>
    %170 = vector.extract_strided_slice %163 {offsets = [3, 0, 0], sizes = [1, 16, 8], strides = [1, 1, 1]} : vector<4x16x8xf32> to vector<1x16x8xf32>
    %171 = vector.shape_cast %170 : vector<1x16x8xf32> to vector<16x8xf32>
    %172 = tpu.concatenate %165, %167, %169, %171 in 1 : vector<16x8xf32>, vector<16x8xf32>, vector<16x8xf32>, vector<16x8xf32> -> vector<16x32xf32>
    %c0_45 = arith.constant 0 : index
    %c0_46 = arith.constant 0 : index
    %c0_47 = arith.constant 0 : index
    %173 = vector.load %arg5[%c0_45, %c0_46, %c0_47] : memref<2x32x32xbf16, #tpu.memory_space<vmem>>, vector<1x32x32xbf16>
    %174 = vector.shape_cast %173 : vector<1x32x32xbf16> to vector<32x32xbf16>
    %175 = arith.truncf %172 : vector<16x32xf32> to vector<16x32xbf16>
    %cst_48 = arith.constant dense<0.000000e+00> : vector<16x32xf32>
    %176 = tpu.matmul %175, %174, %cst_48 {dimension_numbers = #tpu.dot_dimension_numbers<[1], [0], [0], [1], [0, 0, 1, 1], [], []>} : vector<16x32xbf16>, vector<32x32xbf16>, vector<16x32xf32> -> vector<16x32xf32>
    %177 = arith.addf %33, %176 : vector<16x32xf32>
    %c0_49 = arith.constant 0 : index
    %c7 = arith.constant 7 : index
    %c0_50 = arith.constant 0 : index
    %178 = vector.load %arg8[%c0_49, %c7, %c0_50] : memref<2x9x32xf32, #tpu.memory_space<vmem>>, vector<1x1x32xf32>
    %179 = vector.shape_cast %178 : vector<1x1x32xf32> to vector<32xf32>
    %180 = vector.shape_cast %179 : vector<32xf32> to vector<1x32xf32>
    %181 = vector.broadcast %180 : vector<1x32xf32> to vector<16x32xf32>
    %182 = arith.addf %177, %181 : vector<16x32xf32>
    %c0_51 = arith.constant 0 : index
    %c2 = arith.constant 2 : index
    %c0_52 = arith.constant 0 : index
    %183 = vector.load %arg8[%c0_51, %c2, %c0_52] : memref<2x9x32xf32, #tpu.memory_space<vmem>>, vector<1x1x32xf32>
    %184 = vector.shape_cast %183 : vector<1x1x32xf32> to vector<32xf32>
    %c0_53 = arith.constant 0 : index
    %c3 = arith.constant 3 : index
    %c0_54 = arith.constant 0 : index
    %185 = vector.load %arg8[%c0_53, %c3, %c0_54] : memref<2x9x32xf32, #tpu.memory_space<vmem>>, vector<1x1x32xf32>
    %186 = vector.shape_cast %185 : vector<1x1x32xf32> to vector<32xf32>
    %cst_55 = arith.constant dense<0.000000e+00> : vector<16xf32>
    %187 = vector.multi_reduction <add>, %182, %cst_55 [1] : vector<16x32xf32> to vector<16xf32>
    %188 = vector.shape_cast %187 : vector<16xf32> to vector<16x1xf32>
    %cst_56 = arith.constant 3.200000e+01 : f32
    %189 = vector.broadcast %cst_56 : f32 to vector<16x1xf32>
    %190 = arith.divf %188, %189 : vector<16x1xf32>
    %191 = vector.broadcast %190 : vector<16x1xf32> to vector<16x32xf32>
    %192 = arith.subf %182, %191 : vector<16x32xf32>
    %193 = arith.mulf %192, %192 : vector<16x32xf32>
    %cst_57 = arith.constant dense<0.000000e+00> : vector<16xf32>
    %194 = vector.multi_reduction <add>, %193, %cst_57 [1] : vector<16x32xf32> to vector<16xf32>
    %195 = vector.shape_cast %194 : vector<16xf32> to vector<16x1xf32>
    %cst_58 = arith.constant 3.200000e+01 : f32
    %196 = vector.broadcast %cst_58 : f32 to vector<16x1xf32>
    %197 = arith.divf %195, %196 : vector<16x1xf32>
    %198 = vector.broadcast %190 : vector<16x1xf32> to vector<16x32xf32>
    %199 = arith.subf %182, %198 : vector<16x32xf32>
    %cst_59 = arith.constant 9.99999974E-6 : f32
    %200 = vector.broadcast %cst_59 : f32 to vector<16x1xf32>
    %201 = arith.addf %197, %200 : vector<16x1xf32>
    %202 = math.rsqrt %201 : vector<16x1xf32>
    %203 = vector.broadcast %202 : vector<16x1xf32> to vector<16x32xf32>
    %204 = arith.mulf %199, %203 : vector<16x32xf32>
    %205 = vector.shape_cast %184 : vector<32xf32> to vector<1x32xf32>
    %206 = vector.broadcast %205 : vector<1x32xf32> to vector<16x32xf32>
    %207 = arith.mulf %204, %206 : vector<16x32xf32>
    %208 = vector.shape_cast %186 : vector<32xf32> to vector<1x32xf32>
    %209 = vector.broadcast %208 : vector<1x32xf32> to vector<16x32xf32>
    %210 = arith.addf %207, %209 : vector<16x32xf32>
    %c0_60 = arith.constant 0 : index
    %c0_61 = arith.constant 0 : index
    %c0_62 = arith.constant 0 : index
    %211 = vector.load %arg6[%c0_60, %c0_61, %c0_62] : memref<2x32x64xbf16, #tpu.memory_space<vmem>>, vector<1x32x64xbf16>
    %212 = vector.shape_cast %211 : vector<1x32x64xbf16> to vector<32x64xbf16>
    %213 = arith.truncf %210 : vector<16x32xf32> to vector<16x32xbf16>
    %cst_63 = arith.constant dense<0.000000e+00> : vector<16x64xf32>
    %214 = tpu.matmul %213, %212, %cst_63 {dimension_numbers = #tpu.dot_dimension_numbers<[1], [0], [0], [1], [0, 0, 1, 1], [], []>} : vector<16x32xbf16>, vector<32x64xbf16>, vector<16x64xf32> -> vector<16x64xf32>
    %c0_64 = arith.constant 0 : index
    %c0_65 = arith.constant 0 : index
    %c0_66 = arith.constant 0 : index
    %215 = vector.load %arg9[%c0_64, %c0_65, %c0_66] : memref<2x1x64xf32, #tpu.memory_space<vmem>>, vector<1x1x64xf32>
    %216 = vector.shape_cast %215 : vector<1x1x64xf32> to vector<64xf32>
    %217 = vector.shape_cast %216 : vector<64xf32> to vector<1x64xf32>
    %218 = vector.broadcast %217 : vector<1x64xf32> to vector<16x64xf32>
    %219 = arith.addf %214, %218 : vector<16x64xf32>
    %cst_67 = arith.constant 1.702000e+00 : f32
    %220 = vector.broadcast %cst_67 : f32 to vector<16x64xf32>
    %221 = arith.mulf %220, %219 : vector<16x64xf32>
    %222 = arith.negf %221 : vector<16x64xf32>
    %223 = math.exp %222 : vector<16x64xf32>
    %cst_68 = arith.constant 1.000000e+00 : f32
    %224 = vector.broadcast %cst_68 : f32 to vector<16x64xf32>
    %225 = arith.addf %224, %223 : vector<16x64xf32>
    %226 = arith.divf %224, %225 : vector<16x64xf32>
    %227 = arith.mulf %219, %226 : vector<16x64xf32>
    %c0_69 = arith.constant 0 : index
    %c0_70 = arith.constant 0 : index
    %c0_71 = arith.constant 0 : index
    %228 = vector.load %arg7[%c0_69, %c0_70, %c0_71] : memref<2x64x32xbf16, #tpu.memory_space<vmem>>, vector<1x64x32xbf16>
    %229 = vector.shape_cast %228 : vector<1x64x32xbf16> to vector<64x32xbf16>
    %230 = arith.truncf %227 : vector<16x64xf32> to vector<16x64xbf16>
    %cst_72 = arith.constant dense<0.000000e+00> : vector<16x32xf32>
    %231 = tpu.matmul %230, %229, %cst_72 {dimension_numbers = #tpu.dot_dimension_numbers<[1], [0], [0], [1], [0, 0, 1, 1], [], []>} : vector<16x64xbf16>, vector<64x32xbf16>, vector<16x32xf32> -> vector<16x32xf32>
    %232 = arith.addf %182, %231 : vector<16x32xf32>
    %c0_73 = arith.constant 0 : index
    %c8 = arith.constant 8 : index
    %c0_74 = arith.constant 0 : index
    %233 = vector.load %arg8[%c0_73, %c8, %c0_74] : memref<2x9x32xf32, #tpu.memory_space<vmem>>, vector<1x1x32xf32>
    %234 = vector.shape_cast %233 : vector<1x1x32xf32> to vector<32xf32>
    %235 = vector.shape_cast %234 : vector<32xf32> to vector<1x32xf32>
    %236 = vector.broadcast %235 : vector<1x32xf32> to vector<16x32xf32>
    %237 = arith.addf %232, %236 : vector<16x32xf32>
    %c1_75 = arith.constant 1 : index
    %c0_76 = arith.constant 0 : index
    %c0_77 = arith.constant 0 : index
    %238 = vector.load %arg8[%c1_75, %c0_76, %c0_77] : memref<2x9x32xf32, #tpu.memory_space<vmem>>, vector<1x1x32xf32>
    %239 = vector.shape_cast %238 : vector<1x1x32xf32> to vector<32xf32>
    %c1_78 = arith.constant 1 : index
    %c1_79 = arith.constant 1 : index
    %c0_80 = arith.constant 0 : index
    %240 = vector.load %arg8[%c1_78, %c1_79, %c0_80] : memref<2x9x32xf32, #tpu.memory_space<vmem>>, vector<1x1x32xf32>
    %241 = vector.shape_cast %240 : vector<1x1x32xf32> to vector<32xf32>
    %cst_81 = arith.constant dense<0.000000e+00> : vector<16xf32>
    %242 = vector.multi_reduction <add>, %237, %cst_81 [1] : vector<16x32xf32> to vector<16xf32>
    %243 = vector.shape_cast %242 : vector<16xf32> to vector<16x1xf32>
    %cst_82 = arith.constant 3.200000e+01 : f32
    %244 = vector.broadcast %cst_82 : f32 to vector<16x1xf32>
    %245 = arith.divf %243, %244 : vector<16x1xf32>
    %246 = vector.broadcast %245 : vector<16x1xf32> to vector<16x32xf32>
    %247 = arith.subf %237, %246 : vector<16x32xf32>
    %248 = arith.mulf %247, %247 : vector<16x32xf32>
    %cst_83 = arith.constant dense<0.000000e+00> : vector<16xf32>
    %249 = vector.multi_reduction <add>, %248, %cst_83 [1] : vector<16x32xf32> to vector<16xf32>
    %250 = vector.shape_cast %249 : vector<16xf32> to vector<16x1xf32>
    %cst_84 = arith.constant 3.200000e+01 : f32
    %251 = vector.broadcast %cst_84 : f32 to vector<16x1xf32>
    %252 = arith.divf %250, %251 : vector<16x1xf32>
    %253 = vector.broadcast %245 : vector<16x1xf32> to vector<16x32xf32>
    %254 = arith.subf %237, %253 : vector<16x32xf32>
    %cst_85 = arith.constant 9.99999974E-6 : f32
    %255 = vector.broadcast %cst_85 : f32 to vector<16x1xf32>
    %256 = arith.addf %252, %255 : vector<16x1xf32>
    %257 = math.rsqrt %256 : vector<16x1xf32>
    %258 = vector.broadcast %257 : vector<16x1xf32> to vector<16x32xf32>
    %259 = arith.mulf %254, %258 : vector<16x32xf32>
    %260 = vector.shape_cast %239 : vector<32xf32> to vector<1x32xf32>
    %261 = vector.broadcast %260 : vector<1x32xf32> to vector<16x32xf32>
    %262 = arith.mulf %259, %261 : vector<16x32xf32>
    %263 = vector.shape_cast %241 : vector<32xf32> to vector<1x32xf32>
    %264 = vector.broadcast %263 : vector<1x32xf32> to vector<16x32xf32>
    %265 = arith.addf %262, %264 : vector<16x32xf32>
    %c1_86 = arith.constant 1 : index
    %c0_87 = arith.constant 0 : index
    %c0_88 = arith.constant 0 : index
    %266 = vector.load %arg4[%c1_86, %c0_87, %c0_88] : memref<2x32x96xbf16, #tpu.memory_space<vmem>>, vector<1x32x96xbf16>
    %267 = vector.shape_cast %266 : vector<1x32x96xbf16> to vector<32x96xbf16>
    %268 = arith.truncf %265 : vector<16x32xf32> to vector<16x32xbf16>
    %cst_89 = arith.constant dense<0.000000e+00> : vector<16x96xf32>
    %269 = tpu.matmul %268, %267, %cst_89 {dimension_numbers = #tpu.dot_dimension_numbers<[1], [0], [0], [1], [0, 0, 1, 1], [], []>} : vector<16x32xbf16>, vector<32x96xbf16>, vector<16x96xf32> -> vector<16x96xf32>
    %270 = vector.extract_strided_slice %269 {offsets = [0, 0], sizes = [16, 32], strides = [1, 1]} : vector<16x96xf32> to vector<16x32xf32>
    %c1_90 = arith.constant 1 : index
    %c4_91 = arith.constant 4 : index
    %c0_92 = arith.constant 0 : index
    %271 = vector.load %arg8[%c1_90, %c4_91, %c0_92] : memref<2x9x32xf32, #tpu.memory_space<vmem>>, vector<1x1x32xf32>
    %272 = vector.shape_cast %271 : vector<1x1x32xf32> to vector<32xf32>
    %273 = vector.shape_cast %272 : vector<32xf32> to vector<1x32xf32>
    %274 = vector.broadcast %273 : vector<1x32xf32> to vector<16x32xf32>
    %275 = arith.addf %270, %274 : vector<16x32xf32>
    %cst_93 = arith.constant 0.353553385 : f32
    %276 = vector.broadcast %cst_93 : f32 to vector<16x32xf32>
    %277 = arith.mulf %275, %276 : vector<16x32xf32>
    %278 = vector.extract_strided_slice %269 {offsets = [0, 32], sizes = [16, 32], strides = [1, 1]} : vector<16x96xf32> to vector<16x32xf32>
    %c1_94 = arith.constant 1 : index
    %c5_95 = arith.constant 5 : index
    %c0_96 = arith.constant 0 : index
    %279 = vector.load %arg8[%c1_94, %c5_95, %c0_96] : memref<2x9x32xf32, #tpu.memory_space<vmem>>, vector<1x1x32xf32>
    %280 = vector.shape_cast %279 : vector<1x1x32xf32> to vector<32xf32>
    %281 = vector.shape_cast %280 : vector<32xf32> to vector<1x32xf32>
    %282 = vector.broadcast %281 : vector<1x32xf32> to vector<16x32xf32>
    %283 = arith.addf %278, %282 : vector<16x32xf32>
    %284 = vector.extract_strided_slice %269 {offsets = [0, 64], sizes = [16, 32], strides = [1, 1]} : vector<16x96xf32> to vector<16x32xf32>
    %c1_97 = arith.constant 1 : index
    %c6_98 = arith.constant 6 : index
    %c0_99 = arith.constant 0 : index
    %285 = vector.load %arg8[%c1_97, %c6_98, %c0_99] : memref<2x9x32xf32, #tpu.memory_space<vmem>>, vector<1x1x32xf32>
    %286 = vector.shape_cast %285 : vector<1x1x32xf32> to vector<32xf32>
    %287 = vector.shape_cast %286 : vector<32xf32> to vector<1x32xf32>
    %288 = vector.broadcast %287 : vector<1x32xf32> to vector<16x32xf32>
    %289 = arith.addf %284, %288 : vector<16x32xf32>
    %290 = vector.extract_strided_slice %277 {offsets = [0, 0], sizes = [16, 8], strides = [1, 1]} : vector<16x32xf32> to vector<16x8xf32>
    %291 = vector.extract_strided_slice %277 {offsets = [0, 8], sizes = [16, 8], strides = [1, 1]} : vector<16x32xf32> to vector<16x8xf32>
    %292 = vector.extract_strided_slice %277 {offsets = [0, 16], sizes = [16, 8], strides = [1, 1]} : vector<16x32xf32> to vector<16x8xf32>
    %293 = vector.extract_strided_slice %277 {offsets = [0, 24], sizes = [16, 8], strides = [1, 1]} : vector<16x32xf32> to vector<16x8xf32>
    %294 = vector.shape_cast %290 : vector<16x8xf32> to vector<1x16x8xf32>
    %295 = vector.shape_cast %291 : vector<16x8xf32> to vector<1x16x8xf32>
    %296 = vector.shape_cast %292 : vector<16x8xf32> to vector<1x16x8xf32>
    %297 = vector.shape_cast %293 : vector<16x8xf32> to vector<1x16x8xf32>
    %298 = tpu.concatenate %294, %295, %296, %297 in 0 : vector<1x16x8xf32>, vector<1x16x8xf32>, vector<1x16x8xf32>, vector<1x16x8xf32> -> vector<4x16x8xf32>
    %299 = vector.extract_strided_slice %283 {offsets = [0, 0], sizes = [16, 8], strides = [1, 1]} : vector<16x32xf32> to vector<16x8xf32>
    %300 = vector.extract_strided_slice %283 {offsets = [0, 8], sizes = [16, 8], strides = [1, 1]} : vector<16x32xf32> to vector<16x8xf32>
    %301 = vector.extract_strided_slice %283 {offsets = [0, 16], sizes = [16, 8], strides = [1, 1]} : vector<16x32xf32> to vector<16x8xf32>
    %302 = vector.extract_strided_slice %283 {offsets = [0, 24], sizes = [16, 8], strides = [1, 1]} : vector<16x32xf32> to vector<16x8xf32>
    %303 = vector.shape_cast %299 : vector<16x8xf32> to vector<1x16x8xf32>
    %304 = vector.shape_cast %300 : vector<16x8xf32> to vector<1x16x8xf32>
    %305 = vector.shape_cast %301 : vector<16x8xf32> to vector<1x16x8xf32>
    %306 = vector.shape_cast %302 : vector<16x8xf32> to vector<1x16x8xf32>
    %307 = tpu.concatenate %303, %304, %305, %306 in 0 : vector<1x16x8xf32>, vector<1x16x8xf32>, vector<1x16x8xf32>, vector<1x16x8xf32> -> vector<4x16x8xf32>
    %308 = vector.extract_strided_slice %289 {offsets = [0, 0], sizes = [16, 8], strides = [1, 1]} : vector<16x32xf32> to vector<16x8xf32>
    %309 = vector.extract_strided_slice %289 {offsets = [0, 8], sizes = [16, 8], strides = [1, 1]} : vector<16x32xf32> to vector<16x8xf32>
    %310 = vector.extract_strided_slice %289 {offsets = [0, 16], sizes = [16, 8], strides = [1, 1]} : vector<16x32xf32> to vector<16x8xf32>
    %311 = vector.extract_strided_slice %289 {offsets = [0, 24], sizes = [16, 8], strides = [1, 1]} : vector<16x32xf32> to vector<16x8xf32>
    %312 = vector.shape_cast %308 : vector<16x8xf32> to vector<1x16x8xf32>
    %313 = vector.shape_cast %309 : vector<16x8xf32> to vector<1x16x8xf32>
    %314 = vector.shape_cast %310 : vector<16x8xf32> to vector<1x16x8xf32>
    %315 = vector.shape_cast %311 : vector<16x8xf32> to vector<1x16x8xf32>
    %316 = tpu.concatenate %312, %313, %314, %315 in 0 : vector<1x16x8xf32>, vector<1x16x8xf32>, vector<1x16x8xf32>, vector<1x16x8xf32> -> vector<4x16x8xf32>
    %317 = arith.truncf %298 : vector<4x16x8xf32> to vector<4x16x8xbf16>
    %318 = arith.truncf %307 : vector<4x16x8xf32> to vector<4x16x8xbf16>
    "tpu.trace_start"() <{level = 10 : i32, message = "hqd,hkd->hqk"}> : () -> ()
    %cst_100 = arith.constant dense<0.000000e+00> : vector<4x16x16xf32>
    %319 = tpu.matmul %317, %318, %cst_100 {dimension_numbers = #tpu.dot_dimension_numbers<[2], [2], [1], [1], [0, 0, 0, 1, 1, 1], [0], [0]>} : vector<4x16x8xbf16>, vector<4x16x8xbf16>, vector<4x16x16xf32> -> vector<4x16x16xf32>
    "tpu.trace_stop"() : () -> ()
    %320 = vector.shape_cast %65 : vector<16x16xf32> to vector<1x16x16xf32>
    %321 = vector.broadcast %320 : vector<1x16x16xf32> to vector<4x16x16xf32>
    %322 = arith.addf %319, %321 : vector<4x16x16xf32>
    %cst_101 = arith.constant dense<0xFF800000> : vector<4x16xf32>
    %323 = vector.multi_reduction <maximumf>, %322, %cst_101 [2] : vector<4x16x16xf32> to vector<4x16xf32>
    %324 = vector.shape_cast %323 : vector<4x16xf32> to vector<4x16x1xf32>
    %325 = vector.broadcast %324 : vector<4x16x1xf32> to vector<4x16x16xf32>
    %326 = arith.subf %322, %325 : vector<4x16x16xf32>
    %327 = math.exp %326 : vector<4x16x16xf32>
    %cst_102 = arith.constant dense<0.000000e+00> : vector<4x16xf32>
    %328 = vector.multi_reduction <add>, %327, %cst_102 [2] : vector<4x16x16xf32> to vector<4x16xf32>
    %329 = vector.shape_cast %328 : vector<4x16xf32> to vector<4x16x1xf32>
    %330 = tpu.reciprocal %329 {approx = true} : vector<4x16x1xf32> -> vector<4x16x1xf32>
    %331 = vector.broadcast %330 : vector<4x16x1xf32> to vector<4x16x16xf32>
    %332 = arith.mulf %327, %331 : vector<4x16x16xf32>
    %333 = arith.truncf %332 : vector<4x16x16xf32> to vector<4x16x16xbf16>
    %334 = arith.truncf %316 : vector<4x16x8xf32> to vector<4x16x8xbf16>
    "tpu.trace_start"() <{level = 10 : i32, message = "hqk,hkd->hqd"}> : () -> ()
    %cst_103 = arith.constant dense<0.000000e+00> : vector<4x16x8xf32>
    %335 = tpu.matmul %333, %334, %cst_103 {dimension_numbers = #tpu.dot_dimension_numbers<[2], [1], [1], [2], [0, 0, 0, 1, 1, 2], [0], [0]>} : vector<4x16x16xbf16>, vector<4x16x8xbf16>, vector<4x16x8xf32> -> vector<4x16x8xf32>
    "tpu.trace_stop"() : () -> ()
    %336 = vector.extract_strided_slice %335 {offsets = [0, 0, 0], sizes = [1, 16, 8], strides = [1, 1, 1]} : vector<4x16x8xf32> to vector<1x16x8xf32>
    %337 = vector.shape_cast %336 : vector<1x16x8xf32> to vector<16x8xf32>
    %338 = vector.extract_strided_slice %335 {offsets = [1, 0, 0], sizes = [1, 16, 8], strides = [1, 1, 1]} : vector<4x16x8xf32> to vector<1x16x8xf32>
    %339 = vector.shape_cast %338 : vector<1x16x8xf32> to vector<16x8xf32>
    %340 = vector.extract_strided_slice %335 {offsets = [2, 0, 0], sizes = [1, 16, 8], strides = [1, 1, 1]} : vector<4x16x8xf32> to vector<1x16x8xf32>
    %341 = vector.shape_cast %340 : vector<1x16x8xf32> to vector<16x8xf32>
    %342 = vector.extract_strided_slice %335 {offsets = [3, 0, 0], sizes = [1, 16, 8], strides = [1, 1, 1]} : vector<4x16x8xf32> to vector<1x16x8xf32>
    %343 = vector.shape_cast %342 : vector<1x16x8xf32> to vector<16x8xf32>
    %344 = tpu.concatenate %337, %339, %341, %343 in 1 : vector<16x8xf32>, vector<16x8xf32>, vector<16x8xf32>, vector<16x8xf32> -> vector<16x32xf32>
    %c1_104 = arith.constant 1 : index
    %c0_105 = arith.constant 0 : index
    %c0_106 = arith.constant 0 : index
    %345 = vector.load %arg5[%c1_104, %c0_105, %c0_106] : memref<2x32x32xbf16, #tpu.memory_space<vmem>>, vector<1x32x32xbf16>
    %346 = vector.shape_cast %345 : vector<1x32x32xbf16> to vector<32x32xbf16>
    %347 = arith.truncf %344 : vector<16x32xf32> to vector<16x32xbf16>
    %cst_107 = arith.constant dense<0.000000e+00> : vector<16x32xf32>
    %348 = tpu.matmul %347, %346, %cst_107 {dimension_numbers = #tpu.dot_dimension_numbers<[1], [0], [0], [1], [0, 0, 1, 1], [], []>} : vector<16x32xbf16>, vector<32x32xbf16>, vector<16x32xf32> -> vector<16x32xf32>
    %349 = arith.addf %237, %348 : vector<16x32xf32>
    %c1_108 = arith.constant 1 : index
    %c7_109 = arith.constant 7 : index
    %c0_110 = arith.constant 0 : index
    %350 = vector.load %arg8[%c1_108, %c7_109, %c0_110] : memref<2x9x32xf32, #tpu.memory_space<vmem>>, vector<1x1x32xf32>
    %351 = vector.shape_cast %350 : vector<1x1x32xf32> to vector<32xf32>
    %352 = vector.shape_cast %351 : vector<32xf32> to vector<1x32xf32>
    %353 = vector.broadcast %352 : vector<1x32xf32> to vector<16x32xf32>
    %354 = arith.addf %349, %353 : vector<16x32xf32>
    %c1_111 = arith.constant 1 : index
    %c2_112 = arith.constant 2 : index
    %c0_113 = arith.constant 0 : index
    %355 = vector.load %arg8[%c1_111, %c2_112, %c0_113] : memref<2x9x32xf32, #tpu.memory_space<vmem>>, vector<1x1x32xf32>
    %356 = vector.shape_cast %355 : vector<1x1x32xf32> to vector<32xf32>
    %c1_114 = arith.constant 1 : index
    %c3_115 = arith.constant 3 : index
    %c0_116 = arith.constant 0 : index
    %357 = vector.load %arg8[%c1_114, %c3_115, %c0_116] : memref<2x9x32xf32, #tpu.memory_space<vmem>>, vector<1x1x32xf32>
    %358 = vector.shape_cast %357 : vector<1x1x32xf32> to vector<32xf32>
    %cst_117 = arith.constant dense<0.000000e+00> : vector<16xf32>
    %359 = vector.multi_reduction <add>, %354, %cst_117 [1] : vector<16x32xf32> to vector<16xf32>
    %360 = vector.shape_cast %359 : vector<16xf32> to vector<16x1xf32>
    %cst_118 = arith.constant 3.200000e+01 : f32
    %361 = vector.broadcast %cst_118 : f32 to vector<16x1xf32>
    %362 = arith.divf %360, %361 : vector<16x1xf32>
    %363 = vector.broadcast %362 : vector<16x1xf32> to vector<16x32xf32>
    %364 = arith.subf %354, %363 : vector<16x32xf32>
    %365 = arith.mulf %364, %364 : vector<16x32xf32>
    %cst_119 = arith.constant dense<0.000000e+00> : vector<16xf32>
    %366 = vector.multi_reduction <add>, %365, %cst_119 [1] : vector<16x32xf32> to vector<16xf32>
    %367 = vector.shape_cast %366 : vector<16xf32> to vector<16x1xf32>
    %cst_120 = arith.constant 3.200000e+01 : f32
    %368 = vector.broadcast %cst_120 : f32 to vector<16x1xf32>
    %369 = arith.divf %367, %368 : vector<16x1xf32>
    %370 = vector.broadcast %362 : vector<16x1xf32> to vector<16x32xf32>
    %371 = arith.subf %354, %370 : vector<16x32xf32>
    %cst_121 = arith.constant 9.99999974E-6 : f32
    %372 = vector.broadcast %cst_121 : f32 to vector<16x1xf32>
    %373 = arith.addf %369, %372 : vector<16x1xf32>
    %374 = math.rsqrt %373 : vector<16x1xf32>
    %375 = vector.broadcast %374 : vector<16x1xf32> to vector<16x32xf32>
    %376 = arith.mulf %371, %375 : vector<16x32xf32>
    %377 = vector.shape_cast %356 : vector<32xf32> to vector<1x32xf32>
    %378 = vector.broadcast %377 : vector<1x32xf32> to vector<16x32xf32>
    %379 = arith.mulf %376, %378 : vector<16x32xf32>
    %380 = vector.shape_cast %358 : vector<32xf32> to vector<1x32xf32>
    %381 = vector.broadcast %380 : vector<1x32xf32> to vector<16x32xf32>
    %382 = arith.addf %379, %381 : vector<16x32xf32>
    %c1_122 = arith.constant 1 : index
    %c0_123 = arith.constant 0 : index
    %c0_124 = arith.constant 0 : index
    %383 = vector.load %arg6[%c1_122, %c0_123, %c0_124] : memref<2x32x64xbf16, #tpu.memory_space<vmem>>, vector<1x32x64xbf16>
    %384 = vector.shape_cast %383 : vector<1x32x64xbf16> to vector<32x64xbf16>
    %385 = arith.truncf %382 : vector<16x32xf32> to vector<16x32xbf16>
    %cst_125 = arith.constant dense<0.000000e+00> : vector<16x64xf32>
    %386 = tpu.matmul %385, %384, %cst_125 {dimension_numbers = #tpu.dot_dimension_numbers<[1], [0], [0], [1], [0, 0, 1, 1], [], []>} : vector<16x32xbf16>, vector<32x64xbf16>, vector<16x64xf32> -> vector<16x64xf32>
    %c1_126 = arith.constant 1 : index
    %c0_127 = arith.constant 0 : index
    %c0_128 = arith.constant 0 : index
    %387 = vector.load %arg9[%c1_126, %c0_127, %c0_128] : memref<2x1x64xf32, #tpu.memory_space<vmem>>, vector<1x1x64xf32>
    %388 = vector.shape_cast %387 : vector<1x1x64xf32> to vector<64xf32>
    %389 = vector.shape_cast %388 : vector<64xf32> to vector<1x64xf32>
    %390 = vector.broadcast %389 : vector<1x64xf32> to vector<16x64xf32>
    %391 = arith.addf %386, %390 : vector<16x64xf32>
    %cst_129 = arith.constant 1.702000e+00 : f32
    %392 = vector.broadcast %cst_129 : f32 to vector<16x64xf32>
    %393 = arith.mulf %392, %391 : vector<16x64xf32>
    %394 = arith.negf %393 : vector<16x64xf32>
    %395 = math.exp %394 : vector<16x64xf32>
    %cst_130 = arith.constant 1.000000e+00 : f32
    %396 = vector.broadcast %cst_130 : f32 to vector<16x64xf32>
    %397 = arith.addf %396, %395 : vector<16x64xf32>
    %398 = arith.divf %396, %397 : vector<16x64xf32>
    %399 = arith.mulf %391, %398 : vector<16x64xf32>
    %c1_131 = arith.constant 1 : index
    %c0_132 = arith.constant 0 : index
    %c0_133 = arith.constant 0 : index
    %400 = vector.load %arg7[%c1_131, %c0_132, %c0_133] : memref<2x64x32xbf16, #tpu.memory_space<vmem>>, vector<1x64x32xbf16>
    %401 = vector.shape_cast %400 : vector<1x64x32xbf16> to vector<64x32xbf16>
    %402 = arith.truncf %399 : vector<16x64xf32> to vector<16x64xbf16>
    %cst_134 = arith.constant dense<0.000000e+00> : vector<16x32xf32>
    %403 = tpu.matmul %402, %401, %cst_134 {dimension_numbers = #tpu.dot_dimension_numbers<[1], [0], [0], [1], [0, 0, 1, 1], [], []>} : vector<16x64xbf16>, vector<64x32xbf16>, vector<16x32xf32> -> vector<16x32xf32>
    %404 = arith.addf %354, %403 : vector<16x32xf32>
    %c1_135 = arith.constant 1 : index
    %c8_136 = arith.constant 8 : index
    %c0_137 = arith.constant 0 : index
    %405 = vector.load %arg8[%c1_135, %c8_136, %c0_137] : memref<2x9x32xf32, #tpu.memory_space<vmem>>, vector<1x1x32xf32>
    %406 = vector.shape_cast %405 : vector<1x1x32xf32> to vector<32xf32>
    %407 = vector.shape_cast %406 : vector<32xf32> to vector<1x32xf32>
    %408 = vector.broadcast %407 : vector<1x32xf32> to vector<16x32xf32>
    %409 = arith.addf %404, %408 : vector<16x32xf32>
    %c0_138 = arith.constant 0 : index
    %c0_139 = arith.constant 0 : index
    %410 = vector.load %arg10[%c0_138, %c0_139] : memref<32x64xbf16, #tpu.memory_space<vmem>>, vector<32x64xbf16>
    %411 = arith.truncf %409 : vector<16x32xf32> to vector<16x32xbf16>
    %cst_140 = arith.constant dense<0.000000e+00> : vector<16x64xf32>
    %412 = tpu.matmul %411, %410, %cst_140 {dimension_numbers = #tpu.dot_dimension_numbers<[1], [0], [0], [1], [0, 0, 1, 1], [], []>} : vector<16x32xbf16>, vector<32x64xbf16>, vector<16x64xf32> -> vector<16x64xf32>
    %c0_141 = arith.constant 0 : index
    %c0_142 = arith.constant 0 : index
    %413 = vector.load %arg11[%c0_141, %c0_142] : memref<1x64xf32, #tpu.memory_space<vmem>>, vector<1x64xf32>
    %414 = vector.broadcast %413 : vector<1x64xf32> to vector<16x64xf32>
    %415 = arith.addf %412, %414 : vector<16x64xf32>
    %c0_143 = arith.constant 0 : index
    %c0_144 = arith.constant 0 : index
    %416 = vector.load %arg12[%c0_143, %c0_144] : memref<16x64xf32, #tpu.memory_space<vmem>>, vector<16x64xf32>
    tpu.vector_store %arg12[%c0_143, %c0_144], %415 {strides = array<i32>} : memref<16x64xf32, #tpu.memory_space<vmem>>, vector<16x64xf32>,
    return
  }
}

</mosaic_0001>

<llo_original>
// kernel: tpu_custom_call.1
$region0: #{tpu_custom_call.1}
  #allocation0 [shape = 'u32[]', space=smem, size = 0x4, offset = 0x4, fixed_abs, tag = 'smem constant byte address 0x4 - core index']
  #allocation1 [shape = 'u32[144,128]{1,0:T(1,128)}', space=vmem, size = 0x12000, scoped, tag = 'internal scratch']
  %s0 = inlined_call_operand.vmem [shape: f32[16,192], index: 0, kind: input, shape index: {}]
  %s1 = inlined_call_operand.vmem [shape: bf16[192,32], index: 1, kind: input, shape index: {}]
  %s2 = inlined_call_operand.vmem [shape: f32[16,32], index: 2, kind: input, shape index: {}]
  %s3 = inlined_call_operand.vmem [shape: f32[2,32], index: 3, kind: input, shape index: {}]
  %s4 = inlined_call_operand.vmem [shape: bf16[2,32,96], index: 4, kind: input, shape index: {}]
  %s5 = inlined_call_operand.vmem [shape: bf16[2,32,32], index: 5, kind: input, shape index: {}]
  %s6 = inlined_call_operand.vmem [shape: bf16[2,32,64], index: 6, kind: input, shape index: {}]
  %s7 = inlined_call_operand.vmem [shape: bf16[2,64,32], index: 7, kind: input, shape index: {}]
  %s8 = inlined_call_operand.vmem [shape: f32[2,9,32], index: 8, kind: input, shape index: {}]
  %s9 = inlined_call_operand.vmem [shape: f32[2,1,64], index: 9, kind: input, shape index: {}]
  %s10 = inlined_call_operand.vmem [shape: bf16[32,64], index: 10, kind: input, shape index: {}]
  %s11 = inlined_call_operand.vmem [shape: f32[1,64], index: 11, kind: input, shape index: {}]
  %s12 = inlined_call_operand.hbm [shape: f32[16,64], index: 12, kind: output, shape index: {}]
  %s13 = sld [smem:[#allocation0]]
  $region58: #{tpu_custom_call.1} parent=0
    _
  %s15 = ssub.s32 1, %s13
  %s16 = scalar_select 0, %s15, %s13
  $region1: #{tpu_custom_call.1} parent=0
    #allocation2 [shape = 'u8[8192]{0}', space=vmem, size = 0x2000, scoped, tag = 'output window, operand 0, single buffered']
    #allocation3 [shape = 's32[1]{0}', space=sflag, size = 0x4, scoped, tag = 'scoped memory for tpu_custom_call.1']
    %17 = vsyncpa [#allocation3], 0
    // Predicated region
    $region2: #{tpu_custom_call.1} parent=1 // pred_check
      _
    $region3: #{tpu_custom_call.1} parent=1 // pred_check_branch
      %19 = sbr.rel (0) target = $region5
    $region4: #{tpu_custom_call.1} parent=1 // pred_region
      _
    $region5: #{tpu_custom_call.1} parent=1 // pred_fallthru
      _
    // Predicated region
    $region6: #{tpu_custom_call.1} parent=1 // pred_check
      _
    $region7: #{tpu_custom_call.1} parent=1 // pred_check_branch
      %21 = sbr.rel (0) target = $region9
    $region8: #{tpu_custom_call.1} parent=1 // pred_region
      _
    $region9: #{tpu_custom_call.1} parent=1 // pred_fallthru
      _
    // Predicated region
    $region10: #{tpu_custom_call.1} parent=1 // pred_check
      _
    $region11: #{tpu_custom_call.1} parent=1 // pred_check_branch
      %23 = sbr.rel (0) target = $region13
    $region12: #{tpu_custom_call.1} parent=1 // pred_region
      _
    $region13: #{tpu_custom_call.1} parent=1 // pred_fallthru
      _
    // Predicated region
    $region14: #{tpu_custom_call.1} parent=1 // pred_check
      _
    $region15: #{tpu_custom_call.1} parent=1 // pred_check_branch
      %25 = sbr.rel (0) target = $region17
    $region16: #{tpu_custom_call.1} parent=1 // pred_region
      _
    $region17: #{tpu_custom_call.1} parent=1 // pred_fallthru
      _
    // Predicated region
    $region18: #{tpu_custom_call.1} parent=1 // pred_check
      _
    $region19: #{tpu_custom_call.1} parent=1 // pred_check_branch
      %27 = sbr.rel (0) target = $region21
    $region20: #{tpu_custom_call.1} parent=1 // pred_region
      _
    $region21: #{tpu_custom_call.1} parent=1 // pred_fallthru
      _
    // Predicated region
    $region22: #{tpu_custom_call.1} parent=1 // pred_check
      _
    $region23: #{tpu_custom_call.1} parent=1 // pred_check_branch
      %29 = sbr.rel (0) target = $region25
    $region24: #{tpu_custom_call.1} parent=1 // pred_region
      _
    $region25: #{tpu_custom_call.1} parent=1 // pred_fallthru
      _
    // Predicated region
    $region26: #{tpu_custom_call.1} parent=1 // pred_check
      _
    $region27: #{tpu_custom_call.1} parent=1 // pred_check_branch
      %31 = sbr.rel (0) target = $region29
    $region28: #{tpu_custom_call.1} parent=1 // pred_region
      _
    $region29: #{tpu_custom_call.1} parent=1 // pred_fallthru
      _
    // Predicated region
    $region30: #{tpu_custom_call.1} parent=1 // pred_check
      _
    $region31: #{tpu_custom_call.1} parent=1 // pred_check_branch
      %33 = sbr.rel (0) target = $region33
    $region32: #{tpu_custom_call.1} parent=1 // pred_region
      _
    $region33: #{tpu_custom_call.1} parent=1 // pred_fallthru
      _
    // Predicated region
    $region34: #{tpu_custom_call.1} parent=1 // pred_check
      _
    $region35: #{tpu_custom_call.1} parent=1 // pred_check_branch
      %35 = sbr.rel (0) target = $region37
    $region36: #{tpu_custom_call.1} parent=1 // pred_region
      _
    $region37: #{tpu_custom_call.1} parent=1 // pred_fallthru
      _
    // Predicated region
    $region38: #{tpu_custom_call.1} parent=1 // pred_check
      _
    $region39: #{tpu_custom_call.1} parent=1 // pred_check_branch
      %37 = sbr.rel (0) target = $region41
    $region40: #{tpu_custom_call.1} parent=1 // pred_region
      _
    $region41: #{tpu_custom_call.1} parent=1 // pred_fallthru
      _
    // Predicated region
    $region42: #{tpu_custom_call.1} parent=1 // pred_check
      _
    $region43: #{tpu_custom_call.1} parent=1 // pred_check_branch
      %39 = sbr.rel (0) target = $region45
    $region44: #{tpu_custom_call.1} parent=1 // pred_region
      _
    $region45: #{tpu_custom_call.1} parent=1 // pred_fallthru
      _
    // Predicated region
    $region46: #{tpu_custom_call.1} parent=1 // pred_check
      _
    $region47: #{tpu_custom_call.1} parent=1 // pred_check_branch
      %41 = sbr.rel (0) target = $region49
    $region48: #{tpu_custom_call.1} parent=1 // pred_region
      _
    $region49: #{tpu_custom_call.1} parent=1 // pred_fallthru
      _
    %v43 = vld [vmem:[%s0] sm:$0xff]
    %v44 = vld [vmem:[%s0 + $0x8] sm:$0xff]
    %v45 = vld [vmem:[%s0 + $0x10] sm:$0xff]
    %v46 = vld [vmem:[%s0 + $0x18] sm:$0xff]
    %v47 = vld [vmem:[%s1] sm:$0xf]
    %v48 = vld [vmem:[%s1 + $0x4] sm:$0xf]
    %v49 = vld [vmem:[%s1 + $0x8] sm:$0xf]
    %v50 = vld [vmem:[%s1 + $0xc] sm:$0xf]
    %v51 = vld [vmem:[%s1 + $0x10] sm:$0xf]
    %v52 = vld [vmem:[%s1 + $0x14] sm:$0xf]
    %v53 = vld [vmem:[%s1 + $0x18] sm:$0xf]
    %v54 = vld [vmem:[%s1 + $0x1c] sm:$0xf]
    %v55 = vld [vmem:[%s1 + $0x20] sm:$0xf]
    %v56 = vld [vmem:[%s1 + $0x24] sm:$0xf]
    %v57 = vld [vmem:[%s1 + $0x28] sm:$0xf]
    %v58 = vld [vmem:[%s1 + $0x2c] sm:$0xf]
    %v59 = vld [vmem:[%s1 + $0x30] sm:$0xf]
    %v60 = vld [vmem:[%s1 + $0x34] sm:$0xf]
    %v61 = vld [vmem:[%s1 + $0x38] sm:$0xf]
    %v62 = vld [vmem:[%s1 + $0x3c] sm:$0xf]
    %v63 = vld [vmem:[%s1 + $0x40] sm:$0xf]
    %v64 = vld [vmem:[%s1 + $0x44] sm:$0xf]
    %v65 = vld [vmem:[%s1 + $0x48] sm:$0xf]
    %v66 = vld [vmem:[%s1 + $0x4c] sm:$0xf]
    %v67 = vld [vmem:[%s1 + $0x50] sm:$0xf]
    %v68 = vld [vmem:[%s1 + $0x54] sm:$0xf]
    %v69 = vld [vmem:[%s1 + $0x58] sm:$0xf]
    %v70 = vld [vmem:[%s1 + $0x5c] sm:$0xf]
    %v71 = vpack.c.bf16 %v45, %v43
    %v72 = vpack.c.bf16 %v46, %v44
    %v73 = vld [vmem:[%s2] sm:$0xff]
    %v74 = vld [vmem:[%s2 + $0x8] sm:$0xff]
    %v99 = vunpack.c.l.b16 %v47
    %v100 = vunpack.c.l.b16 %v48
    %v101 = vunpack.c.l.b16 %v49
    %v102 = vunpack.c.l.b16 %v50
    %v103 = vunpack.c.l.b16 %v51
    %v104 = vunpack.c.l.b16 %v52
    %v105 = vunpack.c.l.b16 %v53
    %v106 = vunpack.c.l.b16 %v54
    %v107 = vunpack.c.l.b16 %v55
    %v108 = vunpack.c.l.b16 %v56
    %v109 = vunpack.c.l.b16 %v57
    %v110 = vunpack.c.l.b16 %v58
    %v111 = vunpack.c.l.b16 %v59
    %v112 = vunpack.c.l.b16 %v60
    %v113 = vunpack.c.l.b16 %v61
    %v114 = vunpack.c.l.b16 %v62
    %v115 = vunpack.c.l.b16 %v63
    %v116 = vunpack.c.l.b16 %v64
    %v117 = vunpack.c.l.b16 %v65
    %v118 = vunpack.c.l.b16 %v66
    %v119 = vunpack.c.l.b16 %v67
    %v120 = vunpack.c.l.b16 %v68
    %v121 = vunpack.c.l.b16 %v69
    %v122 = vunpack.c.l.b16 %v70
    %v123 = vpack.c.b16 %v100, %v99
    %v124 = vpack.c.b16 %v102, %v101
    %v125 = vpack.c.b16 %v104, %v103
    %v126 = vpack.c.b16 %v106, %v105
    %v127 = vpack.c.b16 %v108, %v107
    %v128 = vpack.c.b16 %v110, %v109
    %v129 = vpack.c.b16 %v112, %v111
    %v130 = vpack.c.b16 %v114, %v113
    %v131 = vpack.c.b16 %v116, %v115
    %v132 = vpack.c.b16 %v118, %v117
    %v133 = vpack.c.b16 %v120, %v119
    %v134 = vpack.c.b16 %v122, %v121
    %vm147 = vcmask 523264
    %v149 = vsel %vm147, %v72, 0
    %151 = vmatprep.subr.bf16.mxu0 0
    %152 = vmatpush1.bf16.msra.mxu0 %v130
    %153 = vmatprep.subr.bf16.mxu0 0
    %154 = vmatpush1.bf16.msra.mxu0 %v129
    %155 = vmatprep.subr.bf16.mxu0 0
    %156 = vmatpush1.bf16.msra.mxu0 %v128
    %157 = vmatprep.subr.bf16.mxu0 0
    %158 = vmatpush1.bf16.msra.mxu0 %v127
    %159 = vmatprep.subr.bf16.mxu0 0
    %160 = vmatpush1.bf16.msra.mxu0 %v126
    %161 = vmatprep.subr.bf16.mxu0 0
    %162 = vmatpush1.bf16.msra.mxu0 %v125
    %163 = vmatprep.subr.bf16.mxu0 0
    %164 = vmatpush1.bf16.msra.mxu0 %v124
    %165 = vmatprep.subr.bf16.mxu0 0
    %166 = vmatpush1.bf16.msra.mxu0 %v123
    %167 = vmatprep.subr.bf16.mxu0 0
    %168 = vmatpush2.bf16.msra.mxu0 0
    %169 = vmatprep.subr.bf16.mxu0 0
    %170 = vmatpush2.bf16.msra.mxu0 0
    %171 = vmatprep.subr.bf16.mxu0 0
    %172 = vmatpush2.bf16.msra.mxu0 0
    %173 = vmatprep.subr.bf16.mxu0 0
    %174 = vmatpush2.bf16.msra.mxu0 0
    %175 = vmatprep.subr.bf16.mxu0 0
    %176 = vmatpush2.bf16.msra.mxu0 %v134
    %177 = vmatprep.subr.bf16.mxu0 0
    %178 = vmatpush2.bf16.msra.mxu0 %v133
    %179 = vmatprep.subr.bf16.mxu0 0
    %180 = vmatpush2.bf16.msra.mxu0 %v132
    %181 = vmatprep.subr.bf16.mxu0 0
    %182 = vmatpush2.bf16.msra.mxu0 %v131
    %183 = vmatprep.mubr.bf16.mxu0 %v149
    %184 = vmatmul.mubr.bf16.gmra.mxu0 %v71
    %v185 = vpop.f32.mrf.mxu0
    %v186 = vadd.f32 %v73, %v185
    %v187 = vpop.f32.mrf.mxu0
    %v188 = vpop.f32.mrf.mxu0
    %v189 = vadd.f32 %v74, %v188
    %v190 = vpop.f32.mrf.mxu0
    %191 = vdwg.mxu0
    %v192 = vld [vmem:[%s3] sm:$0x1]
    %v193 = vld [vmem:[%s3 + $0x1] sm:$0x1]
    %vm194 = vcmask 261120
    %v195 = vsel %vm194, %v186, 0.0
    %196 = vadd.xlane.f32.xlu0 %v195
    %v197 = vpop.xlane.xlu0 %196
    %v198 = vsel %vm194, %v189, 0.0
    %199 = vadd.xlane.f32.xlu0 %v198
    %v200 = vpop.xlane.xlu0 %199
    %v201 = vrcp.pop 32.0
    %v202 = vmul.f32 %v197, %v201
    %v203 = vmul.f32 %v200, %v201
    %v204 = vsub.f32 %v186, %v202
    %v205 = vsub.f32 %v189, %v203
    %v206 = vmul.f32 %v204, %v204
    %v207 = vmul.f32 %v205, %v205
    %v208 = vsel %vm194, %v206, 0.0
    %209 = vadd.xlane.f32.xlu0 %v208
    %v210 = vpop.xlane.xlu0 %209
    %v211 = vsel %vm194, %v207, 0.0
    %212 = vadd.xlane.f32.xlu0 %v211
    %v213 = vpop.xlane.xlu0 %212
    %v214 = vmul.f32 %v210, %v201
    %v215 = vmul.f32 %v213, %v201
    %v216 = vadd.f32 %v214, 1e-05
    %v217 = vadd.f32 %v215, 1e-05
    %v218 = vrsqrt.pop %v216
    %v219 = vrsqrt.pop %v217
    %v220 = vmul.f32 %v204, %v218
    %v221 = vmul.f32 %v205, %v219
    %v222 = vlaneseq
    %v223 = vshrl.u32 %v222, 7
    %v224 = vsub.s32 0, %v223
    %v225 = vrot.slane %v192, %v224
    %v226 = vmul.f32 %v220, %v225
    %v227 = vmul.f32 %v221, %v225
    %v228 = vlaneseq
    %v229 = vshrl.u32 %v228, 7
    %v230 = vsub.s32 0, %v229
    %v231 = vrot.slane %v193, %v230
    %v232 = vadd.f32 %v226, %v231
    %v233 = vadd.f32 %v227, %v231
    %v234 = vlaneseq
    %v235 = vshrl.u32 %v234, 7
    %v236 = vadd.s32 %v235, 8
    %v237 = vlaneseq
    %v238 = vand.u32 %v237, 127
    %vm239 = vcmp.ge.s32.totalorder %v235, 5
    %vm240 = vcmp.ge.s32.totalorder %v236, 5
    %v241 = vsel %vm239, 1, 0
    %v242 = vsel %vm240, 1, 0
    %vm243 = vcmp.ge.s32.totalorder %v235, 10
    %vm244 = vcmp.ge.s32.totalorder %v236, 10
    %v245 = vsel %vm243, 1, 0
    %v246 = vsel %vm244, 1, 0
    %v247 = vadd.s32 %v241, %v245
    %v248 = vadd.s32 %v242, %v246
    %vm249 = vcmp.ge.s32.totalorder %v235, 15
    %vm250 = vcmp.ge.s32.totalorder %v236, 15
    %v251 = vsel %vm249, 1, 0
    %v252 = vsel %vm250, 1, 0
    %v253 = vadd.s32 %v247, %v251
    %v254 = vadd.s32 %v248, %v252
    %vm255 = vcmp.ge.s32.totalorder %v238, 5
    %v256 = vsel %vm255, 1, 0
    %vm257 = vcmp.ge.s32.totalorder %v238, 10
    %v258 = vsel %vm257, 1, 0
    %v259 = vadd.s32 %v256, %v258
    %vm260 = vcmp.ge.s32.totalorder %v238, 15
    %v261 = vsel %vm260, 1, 0
    %v262 = vadd.s32 %v259, %v261
    %vm263 = vcmp.eq.s32.totalorder %v253, %v262
    %vm264 = vcmp.eq.s32.totalorder %v254, %v262
    %v265 = vsel %vm263, 0.0, -10000.0
    %v266 = vsel %vm264, 0.0, -10000.0
    %v267 = vld [vmem:[%s8] sm:$0x1]
    %v268 = vld [vmem:[%s8 + $0x1] sm:$0x1]
    %v269 = vsel %vm194, %v232, 0.0
    %270 = vadd.xlane.f32.xlu0 %v269
    %v271 = vpop.xlane.xlu0 %270
    %v272 = vsel %vm194, %v233, 0.0
    %273 = vadd.xlane.f32.xlu0 %v272
    %v274 = vpop.xlane.xlu0 %273
    %v275 = vmul.f32 %v271, %v201
    %v276 = vmul.f32 %v274, %v201
    %v277 = vsub.f32 %v232, %v275
    %v278 = vsub.f32 %v233, %v276
    %v279 = vmul.f32 %v277, %v277
    %v280 = vmul.f32 %v278, %v278
    %v281 = vsel %vm194, %v279, 0.0
    %282 = vadd.xlane.f32.xlu0 %v281
    %v283 = vpop.xlane.xlu0 %282
    %v284 = vsel %vm194, %v280, 0.0
    %285 = vadd.xlane.f32.xlu0 %v284
    %v286 = vpop.xlane.xlu0 %285
    %v287 = vmul.f32 %v283, %v201
    %v288 = vmul.f32 %v286, %v201
    %v289 = vadd.f32 %v287, 1e-05
    %v290 = vadd.f32 %v288, 1e-05
    %v291 = vrsqrt.pop %v289
    %v292 = vrsqrt.pop %v290
    %v293 = vmul.f32 %v277, %v291
    %v294 = vmul.f32 %v278, %v292
    %v295 = vlaneseq
    %v296 = vshrl.u32 %v295, 7
    %v297 = vsub.s32 0, %v296
    %v298 = vrot.slane %v267, %v297
    %v299 = vmul.f32 %v293, %v298
    %v300 = vmul.f32 %v294, %v298
    %v301 = vlaneseq
    %v302 = vshrl.u32 %v301, 7
    %v303 = vsub.s32 0, %v302
    %v304 = vrot.slane %v268, %v303
    %v305 = vadd.f32 %v299, %v304
    %v306 = vadd.f32 %v300, %v304
    %v307 = vld [vmem:[%s4] sm:$0xf]
    %v308 = vld [vmem:[%s4 + $0x4] sm:$0xf]
    %v309 = vld [vmem:[%s4 + $0x8] sm:$0xf]
    %v310 = vld [vmem:[%s4 + $0xc] sm:$0xf]
    %v311 = vpack.c.bf16 %v306, %v305
    %v316 = vunpack.c.l.b16 %v307
    %v317 = vunpack.c.l.b16 %v308
    %v318 = vunpack.c.l.b16 %v309
    %v319 = vunpack.c.l.b16 %v310
    %v320 = vpack.c.b16 %v317, %v316
    %v321 = vpack.c.b16 %v319, %v318
    %v325 = vsel %vm194, %v311, 0
    %327 = vmatprep.subr.bf16.mxu0 0
    %328 = vmatpush1.bf16.msra.mxu0 0
    %329 = vmatprep.subr.bf16.mxu0 0
    %330 = vmatpush1.bf16.msra.mxu0 0
    %331 = vmatprep.subr.bf16.mxu0 0
    %332 = vmatpush1.bf16.msra.mxu0 0
    %333 = vmatprep.subr.bf16.mxu0 0
    %334 = vmatpush1.bf16.msra.mxu0 0
    %335 = vmatprep.subr.bf16.mxu0 0
    %336 = vmatpush1.bf16.msra.mxu0 0
    %337 = vmatprep.subr.bf16.mxu0 0
    %338 = vmatpush1.bf16.msra.mxu0 0
    %339 = vmatprep.subr.bf16.mxu0 0
    %340 = vmatpush1.bf16.msra.mxu0 %v321
    %341 = vmatprep.subr.bf16.mxu0 0
    %342 = vmatpush1.bf16.msra.mxu0 %v320
    %343 = vmatprep.subr.bf16.mxu0 0
    %344 = vmatpush2.bf16.msra.mxu0 0
    %345 = vmatprep.subr.bf16.mxu0 0
    %346 = vmatpush2.bf16.msra.mxu0 0
    %347 = vmatprep.subr.bf16.mxu0 0
    %348 = vmatpush2.bf16.msra.mxu0 0
    %349 = vmatprep.subr.bf16.mxu0 0
    %350 = vmatpush2.bf16.msra.mxu0 0
    %351 = vmatprep.subr.bf16.mxu0 0
    %352 = vmatpush2.bf16.msra.mxu0 0
    %353 = vmatprep.subr.bf16.mxu0 0
    %354 = vmatpush2.bf16.msra.mxu0 0
    %355 = vmatprep.subr.bf16.mxu0 0
    %356 = vmatpush2.bf16.msra.mxu0 0
    %357 = vmatprep.subr.bf16.mxu0 0
    %358 = vmatpush2.bf16.msra.mxu0 0
    %359 = vmatprep.mubr.bf16.mxu0 0
    %360 = vmatmul.mubr.bf16.gmra.mxu0 %v325
    %v361 = vpop.f32.mrf.mxu0
    %v362 = vadd.f32 0.0, %v361
    %v363 = vpop.f32.mrf.mxu0
    %v364 = vpop.f32.mrf.mxu0
    %v365 = vadd.f32 0.0, %v364
    %v366 = vpop.f32.mrf.mxu0
    %367 = vdwg.mxu0
    %v368 = vld [vmem:[%s8 + $0x4] sm:$0x1]
    %v369 = vlaneseq
    %v370 = vshrl.u32 %v369, 7
    %v371 = vsub.s32 0, %v370
    %v372 = vrot.slane %v368, %v371
    %v373 = vadd.f32 %v362, %v372
    %v374 = vadd.f32 %v365, %v372
    %v375 = vmul.f32 %v373, 0.35355338
    %v376 = vmul.f32 %v374, 0.35355338
    %v377 = vld [vmem:[%s8 + $0x5] sm:$0x1]
    %v378 = vlaneseq
    %v379 = vshrl.u32 %v378, 7
    %v380 = vsub.s32 0, %v379
    %v381 = vrot.slane %v377, %v380
    %383 = vrot.lane.b32.xlu0 %v381, 32
    %v384 = vpop.permute.xlu0 %383
    %v386 = vadd.f32 %v362, %v384
    %v387 = vadd.f32 %v365, %v384
    %v388 = vld [vmem:[%s8 + $0x6] sm:$0x1]
    %v389 = vlaneseq
    %v390 = vshrl.u32 %v389, 7
    %v391 = vsub.s32 0, %v390
    %v392 = vrot.slane %v388, %v391
    %394 = vrot.lane.b32.xlu0 %v392, 64
    %v395 = vpop.permute.xlu0 %394
    %v397 = vadd.f32 %v362, %v395
    %v398 = vadd.f32 %v365, %v395
    %401 = vrot.lane.b32.xlu0 %v375, 120
    %v402 = vpop.permute.xlu0 %401
    %403 = vrot.lane.b32.xlu0 %v376, 120
    %v404 = vpop.permute.xlu0 %403
    %407 = vrot.lane.b32.xlu0 %v375, 112
    %v408 = vpop.permute.xlu0 %407
    %409 = vrot.lane.b32.xlu0 %v376, 112
    %v410 = vpop.permute.xlu0 %409
    %413 = vrot.lane.b32.xlu0 %v375, 104
    %v414 = vpop.permute.xlu0 %413
    %415 = vrot.lane.b32.xlu0 %v376, 104
    %v416 = vpop.permute.xlu0 %415
    %421 = vrot.lane.b32.xlu0 %v386, 120
    %v422 = vpop.permute.xlu0 %421
    %423 = vrot.lane.b32.xlu0 %v387, 120
    %v424 = vpop.permute.xlu0 %423
    %427 = vrot.lane.b32.xlu0 %v386, 112
    %v428 = vpop.permute.xlu0 %427
    %429 = vrot.lane.b32.xlu0 %v387, 112
    %v430 = vpop.permute.xlu0 %429
    %433 = vrot.lane.b32.xlu0 %v386, 104
    %v434 = vpop.permute.xlu0 %433
    %435 = vrot.lane.b32.xlu0 %v387, 104
    %v436 = vpop.permute.xlu0 %435
    %441 = vrot.lane.b32.xlu0 %v397, 120
    %v442 = vpop.permute.xlu0 %441
    %443 = vrot.lane.b32.xlu0 %v398, 120
    %v444 = vpop.permute.xlu0 %443
    %447 = vrot.lane.b32.xlu0 %v397, 112
    %v448 = vpop.permute.xlu0 %447
    %449 = vrot.lane.b32.xlu0 %v398, 112
    %v450 = vpop.permute.xlu0 %449
    %453 = vrot.lane.b32.xlu0 %v397, 104
    %v454 = vpop.permute.xlu0 %453
    %455 = vrot.lane.b32.xlu0 %v398, 104
    %v456 = vpop.permute.xlu0 %455
    %v459 = vpack.c.bf16 %v376, %v375
    %v460 = vpack.c.bf16 %v404, %v402
    %v461 = vpack.c.bf16 %v410, %v408
    %v462 = vpack.c.bf16 %v416, %v414
    %v463 = vpack.c.bf16 %v387, %v386
    %v464 = vpack.c.bf16 %v424, %v422
    %v465 = vpack.c.bf16 %v430, %v428
    %v466 = vpack.c.bf16 %v436, %v434
    %468 = vrot.lane.b32.xlu0 %v463, 96
    %v469 = vpop.permute.xlu0 %468
    %vm470 = vcmask 64512
    %v472 = vsel %vm470, %v459, 0
    %v475 = vsel %vm470, %v469, 0
    %477 = vmatprep.subr.bf16.mxu0 0
    %478 = vmatpush1.bf16.xpose.msra.mxu0 0
    %479 = vmatprep.subr.bf16.mxu0 0
    %480 = vmatpush1.bf16.xpose.msra.mxu0 0
    %481 = vmatprep.subr.bf16.mxu0 0
    %482 = vmatpush1.bf16.xpose.msra.mxu0 0
    %483 = vmatprep.subr.bf16.mxu0 0
    %484 = vmatpush1.bf16.xpose.msra.mxu0 0
    %485 = vmatprep.subr.bf16.mxu0 0
    %486 = vmatpush1.bf16.xpose.msra.mxu0 0
    %487 = vmatprep.subr.bf16.mxu0 0
    %488 = vmatpush1.bf16.xpose.msra.mxu0 0
    %489 = vmatprep.subr.bf16.mxu0 0
    %490 = vmatpush1.bf16.xpose.msra.mxu0 0
    %491 = vmatprep.subr.bf16.mxu0 0
    %492 = vmatpush1.bf16.xpose.msra.mxu0 %v475
    %493 = vmatprep.subr.bf16.mxu0 0
    %494 = vmatpush2.bf16.xpose.msra.mxu0 0
    %495 = vmatprep.subr.bf16.mxu0 0
    %496 = vmatpush2.bf16.xpose.msra.mxu0 0
    %497 = vmatprep.subr.bf16.mxu0 0
    %498 = vmatpush2.bf16.xpose.msra.mxu0 0
    %499 = vmatprep.subr.bf16.mxu0 0
    %500 = vmatpush2.bf16.xpose.msra.mxu0 0
    %501 = vmatprep.subr.bf16.mxu0 0
    %502 = vmatpush2.bf16.xpose.msra.mxu0 0
    %503 = vmatprep.subr.bf16.mxu0 0
    %504 = vmatpush2.bf16.xpose.msra.mxu0 0
    %505 = vmatprep.subr.bf16.mxu0 0
    %506 = vmatpush2.bf16.xpose.msra.mxu0 0
    %507 = vmatprep.subr.bf16.mxu0 0
    %508 = vmatpush2.bf16.xpose.msra.mxu0 0
    %509 = vmatprep.mubr.bf16.mxu0 0
    %510 = vmatmul.mubr.bf16.gmra.mxu0 %v472
    %v511 = vpop.f32.mrf.mxu0
    %v512 = vadd.f32 %v265, %v511
    %v513 = vpop.f32.mrf.mxu0
    %v514 = vpop.f32.mrf.mxu0
    %v515 = vadd.f32 %v266, %v514
    %v516 = vpop.f32.mrf.mxu0
    %517 = vdwg.mxu0
    %519 = vrot.lane.b32.xlu0 %v464, 96
    %v520 = vpop.permute.xlu0 %519
    %v522 = vsel %vm470, %v460, 0
    %v525 = vsel %vm470, %v520, 0
    %527 = vmatprep.subr.bf16.mxu0 0
    %528 = vmatpush1.bf16.xpose.msra.mxu0 0
    %529 = vmatprep.subr.bf16.mxu0 0
    %530 = vmatpush1.bf16.xpose.msra.mxu0 0
    %531 = vmatprep.subr.bf16.mxu0 0
    %532 = vmatpush1.bf16.xpose.msra.mxu0 0
    %533 = vmatprep.subr.bf16.mxu0 0
    %534 = vmatpush1.bf16.xpose.msra.mxu0 0
    %535 = vmatprep.subr.bf16.mxu0 0
    %536 = vmatpush1.bf16.xpose.msra.mxu0 0
    %537 = vmatprep.subr.bf16.mxu0 0
    %538 = vmatpush1.bf16.xpose.msra.mxu0 0
    %539 = vmatprep.subr.bf16.mxu0 0
    %540 = vmatpush1.bf16.xpose.msra.mxu0 0
    %541 = vmatprep.subr.bf16.mxu0 0
    %542 = vmatpush1.bf16.xpose.msra.mxu0 %v525
    %543 = vmatprep.subr.bf16.mxu0 0
    %544 = vmatpush2.bf16.xpose.msra.mxu0 0
    %545 = vmatprep.subr.bf16.mxu0 0
    %546 = vmatpush2.bf16.xpose.msra.mxu0 0
    %547 = vmatprep.subr.bf16.mxu0 0
    %548 = vmatpush2.bf16.xpose.msra.mxu0 0
    %549 = vmatprep.subr.bf16.mxu0 0
    %550 = vmatpush2.bf16.xpose.msra.mxu0 0
    %551 = vmatprep.subr.bf16.mxu0 0
    %552 = vmatpush2.bf16.xpose.msra.mxu0 0
    %553 = vmatprep.subr.bf16.mxu0 0
    %554 = vmatpush2.bf16.xpose.msra.mxu0 0
    %555 = vmatprep.subr.bf16.mxu0 0
    %556 = vmatpush2.bf16.xpose.msra.mxu0 0
    %557 = vmatprep.subr.bf16.mxu0 0
    %558 = vmatpush2.bf16.xpose.msra.mxu0 0
    %559 = vmatprep.mubr.bf16.mxu0 0
    %560 = vmatmul.mubr.bf16.gmra.mxu0 %v522
    %v561 = vpop.f32.mrf.mxu0
    %v562 = vadd.f32 %v265, %v561
    %v563 = vpop.f32.mrf.mxu0
    %v564 = vpop.f32.mrf.mxu0
    %v565 = vadd.f32 %v266, %v564
    %v566 = vpop.f32.mrf.mxu0
    %567 = vdwg.mxu0
    %569 = vrot.lane.b32.xlu0 %v465, 96
    %v570 = vpop.permute.xlu0 %569
    %v572 = vsel %vm470, %v461, 0
    %v575 = vsel %vm470, %v570, 0
    %577 = vmatprep.subr.bf16.mxu0 0
    %578 = vmatpush1.bf16.xpose.msra.mxu0 0
    %579 = vmatprep.subr.bf16.mxu0 0
    %580 = vmatpush1.bf16.xpose.msra.mxu0 0
    %581 = vmatprep.subr.bf16.mxu0 0
    %582 = vmatpush1.bf16.xpose.msra.mxu0 0
    %583 = vmatprep.subr.bf16.mxu0 0
    %584 = vmatpush1.bf16.xpose.msra.mxu0 0
    %585 = vmatprep.subr.bf16.mxu0 0
    %586 = vmatpush1.bf16.xpose.msra.mxu0 0
    %587 = vmatprep.subr.bf16.mxu0 0
    %588 = vmatpush1.bf16.xpose.msra.mxu0 0
    %589 = vmatprep.subr.bf16.mxu0 0
    %590 = vmatpush1.bf16.xpose.msra.mxu0 0
    %591 = vmatprep.subr.bf16.mxu0 0
    %592 = vmatpush1.bf16.xpose.msra.mxu0 %v575
    %593 = vmatprep.subr.bf16.mxu0 0
    %594 = vmatpush2.bf16.xpose.msra.mxu0 0
    %595 = vmatprep.subr.bf16.mxu0 0
    %596 = vmatpush2.bf16.xpose.msra.mxu0 0
    %597 = vmatprep.subr.bf16.mxu0 0
    %598 = vmatpush2.bf16.xpose.msra.mxu0 0
    %599 = vmatprep.subr.bf16.mxu0 0
    %600 = vmatpush2.bf16.xpose.msra.mxu0 0
    %601 = vmatprep.subr.bf16.mxu0 0
    %602 = vmatpush2.bf16.xpose.msra.mxu0 0
    %603 = vmatprep.subr.bf16.mxu0 0
    %604 = vmatpush2.bf16.xpose.msra.mxu0 0
    %605 = vmatprep.subr.bf16.mxu0 0
    %606 = vmatpush2.bf16.xpose.msra.mxu0 0
    %607 = vmatprep.subr.bf16.mxu0 0
    %608 = vmatpush2.bf16.xpose.msra.mxu0 0
    %609 = vmatprep.mubr.bf16.mxu0 0
    %610 = vmatmul.mubr.bf16.gmra.mxu0 %v572
    %v611 = vpop.f32.mrf.mxu0
    %v612 = vadd.f32 %v265, %v611
    %v613 = vpop.f32.mrf.mxu0
    %v614 = vpop.f32.mrf.mxu0
    %v615 = vadd.f32 %v266, %v614
    %v616 = vpop.f32.mrf.mxu0
    %617 = vdwg.mxu0
    %619 = vrot.lane.b32.xlu0 %v466, 96
    %v620 = vpop.permute.xlu0 %619
    %v622 = vsel %vm470, %v462, 0
    %v625 = vsel %vm470, %v620, 0
    %627 = vmatprep.subr.bf16.mxu0 0
    %628 = vmatpush1.bf16.xpose.msra.mxu0 0
    %629 = vmatprep.subr.bf16.mxu0 0
    %630 = vmatpush1.bf16.xpose.msra.mxu0 0
    %631 = vmatprep.subr.bf16.mxu0 0
    %632 = vmatpush1.bf16.xpose.msra.mxu0 0
    %633 = vmatprep.subr.bf16.mxu0 0
    %634 = vmatpush1.bf16.xpose.msra.mxu0 0
    %635 = vmatprep.subr.bf16.mxu0 0
    %636 = vmatpush1.bf16.xpose.msra.mxu0 0
    %637 = vmatprep.subr.bf16.mxu0 0
    %638 = vmatpush1.bf16.xpose.msra.mxu0 0
    %639 = vmatprep.subr.bf16.mxu0 0
    %640 = vmatpush1.bf16.xpose.msra.mxu0 0
    %641 = vmatprep.subr.bf16.mxu0 0
    %642 = vmatpush1.bf16.xpose.msra.mxu0 %v625
    %643 = vmatprep.subr.bf16.mxu0 0
    %644 = vmatpush2.bf16.xpose.msra.mxu0 0
    %645 = vmatprep.subr.bf16.mxu0 0
    %646 = vmatpush2.bf16.xpose.msra.mxu0 0
    %647 = vmatprep.subr.bf16.mxu0 0
    %648 = vmatpush2.bf16.xpose.msra.mxu0 0
    %649 = vmatprep.subr.bf16.mxu0 0
    %650 = vmatpush2.bf16.xpose.msra.mxu0 0
    %651 = vmatprep.subr.bf16.mxu0 0
    %652 = vmatpush2.bf16.xpose.msra.mxu0 0
    %653 = vmatprep.subr.bf16.mxu0 0
    %654 = vmatpush2.bf16.xpose.msra.mxu0 0
    %655 = vmatprep.subr.bf16.mxu0 0
    %656 = vmatpush2.bf16.xpose.msra.mxu0 0
    %657 = vmatprep.subr.bf16.mxu0 0
    %658 = vmatpush2.bf16.xpose.msra.mxu0 0
    %659 = vmatprep.mubr.bf16.mxu0 0
    %660 = vmatmul.mubr.bf16.gmra.mxu0 %v622
    %v661 = vpop.f32.mrf.mxu0
    %v662 = vadd.f32 %v265, %v661
    %v663 = vpop.f32.mrf.mxu0
    %v664 = vpop.f32.mrf.mxu0
    %v665 = vadd.f32 %v266, %v664
    %v666 = vpop.f32.mrf.mxu0
    %667 = vdwg.mxu0
    %vm668 = vcmask 130048
    %v669 = vsel %vm668, %v512, -inf
    %670 = vmax.xlane.f32.xlu0 %v669
    %v671 = vpop.xlane.xlu0 %670
    %v672 = vsel %vm668, %v515, -inf
    %673 = vmax.xlane.f32.xlu0 %v672
    %v674 = vpop.xlane.xlu0 %673
    %v675 = vsel %vm668, %v562, -inf
    %676 = vmax.xlane.f32.xlu0 %v675
    %v677 = vpop.xlane.xlu0 %676
    %v678 = vsel %vm668, %v565, -inf
    %679 = vmax.xlane.f32.xlu0 %v678
    %v680 = vpop.xlane.xlu0 %679
    %v681 = vsel %vm668, %v612, -inf
    %682 = vmax.xlane.f32.xlu0 %v681
    %v683 = vpop.xlane.xlu0 %682
    %v684 = vsel %vm668, %v615, -inf
    %685 = vmax.xlane.f32.xlu0 %v684
    %v686 = vpop.xlane.xlu0 %685
    %v687 = vsel %vm668, %v662, -inf
    %688 = vmax.xlane.f32.xlu0 %v687
    %v689 = vpop.xlane.xlu0 %688
    %v690 = vsel %vm668, %v665, -inf
    %691 = vmax.xlane.f32.xlu0 %v690
    %v692 = vpop.xlane.xlu0 %691
    %v693 = vsub.f32 %v512, %v671
    %v694 = vsub.f32 %v515, %v674
    %v695 = vsub.f32 %v562, %v677
    %v696 = vsub.f32 %v565, %v680
    %v697 = vsub.f32 %v612, %v683
    %v698 = vsub.f32 %v615, %v686
    %v699 = vsub.f32 %v662, %v689
    %v700 = vsub.f32 %v665, %v692
    %v701 = vmul.f32 %v693, 1.442695
    %v702 = vpow.pop %v701
    %v703 = vmul.f32 %v694, 1.442695
    %v704 = vpow.pop %v703
    %v705 = vmul.f32 %v695, 1.442695
    %v706 = vpow.pop %v705
    %v707 = vmul.f32 %v696, 1.442695
    %v708 = vpow.pop %v707
    %v709 = vmul.f32 %v697, 1.442695
    %v710 = vpow.pop %v709
    %v711 = vmul.f32 %v698, 1.442695
    %v712 = vpow.pop %v711
    %v713 = vmul.f32 %v699, 1.442695
    %v714 = vpow.pop %v713
    %v715 = vmul.f32 %v700, 1.442695
    %v716 = vpow.pop %v715
    %v717 = vsel %vm668, %v702, 0.0
    %718 = vadd.xlane.f32.xlu0 %v717
    %v719 = vpop.xlane.xlu0 %718
    %v720 = vsel %vm668, %v704, 0.0
    %721 = vadd.xlane.f32.xlu0 %v720
    %v722 = vpop.xlane.xlu0 %721
    %v723 = vsel %vm668, %v706, 0.0
    %724 = vadd.xlane.f32.xlu0 %v723
    %v725 = vpop.xlane.xlu0 %724
    %v726 = vsel %vm668, %v708, 0.0
    %727 = vadd.xlane.f32.xlu0 %v726
    %v728 = vpop.xlane.xlu0 %727
    %v729 = vsel %vm668, %v710, 0.0
    %730 = vadd.xlane.f32.xlu0 %v729
    %v731 = vpop.xlane.xlu0 %730
    %v732 = vsel %vm668, %v712, 0.0
    %733 = vadd.xlane.f32.xlu0 %v732
    %v734 = vpop.xlane.xlu0 %733
    %v735 = vsel %vm668, %v714, 0.0
    %736 = vadd.xlane.f32.xlu0 %v735
    %v737 = vpop.xlane.xlu0 %736
    %v738 = vsel %vm668, %v716, 0.0
    %739 = vadd.xlane.f32.xlu0 %v738
    %v740 = vpop.xlane.xlu0 %739
    %v741 = vrcp.pop %v719
    %v742 = vrcp.pop %v722
    %v743 = vrcp.pop %v725
    %v744 = vrcp.pop %v728
    %v745 = vrcp.pop %v731
    %v746 = vrcp.pop %v734
    %v747 = vrcp.pop %v737
    %v748 = vrcp.pop %v740
    %v749 = vmul.f32 %v702, %v741
    %v750 = vmul.f32 %v704, %v742
    %v751 = vmul.f32 %v706, %v743
    %v752 = vmul.f32 %v708, %v744
    %v753 = vmul.f32 %v710, %v745
    %v754 = vmul.f32 %v712, %v746
    %v755 = vmul.f32 %v714, %v747
    %v756 = vmul.f32 %v716, %v748
    %v757 = vpack.c.bf16 %v750, %v749
    %v758 = vpack.c.bf16 %v752, %v751
    %v759 = vpack.c.bf16 %v754, %v753
    %v760 = vpack.c.bf16 %v756, %v755
    %v761 = vpack.c.bf16 %v398, %v397
    %v762 = vpack.c.bf16 %v444, %v442
    %v763 = vpack.c.bf16 %v450, %v448
    %v764 = vpack.c.bf16 %v456, %v454
    %766 = vrot.lane.b32.xlu0 %v761, 64
    %v767 = vpop.permute.xlu0 %766
    %v770 = vsel %vm668, %v757, 0
    %772 = vmatprep.subr.bf16.mxu0 0
    %773 = vmatpush1.bf16.msra.mxu0 0
    %774 = vmatprep.subr.bf16.mxu0 0
    %775 = vmatpush1.bf16.msra.mxu0 0
    %776 = vmatprep.subr.bf16.mxu0 0
    %777 = vmatpush1.bf16.msra.mxu0 0
    %778 = vmatprep.subr.bf16.mxu0 0
    %779 = vmatpush1.bf16.msra.mxu0 0
    %780 = vmatprep.subr.bf16.mxu0 0
    %781 = vmatpush1.bf16.msra.mxu0 0
    %782 = vmatprep.subr.bf16.mxu0 0
    %783 = vmatpush1.bf16.msra.mxu0 0
    %784 = vmatprep.subr.bf16.mxu0 0
    %785 = vmatpush1.bf16.msra.mxu0 0
    %786 = vmatprep.subr.bf16.mxu0 0
    %787 = vmatpush1.bf16.msra.mxu0 %v767
    %788 = vmatprep.subr.bf16.mxu0 0
    %789 = vmatpush2.bf16.msra.mxu0 0
    %790 = vmatprep.subr.bf16.mxu0 0
    %791 = vmatpush2.bf16.msra.mxu0 0
    %792 = vmatprep.subr.bf16.mxu0 0
    %793 = vmatpush2.bf16.msra.mxu0 0
    %794 = vmatprep.subr.bf16.mxu0 0
    %795 = vmatpush2.bf16.msra.mxu0 0
    %796 = vmatprep.subr.bf16.mxu0 0
    %797 = vmatpush2.bf16.msra.mxu0 0
    %798 = vmatprep.subr.bf16.mxu0 0
    %799 = vmatpush2.bf16.msra.mxu0 0
    %800 = vmatprep.subr.bf16.mxu0 0
    %801 = vmatpush2.bf16.msra.mxu0 0
    %802 = vmatprep.subr.bf16.mxu0 0
    %803 = vmatpush2.bf16.msra.mxu0 0
    %804 = vmatprep.mubr.bf16.mxu0 0
    %805 = vmatmul.mubr.bf16.gmra.mxu0 %v770
    %v806 = vpop.f32.mrf.mxu0
    %v807 = vadd.f32 0.0, %v806
    %v808 = vpop.f32.mrf.mxu0
    %v809 = vpop.f32.mrf.mxu0
    %v810 = vadd.f32 0.0, %v809
    %v811 = vpop.f32.mrf.mxu0
    %812 = vdwg.mxu0
    %814 = vrot.lane.b32.xlu0 %v762, 64
    %v815 = vpop.permute.xlu0 %814
    %v818 = vsel %vm668, %v758, 0
    %820 = vmatprep.subr.bf16.mxu0 0
    %821 = vmatpush1.bf16.msra.mxu0 0
    %822 = vmatprep.subr.bf16.mxu0 0
    %823 = vmatpush1.bf16.msra.mxu0 0
    %824 = vmatprep.subr.bf16.mxu0 0
    %825 = vmatpush1.bf16.msra.mxu0 0
    %826 = vmatprep.subr.bf16.mxu0 0
    %827 = vmatpush1.bf16.msra.mxu0 0
    %828 = vmatprep.subr.bf16.mxu0 0
    %829 = vmatpush1.bf16.msra.mxu0 0
    %830 = vmatprep.subr.bf16.mxu0 0
    %831 = vmatpush1.bf16.msra.mxu0 0
    %832 = vmatprep.subr.bf16.mxu0 0
    %833 = vmatpush1.bf16.msra.mxu0 0
    %834 = vmatprep.subr.bf16.mxu0 0
    %835 = vmatpush1.bf16.msra.mxu0 %v815
    %836 = vmatprep.subr.bf16.mxu0 0
    %837 = vmatpush2.bf16.msra.mxu0 0
    %838 = vmatprep.subr.bf16.mxu0 0
    %839 = vmatpush2.bf16.msra.mxu0 0
    %840 = vmatprep.subr.bf16.mxu0 0
    %841 = vmatpush2.bf16.msra.mxu0 0
    %842 = vmatprep.subr.bf16.mxu0 0
    %843 = vmatpush2.bf16.msra.mxu0 0
    %844 = vmatprep.subr.bf16.mxu0 0
    %845 = vmatpush2.bf16.msra.mxu0 0
    %846 = vmatprep.subr.bf16.mxu0 0
    %847 = vmatpush2.bf16.msra.mxu0 0
    %848 = vmatprep.subr.bf16.mxu0 0
    %849 = vmatpush2.bf16.msra.mxu0 0
    %850 = vmatprep.subr.bf16.mxu0 0
    %851 = vmatpush2.bf16.msra.mxu0 0
    %852 = vmatprep.mubr.bf16.mxu0 0
    %853 = vmatmul.mubr.bf16.gmra.mxu0 %v818
    %v854 = vpop.f32.mrf.mxu0
    %v855 = vadd.f32 0.0, %v854
    %v856 = vpop.f32.mrf.mxu0
    %v857 = vpop.f32.mrf.mxu0
    %v858 = vadd.f32 0.0, %v857
    %v859 = vpop.f32.mrf.mxu0
    %860 = vdwg.mxu0
    %862 = vrot.lane.b32.xlu0 %v763, 64
    %v863 = vpop.permute.xlu0 %862
    %v866 = vsel %vm668, %v759, 0
    %868 = vmatprep.subr.bf16.mxu0 0
    %869 = vmatpush1.bf16.msra.mxu0 0
    %870 = vmatprep.subr.bf16.mxu0 0
    %871 = vmatpush1.bf16.msra.mxu0 0
    %872 = vmatprep.subr.bf16.mxu0 0
    %873 = vmatpush1.bf16.msra.mxu0 0
    %874 = vmatprep.subr.bf16.mxu0 0
    %875 = vmatpush1.bf16.msra.mxu0 0
    %876 = vmatprep.subr.bf16.mxu0 0
    %877 = vmatpush1.bf16.msra.mxu0 0
    %878 = vmatprep.subr.bf16.mxu0 0
    %879 = vmatpush1.bf16.msra.mxu0 0
    %880 = vmatprep.subr.bf16.mxu0 0
    %881 = vmatpush1.bf16.msra.mxu0 0
    %882 = vmatprep.subr.bf16.mxu0 0
    %883 = vmatpush1.bf16.msra.mxu0 %v863
    %884 = vmatprep.subr.bf16.mxu0 0
    %885 = vmatpush2.bf16.msra.mxu0 0
    %886 = vmatprep.subr.bf16.mxu0 0
    %887 = vmatpush2.bf16.msra.mxu0 0
    %888 = vmatprep.subr.bf16.mxu0 0
    %889 = vmatpush2.bf16.msra.mxu0 0
    %890 = vmatprep.subr.bf16.mxu0 0
    %891 = vmatpush2.bf16.msra.mxu0 0
    %892 = vmatprep.subr.bf16.mxu0 0
    %893 = vmatpush2.bf16.msra.mxu0 0
    %894 = vmatprep.subr.bf16.mxu0 0
    %895 = vmatpush2.bf16.msra.mxu0 0
    %896 = vmatprep.subr.bf16.mxu0 0
    %897 = vmatpush2.bf16.msra.mxu0 0
    %898 = vmatprep.subr.bf16.mxu0 0
    %899 = vmatpush2.bf16.msra.mxu0 0
    %900 = vmatprep.mubr.bf16.mxu0 0
    %901 = vmatmul.mubr.bf16.gmra.mxu0 %v866
    %v902 = vpop.f32.mrf.mxu0
    %v903 = vadd.f32 0.0, %v902
    %v904 = vpop.f32.mrf.mxu0
    %v905 = vpop.f32.mrf.mxu0
    %v906 = vadd.f32 0.0, %v905
    %v907 = vpop.f32.mrf.mxu0
    %908 = vdwg.mxu0
    %910 = vrot.lane.b32.xlu0 %v764, 64
    %v911 = vpop.permute.xlu0 %910
    %v914 = vsel %vm668, %v760, 0
    %916 = vmatprep.subr.bf16.mxu0 0
    %917 = vmatpush1.bf16.msra.mxu0 0
    %918 = vmatprep.subr.bf16.mxu0 0
    %919 = vmatpush1.bf16.msra.mxu0 0
    %920 = vmatprep.subr.bf16.mxu0 0
    %921 = vmatpush1.bf16.msra.mxu0 0
    %922 = vmatprep.subr.bf16.mxu0 0
    %923 = vmatpush1.bf16.msra.mxu0 0
    %924 = vmatprep.subr.bf16.mxu0 0
    %925 = vmatpush1.bf16.msra.mxu0 0
    %926 = vmatprep.subr.bf16.mxu0 0
    %927 = vmatpush1.bf16.msra.mxu0 0
    %928 = vmatprep.subr.bf16.mxu0 0
    %929 = vmatpush1.bf16.msra.mxu0 0
    %930 = vmatprep.subr.bf16.mxu0 0
    %931 = vmatpush1.bf16.msra.mxu0 %v911
    %932 = vmatprep.subr.bf16.mxu0 0
    %933 = vmatpush2.bf16.msra.mxu0 0
    %934 = vmatprep.subr.bf16.mxu0 0
    %935 = vmatpush2.bf16.msra.mxu0 0
    %936 = vmatprep.subr.bf16.mxu0 0
    %937 = vmatpush2.bf16.msra.mxu0 0
    %938 = vmatprep.subr.bf16.mxu0 0
    %939 = vmatpush2.bf16.msra.mxu0 0
    %940 = vmatprep.subr.bf16.mxu0 0
    %941 = vmatpush2.bf16.msra.mxu0 0
    %942 = vmatprep.subr.bf16.mxu0 0
    %943 = vmatpush2.bf16.msra.mxu0 0
    %944 = vmatprep.subr.bf16.mxu0 0
    %945 = vmatpush2.bf16.msra.mxu0 0
    %946 = vmatprep.subr.bf16.mxu0 0
    %947 = vmatpush2.bf16.msra.mxu0 0
    %948 = vmatprep.mubr.bf16.mxu0 0
    %949 = vmatmul.mubr.bf16.gmra.mxu0 %v914
    %v950 = vpop.f32.mrf.mxu0
    %v951 = vadd.f32 0.0, %v950
    %v952 = vpop.f32.mrf.mxu0
    %v953 = vpop.f32.mrf.mxu0
    %v954 = vadd.f32 0.0, %v953
    %v955 = vpop.f32.mrf.mxu0
    %956 = vdwg.mxu0
    %959 = vrot.lane.b32.xlu0 %v855, 8
    %v960 = vpop.permute.xlu0 %959
    %961 = vrot.lane.b32.xlu0 %v858, 8
    %v962 = vpop.permute.xlu0 %961
    %967 = vrot.lane.b32.xlu0 %v903, 16
    %v968 = vpop.permute.xlu0 %967
    %969 = vrot.lane.b32.xlu0 %v906, 16
    %v970 = vpop.permute.xlu0 %969
    %975 = vrot.lane.b32.xlu0 %v951, 24
    %v976 = vpop.permute.xlu0 %975
    %977 = vrot.lane.b32.xlu0 %v954, 24
    %v978 = vpop.permute.xlu0 %977
    %v981 = vsel %vm470, %v807, %v960
    %v982 = vsel %vm470, %v810, %v962
    %v983 = vsel %vm668, %v981, %v968
    %v984 = vsel %vm668, %v982, %v970
    %vm985 = vcmask 195584
    %v986 = vsel %vm985, %v983, %v976
    %v987 = vsel %vm985, %v984, %v978
    %v988 = vld [vmem:[%s5] sm:$0xf]
    %v989 = vld [vmem:[%s5 + $0x4] sm:$0xf]
    %v990 = vld [vmem:[%s5 + $0x8] sm:$0xf]
    %v991 = vld [vmem:[%s5 + $0xc] sm:$0xf]
    %v992 = vpack.c.bf16 %v987, %v986
    %v997 = vunpack.c.l.b16 %v988
    %v998 = vunpack.c.l.b16 %v989
    %v999 = vunpack.c.l.b16 %v990
    %v1000 = vunpack.c.l.b16 %v991
    %v1001 = vpack.c.b16 %v998, %v997
    %v1002 = vpack.c.b16 %v1000, %v999
    %v1006 = vsel %vm194, %v992, 0
    %1008 = vmatprep.subr.bf16.mxu0 0
    %1009 = vmatpush1.bf16.msra.mxu0 0
    %1010 = vmatprep.subr.bf16.mxu0 0
    %1011 = vmatpush1.bf16.msra.mxu0 0
    %1012 = vmatprep.subr.bf16.mxu0 0
    %1013 = vmatpush1.bf16.msra.mxu0 0
    %1014 = vmatprep.subr.bf16.mxu0 0
    %1015 = vmatpush1.bf16.msra.mxu0 0
    %1016 = vmatprep.subr.bf16.mxu0 0
    %1017 = vmatpush1.bf16.msra.mxu0 0
    %1018 = vmatprep.subr.bf16.mxu0 0
    %1019 = vmatpush1.bf16.msra.mxu0 0
    %1020 = vmatprep.subr.bf16.mxu0 0
    %1021 = vmatpush1.bf16.msra.mxu0 %v1002
    %1022 = vmatprep.subr.bf16.mxu0 0
    %1023 = vmatpush1.bf16.msra.mxu0 %v1001
    %1024 = vmatprep.subr.bf16.mxu0 0
    %1025 = vmatpush2.bf16.msra.mxu0 0
    %1026 = vmatprep.subr.bf16.mxu0 0
    %1027 = vmatpush2.bf16.msra.mxu0 0
    %1028 = vmatprep.subr.bf16.mxu0 0
    %1029 = vmatpush2.bf16.msra.mxu0 0
    %1030 = vmatprep.subr.bf16.mxu0 0
    %1031 = vmatpush2.bf16.msra.mxu0 0
    %1032 = vmatprep.subr.bf16.mxu0 0
    %1033 = vmatpush2.bf16.msra.mxu0 0
    %1034 = vmatprep.subr.bf16.mxu0 0
    %1035 = vmatpush2.bf16.msra.mxu0 0
    %1036 = vmatprep.subr.bf16.mxu0 0
    %1037 = vmatpush2.bf16.msra.mxu0 0
    %1038 = vmatprep.subr.bf16.mxu0 0
    %1039 = vmatpush2.bf16.msra.mxu0 0
    %1040 = vmatprep.mubr.bf16.mxu0 0
    %1041 = vmatmul.mubr.bf16.gmra.mxu0 %v1006
    %v1042 = vpop.f32.mrf.mxu0
    %v1043 = vadd.f32 0.0, %v1042
    %v1044 = vpop.f32.mrf.mxu0
    %v1045 = vpop.f32.mrf.mxu0
    %v1046 = vadd.f32 0.0, %v1045
    %v1047 = vpop.f32.mrf.mxu0
    %1048 = vdwg.mxu0
    %v1049 = vadd.f32 %v232, %v1043
    %v1050 = vadd.f32 %v233, %v1046
    %v1051 = vld [vmem:[%s8 + $0x7] sm:$0x1]
    %v1052 = vlaneseq
    %v1053 = vshrl.u32 %v1052, 7
    %v1054 = vsub.s32 0, %v1053
    %v1055 = vrot.slane %v1051, %v1054
    %v1056 = vadd.f32 %v1049, %v1055
    %v1057 = vadd.f32 %v1050, %v1055
    %v1058 = vld [vmem:[%s8 + $0x2] sm:$0x1]
    %v1059 = vld [vmem:[%s8 + $0x3] sm:$0x1]
    %v1060 = vsel %vm194, %v1056, 0.0
    %1061 = vadd.xlane.f32.xlu0 %v1060
    %v1062 = vpop.xlane.xlu0 %1061
    %v1063 = vsel %vm194, %v1057, 0.0
    %1064 = vadd.xlane.f32.xlu0 %v1063
    %v1065 = vpop.xlane.xlu0 %1064
    %v1066 = vmul.f32 %v1062, %v201
    %v1067 = vmul.f32 %v1065, %v201
    %v1068 = vsub.f32 %v1056, %v1066
    %v1069 = vsub.f32 %v1057, %v1067
    %v1070 = vmul.f32 %v1068, %v1068
    %v1071 = vmul.f32 %v1069, %v1069
    %v1072 = vsel %vm194, %v1070, 0.0
    %1073 = vadd.xlane.f32.xlu0 %v1072
    %v1074 = vpop.xlane.xlu0 %1073
    %v1075 = vsel %vm194, %v1071, 0.0
    %1076 = vadd.xlane.f32.xlu0 %v1075
    %v1077 = vpop.xlane.xlu0 %1076
    %v1078 = vmul.f32 %v1074, %v201
    %v1079 = vmul.f32 %v1077, %v201
    %v1080 = vadd.f32 %v1078, 1e-05
    %v1081 = vadd.f32 %v1079, 1e-05
    %v1082 = vrsqrt.pop %v1080
    %v1083 = vrsqrt.pop %v1081
    %v1084 = vmul.f32 %v1068, %v1082
    %v1085 = vmul.f32 %v1069, %v1083
    %v1086 = vlaneseq
    %v1087 = vshrl.u32 %v1086, 7
    %v1088 = vsub.s32 0, %v1087
    %v1089 = vrot.slane %v1058, %v1088
    %v1090 = vmul.f32 %v1084, %v1089
    %v1091 = vmul.f32 %v1085, %v1089
    %v1092 = vlaneseq
    %v1093 = vshrl.u32 %v1092, 7
    %v1094 = vsub.s32 0, %v1093
    %v1095 = vrot.slane %v1059, %v1094
    %v1096 = vadd.f32 %v1090, %v1095
    %v1097 = vadd.f32 %v1091, %v1095
    %v1098 = vld [vmem:[%s6] sm:$0xf]
    %v1099 = vld [vmem:[%s6 + $0x4] sm:$0xf]
    %v1100 = vld [vmem:[%s6 + $0x8] sm:$0xf]
    %v1101 = vld [vmem:[%s6 + $0xc] sm:$0xf]
    %v1102 = vpack.c.bf16 %v1097, %v1096
    %v1103 = vld [vmem:[%s9] sm:$0x1]
    %v1105 = vlaneseq
    %v1106 = vshrl.u32 %v1105, 7
    %v1107 = vsub.s32 0, %v1106
    %v1108 = vrot.slane %v1103, %v1107
    %v1114 = vunpack.c.l.b16 %v1098
    %v1115 = vunpack.c.l.b16 %v1099
    %v1116 = vunpack.c.l.b16 %v1100
    %v1117 = vunpack.c.l.b16 %v1101
    %v1118 = vpack.c.b16 %v1115, %v1114
    %v1119 = vpack.c.b16 %v1117, %v1116
    %v1123 = vsel %vm194, %v1102, 0
    %1125 = vmatprep.subr.bf16.mxu0 0
    %1126 = vmatpush1.bf16.msra.mxu0 0
    %1127 = vmatprep.subr.bf16.mxu0 0
    %1128 = vmatpush1.bf16.msra.mxu0 0
    %1129 = vmatprep.subr.bf16.mxu0 0
    %1130 = vmatpush1.bf16.msra.mxu0 0
    %1131 = vmatprep.subr.bf16.mxu0 0
    %1132 = vmatpush1.bf16.msra.mxu0 0
    %1133 = vmatprep.subr.bf16.mxu0 0
    %1134 = vmatpush1.bf16.msra.mxu0 0
    %1135 = vmatprep.subr.bf16.mxu0 0
    %1136 = vmatpush1.bf16.msra.mxu0 0
    %1137 = vmatprep.subr.bf16.mxu0 0
    %1138 = vmatpush1.bf16.msra.mxu0 %v1119
    %1139 = vmatprep.subr.bf16.mxu0 0
    %1140 = vmatpush1.bf16.msra.mxu0 %v1118
    %1141 = vmatprep.subr.bf16.mxu0 0
    %1142 = vmatpush2.bf16.msra.mxu0 0
    %1143 = vmatprep.subr.bf16.mxu0 0
    %1144 = vmatpush2.bf16.msra.mxu0 0
    %1145 = vmatprep.subr.bf16.mxu0 0
    %1146 = vmatpush2.bf16.msra.mxu0 0
    %1147 = vmatprep.subr.bf16.mxu0 0
    %1148 = vmatpush2.bf16.msra.mxu0 0
    %1149 = vmatprep.subr.bf16.mxu0 0
    %1150 = vmatpush2.bf16.msra.mxu0 0
    %1151 = vmatprep.subr.bf16.mxu0 0
    %1152 = vmatpush2.bf16.msra.mxu0 0
    %1153 = vmatprep.subr.bf16.mxu0 0
    %1154 = vmatpush2.bf16.msra.mxu0 0
    %1155 = vmatprep.subr.bf16.mxu0 0
    %1156 = vmatpush2.bf16.msra.mxu0 0
    %1157 = vmatprep.mubr.bf16.mxu0 0
    %1158 = vmatmul.mubr.bf16.gmra.mxu0 %v1123
    %v1159 = vpop.f32.mrf.mxu0
    %v1160 = vadd.f32 %v1108, %v1159
    %v1161 = vpop.f32.mrf.mxu0
    %v1162 = vpop.f32.mrf.mxu0
    %v1163 = vadd.f32 %v1108, %v1162
    %v1164 = vpop.f32.mrf.mxu0
    %1165 = vdwg.mxu0
    %v1166 = vmul.f32 %v1160, 1.702
    %v1167 = vmul.f32 %v1163, 1.702
    %v1168 = vxor.u32 %v1166, 2147483648
    %v1169 = vxor.u32 %v1167, 2147483648
    %v1170 = vmul.f32 %v1168, 1.442695
    %v1171 = vpow.pop %v1170
    %v1172 = vmul.f32 %v1169, 1.442695
    %v1173 = vpow.pop %v1172
    %v1174 = vadd.f32 %v1171, 1.0
    %v1175 = vadd.f32 %v1173, 1.0
    %v1176 = vrcp.pop %v1174
    %v1177 = vmul.f32 1.0, %v1176
    %v1178 = vrcp.pop %v1175
    %v1179 = vmul.f32 1.0, %v1178
    %v1180 = vmul.f32 %v1160, %v1177
    %v1181 = vmul.f32 %v1163, %v1179
    %v1182 = vld [vmem:[%s7] sm:$0xf]
    %v1183 = vld [vmem:[%s7 + $0x4] sm:$0xf]
    %v1184 = vld [vmem:[%s7 + $0x8] sm:$0xf]
    %v1185 = vld [vmem:[%s7 + $0xc] sm:$0xf]
    %v1186 = vld [vmem:[%s7 + $0x10] sm:$0xf]
    %v1187 = vld [vmem:[%s7 + $0x14] sm:$0xf]
    %v1188 = vld [vmem:[%s7 + $0x18] sm:$0xf]
    %v1189 = vld [vmem:[%s7 + $0x1c] sm:$0xf]
    %v1190 = vpack.c.bf16 %v1181, %v1180
    %v1199 = vunpack.c.l.b16 %v1182
    %v1200 = vunpack.c.l.b16 %v1183
    %v1201 = vunpack.c.l.b16 %v1184
    %v1202 = vunpack.c.l.b16 %v1185
    %v1203 = vunpack.c.l.b16 %v1186
    %v1204 = vunpack.c.l.b16 %v1187
    %v1205 = vunpack.c.l.b16 %v1188
    %v1206 = vunpack.c.l.b16 %v1189
    %v1207 = vpack.c.b16 %v1200, %v1199
    %v1208 = vpack.c.b16 %v1202, %v1201
    %v1209 = vpack.c.b16 %v1204, %v1203
    %v1210 = vpack.c.b16 %v1206, %v1205
    %v1216 = vsel %vm147, %v1190, 0
    %1218 = vmatprep.subr.bf16.mxu0 0
    %1219 = vmatpush1.bf16.msra.mxu0 0
    %1220 = vmatprep.subr.bf16.mxu0 0
    %1221 = vmatpush1.bf16.msra.mxu0 0
    %1222 = vmatprep.subr.bf16.mxu0 0
    %1223 = vmatpush1.bf16.msra.mxu0 0
    %1224 = vmatprep.subr.bf16.mxu0 0
    %1225 = vmatpush1.bf16.msra.mxu0 0
    %1226 = vmatprep.subr.bf16.mxu0 0
    %1227 = vmatpush1.bf16.msra.mxu0 %v1210
    %1228 = vmatprep.subr.bf16.mxu0 0
    %1229 = vmatpush1.bf16.msra.mxu0 %v1209
    %1230 = vmatprep.subr.bf16.mxu0 0
    %1231 = vmatpush1.bf16.msra.mxu0 %v1208
    %1232 = vmatprep.subr.bf16.mxu0 0
    %1233 = vmatpush1.bf16.msra.mxu0 %v1207
    %1234 = vmatprep.subr.bf16.mxu0 0
    %1235 = vmatpush2.bf16.msra.mxu0 0
    %1236 = vmatprep.subr.bf16.mxu0 0
    %1237 = vmatpush2.bf16.msra.mxu0 0
    %1238 = vmatprep.subr.bf16.mxu0 0
    %1239 = vmatpush2.bf16.msra.mxu0 0
    %1240 = vmatprep.subr.bf16.mxu0 0
    %1241 = vmatpush2.bf16.msra.mxu0 0
    %1242 = vmatprep.subr.bf16.mxu0 0
    %1243 = vmatpush2.bf16.msra.mxu0 0
    %1244 = vmatprep.subr.bf16.mxu0 0
    %1245 = vmatpush2.bf16.msra.mxu0 0
    %1246 = vmatprep.subr.bf16.mxu0 0
    %1247 = vmatpush2.bf16.msra.mxu0 0
    %1248 = vmatprep.subr.bf16.mxu0 0
    %1249 = vmatpush2.bf16.msra.mxu0 0
    %1250 = vmatprep.mubr.bf16.mxu0 0
    %1251 = vmatmul.mubr.bf16.gmra.mxu0 %v1216
    %v1252 = vpop.f32.mrf.mxu0
    %v1253 = vadd.f32 0.0, %v1252
    %v1254 = vpop.f32.mrf.mxu0
    %v1255 = vpop.f32.mrf.mxu0
    %v1256 = vadd.f32 0.0, %v1255
    %v1257 = vpop.f32.mrf.mxu0
    %1258 = vdwg.mxu0
    %v1259 = vadd.f32 %v1056, %v1253
    %v1260 = vadd.f32 %v1057, %v1256
    %v1261 = vld [vmem:[%s8 + $0x8] sm:$0x1]
    %v1262 = vlaneseq
    %v1263 = vshrl.u32 %v1262, 7
    %v1264 = vsub.s32 0, %v1263
    %v1265 = vrot.slane %v1261, %v1264
    %v1266 = vadd.f32 %v1259, %v1265
    %v1267 = vadd.f32 %v1260, %v1265
    %s1268 = scalar_lea.vmem %s8, 16
    %v1269 = vld [vmem:[%s1268] sm:$0x1]
    %v1270 = vld [vmem:[%s1268 + $0x1] sm:$0x1]
    %v1271 = vsel %vm194, %v1266, 0.0
    %1272 = vadd.xlane.f32.xlu0 %v1271
    %v1273 = vpop.xlane.xlu0 %1272
    %v1274 = vsel %vm194, %v1267, 0.0
    %1275 = vadd.xlane.f32.xlu0 %v1274
    %v1276 = vpop.xlane.xlu0 %1275
    %v1277 = vmul.f32 %v1273, %v201
    %v1278 = vmul.f32 %v1276, %v201
    %v1279 = vsub.f32 %v1266, %v1277
    %v1280 = vsub.f32 %v1267, %v1278
    %v1281 = vmul.f32 %v1279, %v1279
    %v1282 = vmul.f32 %v1280, %v1280
    %v1283 = vsel %vm194, %v1281, 0.0
    %1284 = vadd.xlane.f32.xlu0 %v1283
    %v1285 = vpop.xlane.xlu0 %1284
    %v1286 = vsel %vm194, %v1282, 0.0
    %1287 = vadd.xlane.f32.xlu0 %v1286
    %v1288 = vpop.xlane.xlu0 %1287
    %v1289 = vmul.f32 %v1285, %v201
    %v1290 = vmul.f32 %v1288, %v201
    %v1291 = vadd.f32 %v1289, 1e-05
    %v1292 = vadd.f32 %v1290, 1e-05
    %v1293 = vrsqrt.pop %v1291
    %v1294 = vrsqrt.pop %v1292
    %v1295 = vmul.f32 %v1279, %v1293
    %v1296 = vmul.f32 %v1280, %v1294
    %v1297 = vlaneseq
    %v1298 = vshrl.u32 %v1297, 7
    %v1299 = vsub.s32 0, %v1298
    %v1300 = vrot.slane %v1269, %v1299
    %v1301 = vmul.f32 %v1295, %v1300
    %v1302 = vmul.f32 %v1296, %v1300
    %v1303 = vlaneseq
    %v1304 = vshrl.u32 %v1303, 7
    %v1305 = vsub.s32 0, %v1304
    %v1306 = vrot.slane %v1270, %v1305
    %v1307 = vadd.f32 %v1301, %v1306
    %v1308 = vadd.f32 %v1302, %v1306
    %s1309 = scalar_lea.vmem %s4, 16
    %v1310 = vld [vmem:[%s1309] sm:$0xf]
    %v1311 = vld [vmem:[%s1309 + $0x4] sm:$0xf]
    %v1312 = vld [vmem:[%s1309 + $0x8] sm:$0xf]
    %v1313 = vld [vmem:[%s1309 + $0xc] sm:$0xf]
    %v1314 = vpack.c.bf16 %v1308, %v1307
    %v1319 = vunpack.c.l.b16 %v1310
    %v1320 = vunpack.c.l.b16 %v1311
    %v1321 = vunpack.c.l.b16 %v1312
    %v1322 = vunpack.c.l.b16 %v1313
    %v1323 = vpack.c.b16 %v1320, %v1319
    %v1324 = vpack.c.b16 %v1322, %v1321
    %v1328 = vsel %vm194, %v1314, 0
    %1330 = vmatprep.subr.bf16.mxu0 0
    %1331 = vmatpush1.bf16.msra.mxu0 0
    %1332 = vmatprep.subr.bf16.mxu0 0
    %1333 = vmatpush1.bf16.msra.mxu0 0
    %1334 = vmatprep.subr.bf16.mxu0 0
    %1335 = vmatpush1.bf16.msra.mxu0 0
    %1336 = vmatprep.subr.bf16.mxu0 0
    %1337 = vmatpush1.bf16.msra.mxu0 0
    %1338 = vmatprep.subr.bf16.mxu0 0
    %1339 = vmatpush1.bf16.msra.mxu0 0
    %1340 = vmatprep.subr.bf16.mxu0 0
    %1341 = vmatpush1.bf16.msra.mxu0 0
    %1342 = vmatprep.subr.bf16.mxu0 0
    %1343 = vmatpush1.bf16.msra.mxu0 %v1324
    %1344 = vmatprep.subr.bf16.mxu0 0
    %1345 = vmatpush1.bf16.msra.mxu0 %v1323
    %1346 = vmatprep.subr.bf16.mxu0 0
    %1347 = vmatpush2.bf16.msra.mxu0 0
    %1348 = vmatprep.subr.bf16.mxu0 0
    %1349 = vmatpush2.bf16.msra.mxu0 0
    %1350 = vmatprep.subr.bf16.mxu0 0
    %1351 = vmatpush2.bf16.msra.mxu0 0
    %1352 = vmatprep.subr.bf16.mxu0 0
    %1353 = vmatpush2.bf16.msra.mxu0 0
    %1354 = vmatprep.subr.bf16.mxu0 0
    %1355 = vmatpush2.bf16.msra.mxu0 0
    %1356 = vmatprep.subr.bf16.mxu0 0
    %1357 = vmatpush2.bf16.msra.mxu0 0
    %1358 = vmatprep.subr.bf16.mxu0 0
    %1359 = vmatpush2.bf16.msra.mxu0 0
    %1360 = vmatprep.subr.bf16.mxu0 0
    %1361 = vmatpush2.bf16.msra.mxu0 0
    %1362 = vmatprep.mubr.bf16.mxu0 0
    %1363 = vmatmul.mubr.bf16.gmra.mxu0 %v1328
    %v1364 = vpop.f32.mrf.mxu0
    %v1365 = vadd.f32 0.0, %v1364
    %v1366 = vpop.f32.mrf.mxu0
    %v1367 = vpop.f32.mrf.mxu0
    %v1368 = vadd.f32 0.0, %v1367
    %v1369 = vpop.f32.mrf.mxu0
    %1370 = vdwg.mxu0
    %v1371 = vld [vmem:[%s1268 + $0x4] sm:$0x1]
    %v1372 = vlaneseq
    %v1373 = vshrl.u32 %v1372, 7
    %v1374 = vsub.s32 0, %v1373
    %v1375 = vrot.slane %v1371, %v1374
    %v1376 = vadd.f32 %v1365, %v1375
    %v1377 = vadd.f32 %v1368, %v1375
    %v1378 = vmul.f32 %v1376, 0.35355338
    %v1379 = vmul.f32 %v1377, 0.35355338
    %v1380 = vld [vmem:[%s1268 + $0x5] sm:$0x1]
    %v1381 = vlaneseq
    %v1382 = vshrl.u32 %v1381, 7
    %v1383 = vsub.s32 0, %v1382
    %v1384 = vrot.slane %v1380, %v1383
    %1386 = vrot.lane.b32.xlu0 %v1384, 32
    %v1387 = vpop.permute.xlu0 %1386
    %v1389 = vadd.f32 %v1365, %v1387
    %v1390 = vadd.f32 %v1368, %v1387
    %v1391 = vld [vmem:[%s1268 + $0x6] sm:$0x1]
    %v1392 = vlaneseq
    %v1393 = vshrl.u32 %v1392, 7
    %v1394 = vsub.s32 0, %v1393
    %v1395 = vrot.slane %v1391, %v1394
    %1397 = vrot.lane.b32.xlu0 %v1395, 64
    %v1398 = vpop.permute.xlu0 %1397
    %v1400 = vadd.f32 %v1365, %v1398
    %v1401 = vadd.f32 %v1368, %v1398
    %1404 = vrot.lane.b32.xlu0 %v1378, 120
    %v1405 = vpop.permute.xlu0 %1404
    %1406 = vrot.lane.b32.xlu0 %v1379, 120
    %v1407 = vpop.permute.xlu0 %1406
    %1410 = vrot.lane.b32.xlu0 %v1378, 112
    %v1411 = vpop.permute.xlu0 %1410
    %1412 = vrot.lane.b32.xlu0 %v1379, 112
    %v1413 = vpop.permute.xlu0 %1412
    %1416 = vrot.lane.b32.xlu0 %v1378, 104
    %v1417 = vpop.permute.xlu0 %1416
    %1418 = vrot.lane.b32.xlu0 %v1379, 104
    %v1419 = vpop.permute.xlu0 %1418
    %1424 = vrot.lane.b32.xlu0 %v1389, 120
    %v1425 = vpop.permute.xlu0 %1424
    %1426 = vrot.lane.b32.xlu0 %v1390, 120
    %v1427 = vpop.permute.xlu0 %1426
    %1430 = vrot.lane.b32.xlu0 %v1389, 112
    %v1431 = vpop.permute.xlu0 %1430
    %1432 = vrot.lane.b32.xlu0 %v1390, 112
    %v1433 = vpop.permute.xlu0 %1432
    %1436 = vrot.lane.b32.xlu0 %v1389, 104
    %v1437 = vpop.permute.xlu0 %1436
    %1438 = vrot.lane.b32.xlu0 %v1390, 104
    %v1439 = vpop.permute.xlu0 %1438
    %1444 = vrot.lane.b32.xlu0 %v1400, 120
    %v1445 = vpop.permute.xlu0 %1444
    %1446 = vrot.lane.b32.xlu0 %v1401, 120
    %v1447 = vpop.permute.xlu0 %1446
    %1450 = vrot.lane.b32.xlu0 %v1400, 112
    %v1451 = vpop.permute.xlu0 %1450
    %1452 = vrot.lane.b32.xlu0 %v1401, 112
    %v1453 = vpop.permute.xlu0 %1452
    %1456 = vrot.lane.b32.xlu0 %v1400, 104
    %v1457 = vpop.permute.xlu0 %1456
    %1458 = vrot.lane.b32.xlu0 %v1401, 104
    %v1459 = vpop.permute.xlu0 %1458
    %v1462 = vpack.c.bf16 %v1379, %v1378
    %v1463 = vpack.c.bf16 %v1407, %v1405
    %v1464 = vpack.c.bf16 %v1413, %v1411
    %v1465 = vpack.c.bf16 %v1419, %v1417
    %v1466 = vpack.c.bf16 %v1390, %v1389
    %v1467 = vpack.c.bf16 %v1427, %v1425
    %v1468 = vpack.c.bf16 %v1433, %v1431
    %v1469 = vpack.c.bf16 %v1439, %v1437
    %1471 = vrot.lane.b32.xlu0 %v1466, 96
    %v1472 = vpop.permute.xlu0 %1471
    %v1474 = vsel %vm470, %v1462, 0
    %v1477 = vsel %vm470, %v1472, 0
    %1479 = vmatprep.subr.bf16.mxu0 0
    %1480 = vmatpush1.bf16.xpose.msra.mxu0 0
    %1481 = vmatprep.subr.bf16.mxu0 0
    %1482 = vmatpush1.bf16.xpose.msra.mxu0 0
    %1483 = vmatprep.subr.bf16.mxu0 0
    %1484 = vmatpush1.bf16.xpose.msra.mxu0 0
    %1485 = vmatprep.subr.bf16.mxu0 0
    %1486 = vmatpush1.bf16.xpose.msra.mxu0 0
    %1487 = vmatprep.subr.bf16.mxu0 0
    %1488 = vmatpush1.bf16.xpose.msra.mxu0 0
    %1489 = vmatprep.subr.bf16.mxu0 0
    %1490 = vmatpush1.bf16.xpose.msra.mxu0 0
    %1491 = vmatprep.subr.bf16.mxu0 0
    %1492 = vmatpush1.bf16.xpose.msra.mxu0 0
    %1493 = vmatprep.subr.bf16.mxu0 0
    %1494 = vmatpush1.bf16.xpose.msra.mxu0 %v1477
    %1495 = vmatprep.subr.bf16.mxu0 0
    %1496 = vmatpush2.bf16.xpose.msra.mxu0 0
    %1497 = vmatprep.subr.bf16.mxu0 0
    %1498 = vmatpush2.bf16.xpose.msra.mxu0 0
    %1499 = vmatprep.subr.bf16.mxu0 0
    %1500 = vmatpush2.bf16.xpose.msra.mxu0 0
    %1501 = vmatprep.subr.bf16.mxu0 0
    %1502 = vmatpush2.bf16.xpose.msra.mxu0 0
    %1503 = vmatprep.subr.bf16.mxu0 0
    %1504 = vmatpush2.bf16.xpose.msra.mxu0 0
    %1505 = vmatprep.subr.bf16.mxu0 0
    %1506 = vmatpush2.bf16.xpose.msra.mxu0 0
    %1507 = vmatprep.subr.bf16.mxu0 0
    %1508 = vmatpush2.bf16.xpose.msra.mxu0 0
    %1509 = vmatprep.subr.bf16.mxu0 0
    %1510 = vmatpush2.bf16.xpose.msra.mxu0 0
    %1511 = vmatprep.mubr.bf16.mxu0 0
    %1512 = vmatmul.mubr.bf16.gmra.mxu0 %v1474
    %v1513 = vpop.f32.mrf.mxu0
    %v1514 = vadd.f32 %v265, %v1513
    %v1515 = vpop.f32.mrf.mxu0
    %v1516 = vpop.f32.mrf.mxu0
    %v1517 = vadd.f32 %v266, %v1516
    %v1518 = vpop.f32.mrf.mxu0
    %1519 = vdwg.mxu0
    %1521 = vrot.lane.b32.xlu0 %v1467, 96
    %v1522 = vpop.permute.xlu0 %1521
    %v1524 = vsel %vm470, %v1463, 0
    %v1527 = vsel %vm470, %v1522, 0
    %1529 = vmatprep.subr.bf16.mxu0 0
    %1530 = vmatpush1.bf16.xpose.msra.mxu0 0
    %1531 = vmatprep.subr.bf16.mxu0 0
    %1532 = vmatpush1.bf16.xpose.msra.mxu0 0
    %1533 = vmatprep.subr.bf16.mxu0 0
    %1534 = vmatpush1.bf16.xpose.msra.mxu0 0
    %1535 = vmatprep.subr.bf16.mxu0 0
    %1536 = vmatpush1.bf16.xpose.msra.mxu0 0
    %1537 = vmatprep.subr.bf16.mxu0 0
    %1538 = vmatpush1.bf16.xpose.msra.mxu0 0
    %1539 = vmatprep.subr.bf16.mxu0 0
    %1540 = vmatpush1.bf16.xpose.msra.mxu0 0
    %1541 = vmatprep.subr.bf16.mxu0 0
    %1542 = vmatpush1.bf16.xpose.msra.mxu0 0
    %1543 = vmatprep.subr.bf16.mxu0 0
    %1544 = vmatpush1.bf16.xpose.msra.mxu0 %v1527
    %1545 = vmatprep.subr.bf16.mxu0 0
    %1546 = vmatpush2.bf16.xpose.msra.mxu0 0
    %1547 = vmatprep.subr.bf16.mxu0 0
    %1548 = vmatpush2.bf16.xpose.msra.mxu0 0
    %1549 = vmatprep.subr.bf16.mxu0 0
    %1550 = vmatpush2.bf16.xpose.msra.mxu0 0
    %1551 = vmatprep.subr.bf16.mxu0 0
    %1552 = vmatpush2.bf16.xpose.msra.mxu0 0
    %1553 = vmatprep.subr.bf16.mxu0 0
    %1554 = vmatpush2.bf16.xpose.msra.mxu0 0
    %1555 = vmatprep.subr.bf16.mxu0 0
    %1556 = vmatpush2.bf16.xpose.msra.mxu0 0
    %1557 = vmatprep.subr.bf16.mxu0 0
    %1558 = vmatpush2.bf16.xpose.msra.mxu0 0
    %1559 = vmatprep.subr.bf16.mxu0 0
    %1560 = vmatpush2.bf16.xpose.msra.mxu0 0
    %1561 = vmatprep.mubr.bf16.mxu0 0
    %1562 = vmatmul.mubr.bf16.gmra.mxu0 %v1524
    %v1563 = vpop.f32.mrf.mxu0
    %v1564 = vadd.f32 %v265, %v1563
    %v1565 = vpop.f32.mrf.mxu0
    %v1566 = vpop.f32.mrf.mxu0
    %v1567 = vadd.f32 %v266, %v1566
    %v1568 = vpop.f32.mrf.mxu0
    %1569 = vdwg.mxu0
    %1571 = vrot.lane.b32.xlu0 %v1468, 96
    %v1572 = vpop.permute.xlu0 %1571
    %v1574 = vsel %vm470, %v1464, 0
    %v1577 = vsel %vm470, %v1572, 0
    %1579 = vmatprep.subr.bf16.mxu0 0
    %1580 = vmatpush1.bf16.xpose.msra.mxu0 0
    %1581 = vmatprep.subr.bf16.mxu0 0
    %1582 = vmatpush1.bf16.xpose.msra.mxu0 0
    %1583 = vmatprep.subr.bf16.mxu0 0
    %1584 = vmatpush1.bf16.xpose.msra.mxu0 0
    %1585 = vmatprep.subr.bf16.mxu0 0
    %1586 = vmatpush1.bf16.xpose.msra.mxu0 0
    %1587 = vmatprep.subr.bf16.mxu0 0
    %1588 = vmatpush1.bf16.xpose.msra.mxu0 0
    %1589 = vmatprep.subr.bf16.mxu0 0
    %1590 = vmatpush1.bf16.xpose.msra.mxu0 0
    %1591 = vmatprep.subr.bf16.mxu0 0
    %1592 = vmatpush1.bf16.xpose.msra.mxu0 0
    %1593 = vmatprep.subr.bf16.mxu0 0
    %1594 = vmatpush1.bf16.xpose.msra.mxu0 %v1577
    %1595 = vmatprep.subr.bf16.mxu0 0
    %1596 = vmatpush2.bf16.xpose.msra.mxu0 0
    %1597 = vmatprep.subr.bf16.mxu0 0
    %1598 = vmatpush2.bf16.xpose.msra.mxu0 0
    %1599 = vmatprep.subr.bf16.mxu0 0
    %1600 = vmatpush2.bf16.xpose.msra.mxu0 0
    %1601 = vmatprep.subr.bf16.mxu0 0
    %1602 = vmatpush2.bf16.xpose.msra.mxu0 0
    %1603 = vmatprep.subr.bf16.mxu0 0
    %1604 = vmatpush2.bf16.xpose.msra.mxu0 0
    %1605 = vmatprep.subr.bf16.mxu0 0
    %1606 = vmatpush2.bf16.xpose.msra.mxu0 0
    %1607 = vmatprep.subr.bf16.mxu0 0
    %1608 = vmatpush2.bf16.xpose.msra.mxu0 0
    %1609 = vmatprep.subr.bf16.mxu0 0
    %1610 = vmatpush2.bf16.xpose.msra.mxu0 0
    %1611 = vmatprep.mubr.bf16.mxu0 0
    %1612 = vmatmul.mubr.bf16.gmra.mxu0 %v1574
    %v1613 = vpop.f32.mrf.mxu0
    %v1614 = vadd.f32 %v265, %v1613
    %v1615 = vpop.f32.mrf.mxu0
    %v1616 = vpop.f32.mrf.mxu0
    %v1617 = vadd.f32 %v266, %v1616
    %v1618 = vpop.f32.mrf.mxu0
    %1619 = vdwg.mxu0
    %1621 = vrot.lane.b32.xlu0 %v1469, 96
    %v1622 = vpop.permute.xlu0 %1621
    %v1624 = vsel %vm470, %v1465, 0
    %v1627 = vsel %vm470, %v1622, 0
    %1629 = vmatprep.subr.bf16.mxu0 0
    %1630 = vmatpush1.bf16.xpose.msra.mxu0 0
    %1631 = vmatprep.subr.bf16.mxu0 0
    %1632 = vmatpush1.bf16.xpose.msra.mxu0 0
    %1633 = vmatprep.subr.bf16.mxu0 0
    %1634 = vmatpush1.bf16.xpose.msra.mxu0 0
    %1635 = vmatprep.subr.bf16.mxu0 0
    %1636 = vmatpush1.bf16.xpose.msra.mxu0 0
    %1637 = vmatprep.subr.bf16.mxu0 0
    %1638 = vmatpush1.bf16.xpose.msra.mxu0 0
    %1639 = vmatprep.subr.bf16.mxu0 0
    %1640 = vmatpush1.bf16.xpose.msra.mxu0 0
    %1641 = vmatprep.subr.bf16.mxu0 0
    %1642 = vmatpush1.bf16.xpose.msra.mxu0 0
    %1643 = vmatprep.subr.bf16.mxu0 0
    %1644 = vmatpush1.bf16.xpose.msra.mxu0 %v1627
    %1645 = vmatprep.subr.bf16.mxu0 0
    %1646 = vmatpush2.bf16.xpose.msra.mxu0 0
    %1647 = vmatprep.subr.bf16.mxu0 0
    %1648 = vmatpush2.bf16.xpose.msra.mxu0 0
    %1649 = vmatprep.subr.bf16.mxu0 0
    %1650 = vmatpush2.bf16.xpose.msra.mxu0 0
    %1651 = vmatprep.subr.bf16.mxu0 0
    %1652 = vmatpush2.bf16.xpose.msra.mxu0 0
    %1653 = vmatprep.subr.bf16.mxu0 0
    %1654 = vmatpush2.bf16.xpose.msra.mxu0 0
    %1655 = vmatprep.subr.bf16.mxu0 0
    %1656 = vmatpush2.bf16.xpose.msra.mxu0 0
    %1657 = vmatprep.subr.bf16.mxu0 0
    %1658 = vmatpush2.bf16.xpose.msra.mxu0 0
    %1659 = vmatprep.subr.bf16.mxu0 0
    %1660 = vmatpush2.bf16.xpose.msra.mxu0 0
    %1661 = vmatprep.mubr.bf16.mxu0 0
    %1662 = vmatmul.mubr.bf16.gmra.mxu0 %v1624
    %v1663 = vpop.f32.mrf.mxu0
    %v1664 = vadd.f32 %v265, %v1663
    %v1665 = vpop.f32.mrf.mxu0
    %v1666 = vpop.f32.mrf.mxu0
    %v1667 = vadd.f32 %v266, %v1666
    %v1668 = vpop.f32.mrf.mxu0
    %1669 = vdwg.mxu0
    %v1670 = vsel %vm668, %v1514, -inf
    %1671 = vmax.xlane.f32.xlu0 %v1670
    %v1672 = vpop.xlane.xlu0 %1671
    %v1673 = vsel %vm668, %v1517, -inf
    %1674 = vmax.xlane.f32.xlu0 %v1673
    %v1675 = vpop.xlane.xlu0 %1674
    %v1676 = vsel %vm668, %v1564, -inf
    %1677 = vmax.xlane.f32.xlu0 %v1676
    %v1678 = vpop.xlane.xlu0 %1677
    %v1679 = vsel %vm668, %v1567, -inf
    %1680 = vmax.xlane.f32.xlu0 %v1679
    %v1681 = vpop.xlane.xlu0 %1680
    %v1682 = vsel %vm668, %v1614, -inf
    %1683 = vmax.xlane.f32.xlu0 %v1682
    %v1684 = vpop.xlane.xlu0 %1683
    %v1685 = vsel %vm668, %v1617, -inf
    %1686 = vmax.xlane.f32.xlu0 %v1685
    %v1687 = vpop.xlane.xlu0 %1686
    %v1688 = vsel %vm668, %v1664, -inf
    %1689 = vmax.xlane.f32.xlu0 %v1688
    %v1690 = vpop.xlane.xlu0 %1689
    %v1691 = vsel %vm668, %v1667, -inf
    %1692 = vmax.xlane.f32.xlu0 %v1691
    %v1693 = vpop.xlane.xlu0 %1692
    %v1694 = vsub.f32 %v1514, %v1672
    %v1695 = vsub.f32 %v1517, %v1675
    %v1696 = vsub.f32 %v1564, %v1678
    %v1697 = vsub.f32 %v1567, %v1681
    %v1698 = vsub.f32 %v1614, %v1684
    %v1699 = vsub.f32 %v1617, %v1687
    %v1700 = vsub.f32 %v1664, %v1690
    %v1701 = vsub.f32 %v1667, %v1693
    %v1702 = vmul.f32 %v1694, 1.442695
    %v1703 = vpow.pop %v1702
    %v1704 = vmul.f32 %v1695, 1.442695
    %v1705 = vpow.pop %v1704
    %v1706 = vmul.f32 %v1696, 1.442695
    %v1707 = vpow.pop %v1706
    %v1708 = vmul.f32 %v1697, 1.442695
    %v1709 = vpow.pop %v1708
    %v1710 = vmul.f32 %v1698, 1.442695
    %v1711 = vpow.pop %v1710
    %v1712 = vmul.f32 %v1699, 1.442695
    %v1713 = vpow.pop %v1712
    %v1714 = vmul.f32 %v1700, 1.442695
    %v1715 = vpow.pop %v1714
    %v1716 = vmul.f32 %v1701, 1.442695
    %v1717 = vpow.pop %v1716
    %v1718 = vsel %vm668, %v1703, 0.0
    %1719 = vadd.xlane.f32.xlu0 %v1718
    %v1720 = vpop.xlane.xlu0 %1719
    %v1721 = vsel %vm668, %v1705, 0.0
    %1722 = vadd.xlane.f32.xlu0 %v1721
    %v1723 = vpop.xlane.xlu0 %1722
    %v1724 = vsel %vm668, %v1707, 0.0
    %1725 = vadd.xlane.f32.xlu0 %v1724
    %v1726 = vpop.xlane.xlu0 %1725
    %v1727 = vsel %vm668, %v1709, 0.0
    %1728 = vadd.xlane.f32.xlu0 %v1727
    %v1729 = vpop.xlane.xlu0 %1728
    %v1730 = vsel %vm668, %v1711, 0.0
    %1731 = vadd.xlane.f32.xlu0 %v1730
    %v1732 = vpop.xlane.xlu0 %1731
    %v1733 = vsel %vm668, %v1713, 0.0
    %1734 = vadd.xlane.f32.xlu0 %v1733
    %v1735 = vpop.xlane.xlu0 %1734
    %v1736 = vsel %vm668, %v1715, 0.0
    %1737 = vadd.xlane.f32.xlu0 %v1736
    %v1738 = vpop.xlane.xlu0 %1737
    %v1739 = vsel %vm668, %v1717, 0.0
    %1740 = vadd.xlane.f32.xlu0 %v1739
    %v1741 = vpop.xlane.xlu0 %1740
    %v1742 = vrcp.pop %v1720
    %v1743 = vrcp.pop %v1723
    %v1744 = vrcp.pop %v1726
    %v1745 = vrcp.pop %v1729
    %v1746 = vrcp.pop %v1732
    %v1747 = vrcp.pop %v1735
    %v1748 = vrcp.pop %v1738
    %v1749 = vrcp.pop %v1741
    %v1750 = vmul.f32 %v1703, %v1742
    %v1751 = vmul.f32 %v1705, %v1743
    %v1752 = vmul.f32 %v1707, %v1744
    %v1753 = vmul.f32 %v1709, %v1745
    %v1754 = vmul.f32 %v1711, %v1746
    %v1755 = vmul.f32 %v1713, %v1747
    %v1756 = vmul.f32 %v1715, %v1748
    %v1757 = vmul.f32 %v1717, %v1749
    %v1758 = vpack.c.bf16 %v1751, %v1750
    %v1759 = vpack.c.bf16 %v1753, %v1752
    %v1760 = vpack.c.bf16 %v1755, %v1754
    %v1761 = vpack.c.bf16 %v1757, %v1756
    %v1762 = vpack.c.bf16 %v1401, %v1400
    %v1763 = vpack.c.bf16 %v1447, %v1445
    %v1764 = vpack.c.bf16 %v1453, %v1451
    %v1765 = vpack.c.bf16 %v1459, %v1457
    %1767 = vrot.lane.b32.xlu0 %v1762, 64
    %v1768 = vpop.permute.xlu0 %1767
    %v1771 = vsel %vm668, %v1758, 0
    %1773 = vmatprep.subr.bf16.mxu0 0
    %1774 = vmatpush1.bf16.msra.mxu0 0
    %1775 = vmatprep.subr.bf16.mxu0 0
    %1776 = vmatpush1.bf16.msra.mxu0 0
    %1777 = vmatprep.subr.bf16.mxu0 0
    %1778 = vmatpush1.bf16.msra.mxu0 0
    %1779 = vmatprep.subr.bf16.mxu0 0
    %1780 = vmatpush1.bf16.msra.mxu0 0
    %1781 = vmatprep.subr.bf16.mxu0 0
    %1782 = vmatpush1.bf16.msra.mxu0 0
    %1783 = vmatprep.subr.bf16.mxu0 0
    %1784 = vmatpush1.bf16.msra.mxu0 0
    %1785 = vmatprep.subr.bf16.mxu0 0
    %1786 = vmatpush1.bf16.msra.mxu0 0
    %1787 = vmatprep.subr.bf16.mxu0 0
    %1788 = vmatpush1.bf16.msra.mxu0 %v1768
    %1789 = vmatprep.subr.bf16.mxu0 0
    %1790 = vmatpush2.bf16.msra.mxu0 0
    %1791 = vmatprep.subr.bf16.mxu0 0
    %1792 = vmatpush2.bf16.msra.mxu0 0
    %1793 = vmatprep.subr.bf16.mxu0 0
    %1794 = vmatpush2.bf16.msra.mxu0 0
    %1795 = vmatprep.subr.bf16.mxu0 0
    %1796 = vmatpush2.bf16.msra.mxu0 0
    %1797 = vmatprep.subr.bf16.mxu0 0
    %1798 = vmatpush2.bf16.msra.mxu0 0
    %1799 = vmatprep.subr.bf16.mxu0 0
    %1800 = vmatpush2.bf16.msra.mxu0 0
    %1801 = vmatprep.subr.bf16.mxu0 0
    %1802 = vmatpush2.bf16.msra.mxu0 0
    %1803 = vmatprep.subr.bf16.mxu0 0
    %1804 = vmatpush2.bf16.msra.mxu0 0
    %1805 = vmatprep.mubr.bf16.mxu0 0
    %1806 = vmatmul.mubr.bf16.gmra.mxu0 %v1771
    %v1807 = vpop.f32.mrf.mxu0
    %v1808 = vadd.f32 0.0, %v1807
    %v1809 = vpop.f32.mrf.mxu0
    %v1810 = vpop.f32.mrf.mxu0
    %v1811 = vadd.f32 0.0, %v1810
    %v1812 = vpop.f32.mrf.mxu0
    %1813 = vdwg.mxu0
    %1815 = vrot.lane.b32.xlu0 %v1763, 64
    %v1816 = vpop.permute.xlu0 %1815
    %v1819 = vsel %vm668, %v1759, 0
    %1821 = vmatprep.subr.bf16.mxu0 0
    %1822 = vmatpush1.bf16.msra.mxu0 0
    %1823 = vmatprep.subr.bf16.mxu0 0
    %1824 = vmatpush1.bf16.msra.mxu0 0
    %1825 = vmatprep.subr.bf16.mxu0 0
    %1826 = vmatpush1.bf16.msra.mxu0 0
    %1827 = vmatprep.subr.bf16.mxu0 0
    %1828 = vmatpush1.bf16.msra.mxu0 0
    %1829 = vmatprep.subr.bf16.mxu0 0
    %1830 = vmatpush1.bf16.msra.mxu0 0
    %1831 = vmatprep.subr.bf16.mxu0 0
    %1832 = vmatpush1.bf16.msra.mxu0 0
    %1833 = vmatprep.subr.bf16.mxu0 0
    %1834 = vmatpush1.bf16.msra.mxu0 0
    %1835 = vmatprep.subr.bf16.mxu0 0
    %1836 = vmatpush1.bf16.msra.mxu0 %v1816
    %1837 = vmatprep.subr.bf16.mxu0 0
    %1838 = vmatpush2.bf16.msra.mxu0 0
    %1839 = vmatprep.subr.bf16.mxu0 0
    %1840 = vmatpush2.bf16.msra.mxu0 0
    %1841 = vmatprep.subr.bf16.mxu0 0
    %1842 = vmatpush2.bf16.msra.mxu0 0
    %1843 = vmatprep.subr.bf16.mxu0 0
    %1844 = vmatpush2.bf16.msra.mxu0 0
    %1845 = vmatprep.subr.bf16.mxu0 0
    %1846 = vmatpush2.bf16.msra.mxu0 0
    %1847 = vmatprep.subr.bf16.mxu0 0
    %1848 = vmatpush2.bf16.msra.mxu0 0
    %1849 = vmatprep.subr.bf16.mxu0 0
    %1850 = vmatpush2.bf16.msra.mxu0 0
    %1851 = vmatprep.subr.bf16.mxu0 0
    %1852 = vmatpush2.bf16.msra.mxu0 0
    %1853 = vmatprep.mubr.bf16.mxu0 0
    %1854 = vmatmul.mubr.bf16.gmra.mxu0 %v1819
    %v1855 = vpop.f32.mrf.mxu0
    %v1856 = vadd.f32 0.0, %v1855
    %v1857 = vpop.f32.mrf.mxu0
    %v1858 = vpop.f32.mrf.mxu0
    %v1859 = vadd.f32 0.0, %v1858
    %v1860 = vpop.f32.mrf.mxu0
    %1861 = vdwg.mxu0
    %1863 = vrot.lane.b32.xlu0 %v1764, 64
    %v1864 = vpop.permute.xlu0 %1863
    %v1867 = vsel %vm668, %v1760, 0
    %1869 = vmatprep.subr.bf16.mxu0 0
    %1870 = vmatpush1.bf16.msra.mxu0 0
    %1871 = vmatprep.subr.bf16.mxu0 0
    %1872 = vmatpush1.bf16.msra.mxu0 0
    %1873 = vmatprep.subr.bf16.mxu0 0
    %1874 = vmatpush1.bf16.msra.mxu0 0
    %1875 = vmatprep.subr.bf16.mxu0 0
    %1876 = vmatpush1.bf16.msra.mxu0 0
    %1877 = vmatprep.subr.bf16.mxu0 0
    %1878 = vmatpush1.bf16.msra.mxu0 0
    %1879 = vmatprep.subr.bf16.mxu0 0
    %1880 = vmatpush1.bf16.msra.mxu0 0
    %1881 = vmatprep.subr.bf16.mxu0 0
    %1882 = vmatpush1.bf16.msra.mxu0 0
    %1883 = vmatprep.subr.bf16.mxu0 0
    %1884 = vmatpush1.bf16.msra.mxu0 %v1864
    %1885 = vmatprep.subr.bf16.mxu0 0
    %1886 = vmatpush2.bf16.msra.mxu0 0
    %1887 = vmatprep.subr.bf16.mxu0 0
    %1888 = vmatpush2.bf16.msra.mxu0 0
    %1889 = vmatprep.subr.bf16.mxu0 0
    %1890 = vmatpush2.bf16.msra.mxu0 0
    %1891 = vmatprep.subr.bf16.mxu0 0
    %1892 = vmatpush2.bf16.msra.mxu0 0
    %1893 = vmatprep.subr.bf16.mxu0 0
    %1894 = vmatpush2.bf16.msra.mxu0 0
    %1895 = vmatprep.subr.bf16.mxu0 0
    %1896 = vmatpush2.bf16.msra.mxu0 0
    %1897 = vmatprep.subr.bf16.mxu0 0
    %1898 = vmatpush2.bf16.msra.mxu0 0
    %1899 = vmatprep.subr.bf16.mxu0 0
    %1900 = vmatpush2.bf16.msra.mxu0 0
    %1901 = vmatprep.mubr.bf16.mxu0 0
    %1902 = vmatmul.mubr.bf16.gmra.mxu0 %v1867
    %v1903 = vpop.f32.mrf.mxu0
    %v1904 = vadd.f32 0.0, %v1903
    %v1905 = vpop.f32.mrf.mxu0
    %v1906 = vpop.f32.mrf.mxu0
    %v1907 = vadd.f32 0.0, %v1906
    %v1908 = vpop.f32.mrf.mxu0
    %1909 = vdwg.mxu0
    %1911 = vrot.lane.b32.xlu0 %v1765, 64
    %v1912 = vpop.permute.xlu0 %1911
    %v1915 = vsel %vm668, %v1761, 0
    %1917 = vmatprep.subr.bf16.mxu0 0
    %1918 = vmatpush1.bf16.msra.mxu0 0
    %1919 = vmatprep.subr.bf16.mxu0 0
    %1920 = vmatpush1.bf16.msra.mxu0 0
    %1921 = vmatprep.subr.bf16.mxu0 0
    %1922 = vmatpush1.bf16.msra.mxu0 0
    %1923 = vmatprep.subr.bf16.mxu0 0
    %1924 = vmatpush1.bf16.msra.mxu0 0
    %1925 = vmatprep.subr.bf16.mxu0 0
    %1926 = vmatpush1.bf16.msra.mxu0 0
    %1927 = vmatprep.subr.bf16.mxu0 0
    %1928 = vmatpush1.bf16.msra.mxu0 0
    %1929 = vmatprep.subr.bf16.mxu0 0
    %1930 = vmatpush1.bf16.msra.mxu0 0
    %1931 = vmatprep.subr.bf16.mxu0 0
    %1932 = vmatpush1.bf16.msra.mxu0 %v1912
    %1933 = vmatprep.subr.bf16.mxu0 0
    %1934 = vmatpush2.bf16.msra.mxu0 0
    %1935 = vmatprep.subr.bf16.mxu0 0
    %1936 = vmatpush2.bf16.msra.mxu0 0
    %1937 = vmatprep.subr.bf16.mxu0 0
    %1938 = vmatpush2.bf16.msra.mxu0 0
    %1939 = vmatprep.subr.bf16.mxu0 0
    %1940 = vmatpush2.bf16.msra.mxu0 0
    %1941 = vmatprep.subr.bf16.mxu0 0
    %1942 = vmatpush2.bf16.msra.mxu0 0
    %1943 = vmatprep.subr.bf16.mxu0 0
    %1944 = vmatpush2.bf16.msra.mxu0 0
    %1945 = vmatprep.subr.bf16.mxu0 0
    %1946 = vmatpush2.bf16.msra.mxu0 0
    %1947 = vmatprep.subr.bf16.mxu0 0
    %1948 = vmatpush2.bf16.msra.mxu0 0
    %1949 = vmatprep.mubr.bf16.mxu0 0
    %1950 = vmatmul.mubr.bf16.gmra.mxu0 %v1915
    %v1951 = vpop.f32.mrf.mxu0
    %v1952 = vadd.f32 0.0, %v1951
    %v1953 = vpop.f32.mrf.mxu0
    %v1954 = vpop.f32.mrf.mxu0
    %v1955 = vadd.f32 0.0, %v1954
    %v1956 = vpop.f32.mrf.mxu0
    %1957 = vdwg.mxu0
    %1960 = vrot.lane.b32.xlu0 %v1856, 8
    %v1961 = vpop.permute.xlu0 %1960
    %1962 = vrot.lane.b32.xlu0 %v1859, 8
    %v1963 = vpop.permute.xlu0 %1962
    %1968 = vrot.lane.b32.xlu0 %v1904, 16
    %v1969 = vpop.permute.xlu0 %1968
    %1970 = vrot.lane.b32.xlu0 %v1907, 16
    %v1971 = vpop.permute.xlu0 %1970
    %1976 = vrot.lane.b32.xlu0 %v1952, 24
    %v1977 = vpop.permute.xlu0 %1976
    %1978 = vrot.lane.b32.xlu0 %v1955, 24
    %v1979 = vpop.permute.xlu0 %1978
    %v1982 = vsel %vm470, %v1808, %v1961
    %v1983 = vsel %vm470, %v1811, %v1963
    %v1984 = vsel %vm668, %v1982, %v1969
    %v1985 = vsel %vm668, %v1983, %v1971
    %v1986 = vsel %vm985, %v1984, %v1977
    %v1987 = vsel %vm985, %v1985, %v1979
    %s1988 = scalar_lea.vmem %s5, 16
    %v1989 = vld [vmem:[%s1988] sm:$0xf]
    %v1990 = vld [vmem:[%s1988 + $0x4] sm:$0xf]
    %v1991 = vld [vmem:[%s1988 + $0x8] sm:$0xf]
    %v1992 = vld [vmem:[%s1988 + $0xc] sm:$0xf]
    %v1993 = vpack.c.bf16 %v1987, %v1986
    %v1998 = vunpack.c.l.b16 %v1989
    %v1999 = vunpack.c.l.b16 %v1990
    %v2000 = vunpack.c.l.b16 %v1991
    %v2001 = vunpack.c.l.b16 %v1992
    %v2002 = vpack.c.b16 %v1999, %v1998
    %v2003 = vpack.c.b16 %v2001, %v2000
    %v2007 = vsel %vm194, %v1993, 0
    %2009 = vmatprep.subr.bf16.mxu0 0
    %2010 = vmatpush1.bf16.msra.mxu0 0
    %2011 = vmatprep.subr.bf16.mxu0 0
    %2012 = vmatpush1.bf16.msra.mxu0 0
    %2013 = vmatprep.subr.bf16.mxu0 0
    %2014 = vmatpush1.bf16.msra.mxu0 0
    %2015 = vmatprep.subr.bf16.mxu0 0
    %2016 = vmatpush1.bf16.msra.mxu0 0
    %2017 = vmatprep.subr.bf16.mxu0 0
    %2018 = vmatpush1.bf16.msra.mxu0 0
    %2019 = vmatprep.subr.bf16.mxu0 0
    %2020 = vmatpush1.bf16.msra.mxu0 0
    %2021 = vmatprep.subr.bf16.mxu0 0
    %2022 = vmatpush1.bf16.msra.mxu0 %v2003
    %2023 = vmatprep.subr.bf16.mxu0 0
    %2024 = vmatpush1.bf16.msra.mxu0 %v2002
    %2025 = vmatprep.subr.bf16.mxu0 0
    %2026 = vmatpush2.bf16.msra.mxu0 0
    %2027 = vmatprep.subr.bf16.mxu0 0
    %2028 = vmatpush2.bf16.msra.mxu0 0
    %2029 = vmatprep.subr.bf16.mxu0 0
    %2030 = vmatpush2.bf16.msra.mxu0 0
    %2031 = vmatprep.subr.bf16.mxu0 0
    %2032 = vmatpush2.bf16.msra.mxu0 0
    %2033 = vmatprep.subr.bf16.mxu0 0
    %2034 = vmatpush2.bf16.msra.mxu0 0
    %2035 = vmatprep.subr.bf16.mxu0 0
    %2036 = vmatpush2.bf16.msra.mxu0 0
    %2037 = vmatprep.subr.bf16.mxu0 0
    %2038 = vmatpush2.bf16.msra.mxu0 0
    %2039 = vmatprep.subr.bf16.mxu0 0
    %2040 = vmatpush2.bf16.msra.mxu0 0
    %2041 = vmatprep.mubr.bf16.mxu0 0
    %2042 = vmatmul.mubr.bf16.gmra.mxu0 %v2007
    %v2043 = vpop.f32.mrf.mxu0
    %v2044 = vadd.f32 0.0, %v2043
    %v2045 = vpop.f32.mrf.mxu0
    %v2046 = vpop.f32.mrf.mxu0
    %v2047 = vadd.f32 0.0, %v2046
    %v2048 = vpop.f32.mrf.mxu0
    %2049 = vdwg.mxu0
    %v2050 = vadd.f32 %v1266, %v2044
    %v2051 = vadd.f32 %v1267, %v2047
    %v2052 = vld [vmem:[%s1268 + $0x7] sm:$0x1]
    %v2053 = vlaneseq
    %v2054 = vshrl.u32 %v2053, 7
    %v2055 = vsub.s32 0, %v2054
    %v2056 = vrot.slane %v2052, %v2055
    %v2057 = vadd.f32 %v2050, %v2056
    %v2058 = vadd.f32 %v2051, %v2056
    %v2059 = vld [vmem:[%s1268 + $0x2] sm:$0x1]
    %v2060 = vld [vmem:[%s1268 + $0x3] sm:$0x1]
    %v2061 = vsel %vm194, %v2057, 0.0
    %2062 = vadd.xlane.f32.xlu0 %v2061
    %v2063 = vpop.xlane.xlu0 %2062
    %v2064 = vsel %vm194, %v2058, 0.0
    %2065 = vadd.xlane.f32.xlu0 %v2064
    %v2066 = vpop.xlane.xlu0 %2065
    %v2067 = vmul.f32 %v2063, %v201
    %v2068 = vmul.f32 %v2066, %v201
    %v2069 = vsub.f32 %v2057, %v2067
    %v2070 = vsub.f32 %v2058, %v2068
    %v2071 = vmul.f32 %v2069, %v2069
    %v2072 = vmul.f32 %v2070, %v2070
    %v2073 = vsel %vm194, %v2071, 0.0
    %2074 = vadd.xlane.f32.xlu0 %v2073
    %v2075 = vpop.xlane.xlu0 %2074
    %v2076 = vsel %vm194, %v2072, 0.0
    %2077 = vadd.xlane.f32.xlu0 %v2076
    %v2078 = vpop.xlane.xlu0 %2077
    %v2079 = vmul.f32 %v2075, %v201
    %v2080 = vmul.f32 %v2078, %v201
    %v2081 = vadd.f32 %v2079, 1e-05
    %v2082 = vadd.f32 %v2080, 1e-05
    %v2083 = vrsqrt.pop %v2081
    %v2084 = vrsqrt.pop %v2082
    %v2085 = vmul.f32 %v2069, %v2083
    %v2086 = vmul.f32 %v2070, %v2084
    %v2087 = vlaneseq
    %v2088 = vshrl.u32 %v2087, 7
    %v2089 = vsub.s32 0, %v2088
    %v2090 = vrot.slane %v2059, %v2089
    %v2091 = vmul.f32 %v2085, %v2090
    %v2092 = vmul.f32 %v2086, %v2090
    %v2093 = vlaneseq
    %v2094 = vshrl.u32 %v2093, 7
    %v2095 = vsub.s32 0, %v2094
    %v2096 = vrot.slane %v2060, %v2095
    %v2097 = vadd.f32 %v2091, %v2096
    %v2098 = vadd.f32 %v2092, %v2096
    %s2099 = scalar_lea.vmem %s6, 16
    %v2100 = vld [vmem:[%s2099] sm:$0xf]
    %v2101 = vld [vmem:[%s2099 + $0x4] sm:$0xf]
    %v2102 = vld [vmem:[%s2099 + $0x8] sm:$0xf]
    %v2103 = vld [vmem:[%s2099 + $0xc] sm:$0xf]
    %v2104 = vpack.c.bf16 %v2098, %v2097
    %s2105 = scalar_lea.vmem %s9, 1
    %v2106 = vld [vmem:[%s2105] sm:$0x1]
    %v2108 = vlaneseq
    %v2109 = vshrl.u32 %v2108, 7
    %v2110 = vsub.s32 0, %v2109
    %v2111 = vrot.slane %v2106, %v2110
    %v2117 = vunpack.c.l.b16 %v2100
    %v2118 = vunpack.c.l.b16 %v2101
    %v2119 = vunpack.c.l.b16 %v2102
    %v2120 = vunpack.c.l.b16 %v2103
    %v2121 = vpack.c.b16 %v2118, %v2117
    %v2122 = vpack.c.b16 %v2120, %v2119
    %v2126 = vsel %vm194, %v2104, 0
    %2128 = vmatprep.subr.bf16.mxu0 0
    %2129 = vmatpush1.bf16.msra.mxu0 0
    %2130 = vmatprep.subr.bf16.mxu0 0
    %2131 = vmatpush1.bf16.msra.mxu0 0
    %2132 = vmatprep.subr.bf16.mxu0 0
    %2133 = vmatpush1.bf16.msra.mxu0 0
    %2134 = vmatprep.subr.bf16.mxu0 0
    %2135 = vmatpush1.bf16.msra.mxu0 0
    %2136 = vmatprep.subr.bf16.mxu0 0
    %2137 = vmatpush1.bf16.msra.mxu0 0
    %2138 = vmatprep.subr.bf16.mxu0 0
    %2139 = vmatpush1.bf16.msra.mxu0 0
    %2140 = vmatprep.subr.bf16.mxu0 0
    %2141 = vmatpush1.bf16.msra.mxu0 %v2122
    %2142 = vmatprep.subr.bf16.mxu0 0
    %2143 = vmatpush1.bf16.msra.mxu0 %v2121
    %2144 = vmatprep.subr.bf16.mxu0 0
    %2145 = vmatpush2.bf16.msra.mxu0 0
    %2146 = vmatprep.subr.bf16.mxu0 0
    %2147 = vmatpush2.bf16.msra.mxu0 0
    %2148 = vmatprep.subr.bf16.mxu0 0
    %2149 = vmatpush2.bf16.msra.mxu0 0
    %2150 = vmatprep.subr.bf16.mxu0 0
    %2151 = vmatpush2.bf16.msra.mxu0 0
    %2152 = vmatprep.subr.bf16.mxu0 0
    %2153 = vmatpush2.bf16.msra.mxu0 0
    %2154 = vmatprep.subr.bf16.mxu0 0
    %2155 = vmatpush2.bf16.msra.mxu0 0
    %2156 = vmatprep.subr.bf16.mxu0 0
    %2157 = vmatpush2.bf16.msra.mxu0 0
    %2158 = vmatprep.subr.bf16.mxu0 0
    %2159 = vmatpush2.bf16.msra.mxu0 0
    %2160 = vmatprep.mubr.bf16.mxu0 0
    %2161 = vmatmul.mubr.bf16.gmra.mxu0 %v2126
    %v2162 = vpop.f32.mrf.mxu0
    %v2163 = vadd.f32 %v2111, %v2162
    %v2164 = vpop.f32.mrf.mxu0
    %v2165 = vpop.f32.mrf.mxu0
    %v2166 = vadd.f32 %v2111, %v2165
    %v2167 = vpop.f32.mrf.mxu0
    %2168 = vdwg.mxu0
    %v2169 = vmul.f32 %v2163, 1.702
    %v2170 = vmul.f32 %v2166, 1.702
    %v2171 = vxor.u32 %v2169, 2147483648
    %v2172 = vxor.u32 %v2170, 2147483648
    %v2173 = vmul.f32 %v2171, 1.442695
    %v2174 = vpow.pop %v2173
    %v2175 = vmul.f32 %v2172, 1.442695
    %v2176 = vpow.pop %v2175
    %v2177 = vadd.f32 %v2174, 1.0
    %v2178 = vadd.f32 %v2176, 1.0
    %v2179 = vrcp.pop %v2177
    %v2180 = vmul.f32 1.0, %v2179
    %v2181 = vrcp.pop %v2178
    %v2182 = vmul.f32 1.0, %v2181
    %v2183 = vmul.f32 %v2163, %v2180
    %v2184 = vmul.f32 %v2166, %v2182
    %s2185 = scalar_lea.vmem %s7, 32
    %v2186 = vld [vmem:[%s2185] sm:$0xf]
    %v2187 = vld [vmem:[%s2185 + $0x4] sm:$0xf]
    %v2188 = vld [vmem:[%s2185 + $0x8] sm:$0xf]
    %v2189 = vld [vmem:[%s2185 + $0xc] sm:$0xf]
    %v2190 = vld [vmem:[%s2185 + $0x10] sm:$0xf]
    %v2191 = vld [vmem:[%s2185 + $0x14] sm:$0xf]
    %v2192 = vld [vmem:[%s2185 + $0x18] sm:$0xf]
    %v2193 = vld [vmem:[%s2185 + $0x1c] sm:$0xf]
    %v2194 = vpack.c.bf16 %v2184, %v2183
    %v2203 = vunpack.c.l.b16 %v2186
    %v2204 = vunpack.c.l.b16 %v2187
    %v2205 = vunpack.c.l.b16 %v2188
    %v2206 = vunpack.c.l.b16 %v2189
    %v2207 = vunpack.c.l.b16 %v2190
    %v2208 = vunpack.c.l.b16 %v2191
    %v2209 = vunpack.c.l.b16 %v2192
    %v2210 = vunpack.c.l.b16 %v2193
    %v2211 = vpack.c.b16 %v2204, %v2203
    %v2212 = vpack.c.b16 %v2206, %v2205
    %v2213 = vpack.c.b16 %v2208, %v2207
    %v2214 = vpack.c.b16 %v2210, %v2209
    %v2220 = vsel %vm147, %v2194, 0
    %2222 = vmatprep.subr.bf16.mxu0 0
    %2223 = vmatpush1.bf16.msra.mxu0 0
    %2224 = vmatprep.subr.bf16.mxu0 0
    %2225 = vmatpush1.bf16.msra.mxu0 0
    %2226 = vmatprep.subr.bf16.mxu0 0
    %2227 = vmatpush1.bf16.msra.mxu0 0
    %2228 = vmatprep.subr.bf16.mxu0 0
    %2229 = vmatpush1.bf16.msra.mxu0 0
    %2230 = vmatprep.subr.bf16.mxu0 0
    %2231 = vmatpush1.bf16.msra.mxu0 %v2214
    %2232 = vmatprep.subr.bf16.mxu0 0
    %2233 = vmatpush1.bf16.msra.mxu0 %v2213
    %2234 = vmatprep.subr.bf16.mxu0 0
    %2235 = vmatpush1.bf16.msra.mxu0 %v2212
    %2236 = vmatprep.subr.bf16.mxu0 0
    %2237 = vmatpush1.bf16.msra.mxu0 %v2211
    %2238 = vmatprep.subr.bf16.mxu0 0
    %2239 = vmatpush2.bf16.msra.mxu0 0
    %2240 = vmatprep.subr.bf16.mxu0 0
    %2241 = vmatpush2.bf16.msra.mxu0 0
    %2242 = vmatprep.subr.bf16.mxu0 0
    %2243 = vmatpush2.bf16.msra.mxu0 0
    %2244 = vmatprep.subr.bf16.mxu0 0
    %2245 = vmatpush2.bf16.msra.mxu0 0
    %2246 = vmatprep.subr.bf16.mxu0 0
    %2247 = vmatpush2.bf16.msra.mxu0 0
    %2248 = vmatprep.subr.bf16.mxu0 0
    %2249 = vmatpush2.bf16.msra.mxu0 0
    %2250 = vmatprep.subr.bf16.mxu0 0
    %2251 = vmatpush2.bf16.msra.mxu0 0
    %2252 = vmatprep.subr.bf16.mxu0 0
    %2253 = vmatpush2.bf16.msra.mxu0 0
    %2254 = vmatprep.mubr.bf16.mxu0 0
    %2255 = vmatmul.mubr.bf16.gmra.mxu0 %v2220
    %v2256 = vpop.f32.mrf.mxu0
    %v2257 = vadd.f32 0.0, %v2256
    %v2258 = vpop.f32.mrf.mxu0
    %v2259 = vpop.f32.mrf.mxu0
    %v2260 = vadd.f32 0.0, %v2259
    %v2261 = vpop.f32.mrf.mxu0
    %2262 = vdwg.mxu0
    %v2263 = vadd.f32 %v2057, %v2257
    %v2264 = vadd.f32 %v2058, %v2260
    %v2265 = vld [vmem:[%s1268 + $0x8] sm:$0x1]
    %v2266 = vlaneseq
    %v2267 = vshrl.u32 %v2266, 7
    %v2268 = vsub.s32 0, %v2267
    %v2269 = vrot.slane %v2265, %v2268
    %v2270 = vadd.f32 %v2263, %v2269
    %v2271 = vadd.f32 %v2264, %v2269
    %v2272 = vld [vmem:[%s10] sm:$0xf]
    %v2273 = vld [vmem:[%s10 + $0x4] sm:$0xf]
    %v2274 = vld [vmem:[%s10 + $0x8] sm:$0xf]
    %v2275 = vld [vmem:[%s10 + $0xc] sm:$0xf]
    %v2276 = vpack.c.bf16 %v2271, %v2270
    %v2277 = vld [vmem:[%s11] sm:$0x1]
    %v2279 = vlaneseq
    %v2280 = vshrl.u32 %v2279, 7
    %v2281 = vsub.s32 0, %v2280
    %v2282 = vrot.slane %v2277, %v2281
    %v2288 = vunpack.c.l.b16 %v2272
    %v2289 = vunpack.c.l.b16 %v2273
    %v2290 = vunpack.c.l.b16 %v2274
    %v2291 = vunpack.c.l.b16 %v2275
    %v2292 = vpack.c.b16 %v2289, %v2288
    %v2293 = vpack.c.b16 %v2291, %v2290
    %v2297 = vsel %vm194, %v2276, 0
    %2299 = vmatprep.subr.bf16.mxu0 0
    %2300 = vmatpush1.bf16.msra.mxu0 0
    %2301 = vmatprep.subr.bf16.mxu0 0
    %2302 = vmatpush1.bf16.msra.mxu0 0
    %2303 = vmatprep.subr.bf16.mxu0 0
    %2304 = vmatpush1.bf16.msra.mxu0 0
    %2305 = vmatprep.subr.bf16.mxu0 0
    %2306 = vmatpush1.bf16.msra.mxu0 0
    %2307 = vmatprep.subr.bf16.mxu0 0
    %2308 = vmatpush1.bf16.msra.mxu0 0
    %2309 = vmatprep.subr.bf16.mxu0 0
    %2310 = vmatpush1.bf16.msra.mxu0 0
    %2311 = vmatprep.subr.bf16.mxu0 0
    %2312 = vmatpush1.bf16.msra.mxu0 %v2293
    %2313 = vmatprep.subr.bf16.mxu0 0
    %2314 = vmatpush1.bf16.msra.mxu0 %v2292
    %2315 = vmatprep.subr.bf16.mxu0 0
    %2316 = vmatpush2.bf16.msra.mxu0 0
    %2317 = vmatprep.subr.bf16.mxu0 0
    %2318 = vmatpush2.bf16.msra.mxu0 0
    %2319 = vmatprep.subr.bf16.mxu0 0
    %2320 = vmatpush2.bf16.msra.mxu0 0
    %2321 = vmatprep.subr.bf16.mxu0 0
    %2322 = vmatpush2.bf16.msra.mxu0 0
    %2323 = vmatprep.subr.bf16.mxu0 0
    %2324 = vmatpush2.bf16.msra.mxu0 0
    %2325 = vmatprep.subr.bf16.mxu0 0
    %2326 = vmatpush2.bf16.msra.mxu0 0
    %2327 = vmatprep.subr.bf16.mxu0 0
    %2328 = vmatpush2.bf16.msra.mxu0 0
    %2329 = vmatprep.subr.bf16.mxu0 0
    %2330 = vmatpush2.bf16.msra.mxu0 0
    %2331 = vmatprep.mubr.bf16.mxu0 0
    %2332 = vmatmul.mubr.bf16.gmra.mxu0 %v2297
    %v2333 = vpop.f32.mrf.mxu0
    %v2334 = vadd.f32 %v2282, %v2333
    %v2335 = vpop.f32.mrf.mxu0
    %v2336 = vpop.f32.mrf.mxu0
    %v2337 = vadd.f32 %v2282, %v2336
    %v2338 = vpop.f32.mrf.mxu0
    %2339 = vdwg.mxu0
    %2340 = vst.msk [vmem:[#allocation2] sm:$0xff] %vm147, %v2334
    %2341 = vst.msk [vmem:[#allocation2 + $0x8] sm:$0xff] %vm147, %v2337
    // Predicated region
    $region50: #{tpu_custom_call.1} parent=1 // pred_check
      _
    $region51: #{tpu_custom_call.1} parent=1 // pred_check_branch
      %2343 = sbr.rel (0) target = $region53
    $region52: #{tpu_custom_call.1} parent=1 // pred_region
      %s2345 = ssub.s32 256, 256
      %2346 = vsyncadd [#allocation3], %s2345
      %s2347 = sshll.u32 [#allocation2], 4
      %s2348 = int_to_ptr.vmem [resolvable:$true] %s2347
      %2353 = dma.vmem_to_hbm [thread:$0]  %s2348, 256, %s12, [#allocation3], 128, 128, 8
    $region53: #{tpu_custom_call.1} parent=1 // pred_fallthru
      _
    // Predicated region
    $region54: #{tpu_custom_call.1} parent=1 // pred_check
      _
    $region55: #{tpu_custom_call.1} parent=1 // pred_check_branch
      %2355 = sbr.rel (0) target = $region57
    $region56: #{tpu_custom_call.1} parent=1 // pred_region
      %2356 = dma.done [#allocation3], 256
    $region57: #{tpu_custom_call.1} parent=1 // pred_fallthru
      _
    %2357 = vsyncpa [#allocation3], 1

</llo_original>
